<compile_context>
chip_gen: v5e
topology: v5e:2x2
jax: 0.10.0
libtpu: 0.0.40
codegen_flags: <defaults>
</compile_context>

<pallas_src>
import functools

import jax
import jax.numpy as jnp
from jax.experimental import pallas as pl
from jax.experimental.pallas import tpu as pltpu


# ------------------- kernel 1: fused q/k/v + bias-MLP projections -------------------

def _proj_kernel(x_ref, sf_ref, wqkv_ref, bqkv_ref, wb1_ref, bb1_ref,
                 wb2_ref, bb2_ref, qkv_ref, bias_ref, *, num_heads, bias_hidden):
    # q/k/v for ALL heads in one lane-dense matmul: (B*L, D) @ (D, 3*H*Dh).
    qkv = jnp.dot(x_ref[...], wqkv_ref[...], preferred_element_type=jnp.float32)
    qkv_ref[...] = (qkv + bqkv_ref[...]).astype(qkv_ref.dtype)

    # Bias MLP for ALL heads: relu(sf @ [Wb1_h0|..|Wb1_hH]) -> (B, H*1024),
    # then per-head (1024, L*L) matmuls (slices are 128-lane aligned).
    h1 = jnp.dot(sf_ref[...], wb1_ref[...], preferred_element_type=jnp.float32)
    h1 = jnp.maximum(h1 + bb1_ref[...], 0.0)
    outs = []
    for h in range(num_heads):
        h1_h = h1[:, h * bias_hidden:(h + 1) * bias_hidden]            # (B, 1024)
        outs.append(jnp.dot(h1_h, wb2_ref[h], preferred_element_type=jnp.float32))
    bias = jnp.concatenate(outs, axis=-1) + bb2_ref[...]               # (B, H*L*L)
    bias_ref[...] = bias.astype(bias_ref.dtype)


def fused_projections(x2, sf, p, num_heads, bias_hidden):
    """x2: (B*L, D), sf: (B, S) -> qkv (B*L, 3*H*Dh), bias (B, H*L*L)."""
    BL, _ = x2.shape
    B = sf.shape[0]
    n_qkv = p["w_qkv"].shape[1]
    n_bias = p["b_b2"].shape[1]
    vmem = pl.BlockSpec(memory_space=pltpu.MemorySpace.VMEM)
    return pl.pallas_call(
        functools.partial(_proj_kernel, num_heads=num_heads, bias_hidden=bias_hidden),
        out_shape=(jax.ShapeDtypeStruct((BL, n_qkv), x2.dtype),
                   jax.ShapeDtypeStruct((B, n_bias), x2.dtype)),
        in_specs=[vmem] * 8,
        out_specs=(vmem, vmem),
    )(x2, sf, p["w_qkv"], p["b_qkv"], p["w_b1"], p["b_b1"], p["w_b2"], p["b_b2"])


# --------- kernel 2: all-head biased attention + out-proj + residual + LayerNorm ---------

def _attn_res_ln_kernel(x_ref, q_ref, k_ref, v_ref, bias_ref, wo_ref, bo_ref,
                        g_ref, beta_ref, o_ref, norm_ref,
                        *, num_heads, inv_scale, eps):
    x = x_ref[0]                       # (L, D)
    qa = q_ref[0]                      # (H, L, Dh)
    ka = k_ref[0]
    va = v_ref[0]
    ba = bias_ref[0]                   # (H, L, L)

    head_outs = []
    tv = jnp.zeros((1, 1, 1), jnp.float32)
    for h in range(num_heads):
        q, k, v, bias = qa[h], ka[h], va[h], ba[h]
        s = jnp.dot(q, k.T, preferred_element_type=jnp.float32) * inv_scale
        s = s - jnp.max(s, axis=-1, keepdims=True)
        e = jnp.exp(s)
        p = e * pl.reciprocal(jnp.sum(e, axis=-1, keepdims=True), approx=True)
        att = p + bias                                                 # add_mode == 0
        head_outs.append(jnp.dot(att, v, preferred_element_type=jnp.float32))
        # norm3: L1 total-variation norm of the bias map (rows + columns).
        dr = jnp.sum(jnp.abs(bias[1:, :] - bias[:-1, :]))
        dc = jnp.sum(jnp.abs(bias[:, 1:] - bias[:, :-1]))
        tv = tv + dr + dc

    hidden = jnp.concatenate(head_outs, axis=-1)                       # (L, H*Dh)
    attn = jnp.dot(hidden, wo_ref[...], preferred_element_type=jnp.float32) + bo_ref[...]

    # Residual_MH: LayerNorm(x + dropout(attn)); dropout = identity (eval semantics).
    z = x + attn
    mean = jnp.mean(z, axis=-1, keepdims=True)
    zc = z - mean
    var = jnp.mean(zc * zc, axis=-1, keepdims=True)
    y = zc * jax.lax.rsqrt(var + eps) * g_ref[...] + beta_ref[...]
    o_ref[0] = y.astype(o_ref.dtype)
    norm_ref[...] = tv


def attention_residual_ln(src, q, k, v, bias, p, eps=1e-5):
    """src: (B,L,D); q/k/v: (B,H,L,Dh); bias: (B,H,L,L) -> (B,L,D), norm scalar."""
    B, L, D = src.shape
    H, Dh = q.shape[1], q.shape[3]
    inv_scale = 1.0 / (float(Dh) ** 0.5)
    out, norm_p = pl.pallas_call(
        functools.partial(_attn_res_ln_kernel, num_heads=H,
                          inv_scale=inv_scale, eps=eps),
        grid=(B,),
        out_shape=(jax.ShapeDtypeStruct((B, L, D), src.dtype),
                   jax.ShapeDtypeStruct((B, 1, 1), jnp.float32)),
        in_specs=[
            pl.BlockSpec((1, L, D), lambda b: (b, 0, 0)),
            pl.BlockSpec((1, H, L, Dh), lambda b: (b, 0, 0, 0)),
            pl.BlockSpec((1, H, L, Dh), lambda b: (b, 0, 0, 0)),
            pl.BlockSpec((1, H, L, Dh), lambda b: (b, 0, 0, 0)),
            pl.BlockSpec((1, H, L, L), lambda b: (b, 0, 0, 0)),
            pl.BlockSpec((H * Dh, D), lambda b: (0, 0)),
            pl.BlockSpec((1, D), lambda b: (0, 0)),
            pl.BlockSpec((1, D), lambda b: (0, 0)),
            pl.BlockSpec((1, D), lambda b: (0, 0)),
        ],
        out_specs=(
            pl.BlockSpec((1, L, D), lambda b: (b, 0, 0)),
            pl.BlockSpec((1, 1, 1), lambda b: (b, 0, 0)),   # per-batch TV-norm partial
        ),
        compiler_params=pltpu.CompilerParams(dimension_semantics=("parallel",)),
    )(src, q, k, v, bias, p["w_out"], p["b_out"], p["ln_g"], p["ln_b"])
    return out, jnp.sum(norm_p)


# ----------------------------- Residual_MH forward -----------------------------

def residual_mh_forward(src, sf, params, eps=1e-5):
    """Residual_MH(MultiHeadAttentionBias) forward: (LayerNorm(src + attn), norm)."""
    B, L, D = src.shape
    H = params["w_b2"].shape[0]
    Dh = params["w_qkv"].shape[1] // (3 * H)
    bias_hidden = params["w_b1"].shape[1] // H

    x2 = src.reshape(B * L, D)
    qkv, bias_flat = fused_projections(x2, sf, params, H, bias_hidden)

    def split_heads(m):                       # (B*L, H*Dh) -> (B, H, L, Dh)
        return m.reshape(B, L, H, Dh).transpose(0, 2, 1, 3)

    q = split_heads(qkv[:, :H * Dh])
    k = split_heads(qkv[:, H * Dh:2 * H * Dh])
    v = split_heads(qkv[:, 2 * H * Dh:])
    bias = bias_flat.reshape(B, H, L, L)

    return attention_residual_ln(src, q, k, v, bias, params, eps)


# ----------------------------- parameter init -----------------------------

def _init_linear(key, fan_in, fan_out):
    kw, kb = jax.random.split(key)
    bound = 1.0 / (fan_in ** 0.5)
    w = jax.random.uniform(kw, (fan_in, fan_out), jnp.float32, -bound, bound)
    b = jax.random.uniform(kb, (fan_out,), jnp.float32, -bound, bound)
    return w, b


def init_residual_mh(key, dim_model, num_heads, dim_head, dim_s, seq_len,
                     bias_hidden=1024):
    keys = jax.random.split(key, 5 * num_heads + 1)
    wq, bq, wk, bk, wv, bv = [], [], [], [], [], []
    wb1, bb1, wb2, bb2 = [], [], [], []
    for h in range(num_heads):
        k0, k1, k2, k3, k4 = keys[5 * h:5 * h + 5]
        w, b = _init_linear(k0, dim_model, dim_head); wq.append(w); bq.append(b)
        w, b = _init_linear(k1, dim_model, dim_head); wk.append(w); bk.append(b)
        w, b = _init_linear(k2, dim_model, dim_head); wv.append(w); bv.append(b)
        w, b = _init_linear(k3, dim_s, bias_hidden);  wb1.append(w); bb1.append(b)
        w, b = _init_linear(k4, bias_hidden, seq_len * seq_len); wb2.append(w); bb2.append(b)
    wo, bo = _init_linear(keys[-1], num_heads * dim_head, dim_model)
    return {
        # stacked head weights: columns ordered  q[h0..hH] | k[h0..hH] | v[h0..hH]
        "w_qkv": jnp.concatenate(wq + wk + wv, axis=1),          # (D, 3*H*Dh)
        "b_qkv": jnp.concatenate(bq + bk + bv)[None, :],         # (1, 3*H*Dh)
        "w_b1": jnp.concatenate(wb1, axis=1),                    # (dim_s, H*1024)
        "b_b1": jnp.concatenate(bb1)[None, :],                   # (1, H*1024)
        "w_b2": jnp.stack(wb2, axis=0),                          # (H, 1024, L*L)
        "b_b2": jnp.concatenate(bb2)[None, :],                   # (1, H*L*L)
        "w_out": wo,                                             # (H*Dh, D)
        "b_out": bo[None, :],                                    # (1, D)
        "ln_g": jnp.ones((1, dim_model), jnp.float32),
        "ln_b": jnp.zeros((1, dim_model), jnp.float32),
    }


# ----------------------------- main -----------------------------

if __name__ == "__main__":
    B, L = 2, 8
    DIM_MODEL, NUM_HEADS, DIM_S = 64, 4, 19
    DIM_HEAD = DIM_MODEL // NUM_HEADS   # 16

    key = jax.random.PRNGKey(0)
    kp, ksrc, ksf = jax.random.split(key, 3)
    params = init_residual_mh(kp, DIM_MODEL, NUM_HEADS, DIM_HEAD, DIM_S, L)

    src = jax.random.normal(ksrc, (B, L, DIM_MODEL), jnp.float32)
    sf = jax.random.normal(ksf, (B, DIM_S), jnp.float32)

    fwd = jax.jit(residual_mh_forward)
    out, norm = fwd(src, sf, params)
    jax.block_until_ready((out, norm))
    assert out.shape == (B, L, DIM_MODEL)
    assert norm.shape == ()
    print("KERNEL_OK")
</pallas_src>

<mosaic_0001>
module attributes {stable_mosaic.version = 11 : i64} {
  func.func @_proj_kernel(%arg0: memref<16x64xf32, #tpu.memory_space<vmem>>, %arg1: memref<2x19xf32, #tpu.memory_space<vmem>>, %arg2: memref<64x192xf32, #tpu.memory_space<vmem>>, %arg3: memref<1x192xf32, #tpu.memory_space<vmem>>, %arg4: memref<19x4096xf32, #tpu.memory_space<vmem>>, %arg5: memref<1x4096xf32, #tpu.memory_space<vmem>>, %arg6: memref<4x1024x64xf32, #tpu.memory_space<vmem>>, %arg7: memref<1x256xf32, #tpu.memory_space<vmem>>, %arg8: memref<16x192xf32, #tpu.memory_space<vmem>>, %arg9: memref<2x256xf32, #tpu.memory_space<vmem>>) attributes {dimension_semantics = [], scalar_prefetch = 0 : i64, scratch_operands = 0 : i64, tpu.core_type = #tpu.core_type<tc>} {
    %c0 = arith.constant 0 : index
    %c0_0 = arith.constant 0 : index
    %0 = vector.load %arg0[%c0, %c0_0] : memref<16x64xf32, #tpu.memory_space<vmem>>, vector<16x64xf32>
    %c0_1 = arith.constant 0 : index
    %c0_2 = arith.constant 0 : index
    %1 = vector.load %arg2[%c0_1, %c0_2] : memref<64x192xf32, #tpu.memory_space<vmem>>, vector<64x192xf32>
    %cst = arith.constant dense<0.000000e+00> : vector<16x192xf32>
    %2 = tpu.matmul %0, %1, %cst {dimension_numbers = #tpu.dot_dimension_numbers<[1], [0], [0], [1], [0, 0, 1, 1], [], []>} : vector<16x64xf32>, vector<64x192xf32>, vector<16x192xf32> -> vector<16x192xf32>
    %c0_3 = arith.constant 0 : index
    %c0_4 = arith.constant 0 : index
    %3 = vector.load %arg3[%c0_3, %c0_4] : memref<1x192xf32, #tpu.memory_space<vmem>>, vector<1x192xf32>
    %4 = vector.broadcast %3 : vector<1x192xf32> to vector<16x192xf32>
    %5 = arith.addf %2, %4 : vector<16x192xf32>
    %c0_5 = arith.constant 0 : index
    %c0_6 = arith.constant 0 : index
    %6 = vector.load %arg8[%c0_5, %c0_6] : memref<16x192xf32, #tpu.memory_space<vmem>>, vector<16x192xf32>
    tpu.vector_store %arg8[%c0_5, %c0_6], %5 {strides = array<i32>} : memref<16x192xf32, #tpu.memory_space<vmem>>, vector<16x192xf32>,
    %c0_7 = arith.constant 0 : index
    %c0_8 = arith.constant 0 : index
    %7 = vector.load %arg1[%c0_7, %c0_8] : memref<2x19xf32, #tpu.memory_space<vmem>>, vector<2x19xf32>
    %c0_9 = arith.constant 0 : index
    %c0_10 = arith.constant 0 : index
    %8 = vector.load %arg4[%c0_9, %c0_10] : memref<19x4096xf32, #tpu.memory_space<vmem>>, vector<19x4096xf32>
    %cst_11 = arith.constant dense<0.000000e+00> : vector<2x4096xf32>
    %9 = tpu.matmul %7, %8, %cst_11 {dimension_numbers = #tpu.dot_dimension_numbers<[1], [0], [0], [1], [0, 0, 1, 1], [], []>} : vector<2x19xf32>, vector<19x4096xf32>, vector<2x4096xf32> -> vector<2x4096xf32>
    %c0_12 = arith.constant 0 : index
    %c0_13 = arith.constant 0 : index
    %10 = vector.load %arg5[%c0_12, %c0_13] : memref<1x4096xf32, #tpu.memory_space<vmem>>, vector<1x4096xf32>
    %11 = vector.broadcast %10 : vector<1x4096xf32> to vector<2x4096xf32>
    %12 = arith.addf %9, %11 : vector<2x4096xf32>
    %cst_14 = arith.constant 0.000000e+00 : f32
    %13 = vector.broadcast %cst_14 : f32 to vector<2x4096xf32>
    %14 = arith.maximumf %12, %13 : vector<2x4096xf32>
    %15 = vector.extract_strided_slice %14 {offsets = [0, 0], sizes = [2, 1024], strides = [1, 1]} : vector<2x4096xf32> to vector<2x1024xf32>
    %c0_15 = arith.constant 0 : index
    %c0_16 = arith.constant 0 : index
    %c0_17 = arith.constant 0 : index
    %16 = vector.load %arg6[%c0_15, %c0_16, %c0_17] : memref<4x1024x64xf32, #tpu.memory_space<vmem>>, vector<1x1024x64xf32>
    %17 = vector.shape_cast %16 : vector<1x1024x64xf32> to vector<1024x64xf32>
    %cst_18 = arith.constant dense<0.000000e+00> : vector<2x64xf32>
    %18 = tpu.matmul %15, %17, %cst_18 {dimension_numbers = #tpu.dot_dimension_numbers<[1], [0], [0], [1], [0, 0, 1, 1], [], []>} : vector<2x1024xf32>, vector<1024x64xf32>, vector<2x64xf32> -> vector<2x64xf32>
    %19 = vector.extract_strided_slice %14 {offsets = [0, 1024], sizes = [2, 1024], strides = [1, 1]} : vector<2x4096xf32> to vector<2x1024xf32>
    %c1 = arith.constant 1 : index
    %c0_19 = arith.constant 0 : index
    %c0_20 = arith.constant 0 : index
    %20 = vector.load %arg6[%c1, %c0_19, %c0_20] : memref<4x1024x64xf32, #tpu.memory_space<vmem>>, vector<1x1024x64xf32>
    %21 = vector.shape_cast %20 : vector<1x1024x64xf32> to vector<1024x64xf32>
    %cst_21 = arith.constant dense<0.000000e+00> : vector<2x64xf32>
    %22 = tpu.matmul %19, %21, %cst_21 {dimension_numbers = #tpu.dot_dimension_numbers<[1], [0], [0], [1], [0, 0, 1, 1], [], []>} : vector<2x1024xf32>, vector<1024x64xf32>, vector<2x64xf32> -> vector<2x64xf32>
    %23 = vector.extract_strided_slice %14 {offsets = [0, 2048], sizes = [2, 1024], strides = [1, 1]} : vector<2x4096xf32> to vector<2x1024xf32>
    %c2 = arith.constant 2 : index
    %c0_22 = arith.constant 0 : index
    %c0_23 = arith.constant 0 : index
    %24 = vector.load %arg6[%c2, %c0_22, %c0_23] : memref<4x1024x64xf32, #tpu.memory_space<vmem>>, vector<1x1024x64xf32>
    %25 = vector.shape_cast %24 : vector<1x1024x64xf32> to vector<1024x64xf32>
    %cst_24 = arith.constant dense<0.000000e+00> : vector<2x64xf32>
    %26 = tpu.matmul %23, %25, %cst_24 {dimension_numbers = #tpu.dot_dimension_numbers<[1], [0], [0], [1], [0, 0, 1, 1], [], []>} : vector<2x1024xf32>, vector<1024x64xf32>, vector<2x64xf32> -> vector<2x64xf32>
    %27 = vector.extract_strided_slice %14 {offsets = [0, 3072], sizes = [2, 1024], strides = [1, 1]} : vector<2x4096xf32> to vector<2x1024xf32>
    %c3 = arith.constant 3 : index
    %c0_25 = arith.constant 0 : index
    %c0_26 = arith.constant 0 : index
    %28 = vector.load %arg6[%c3, %c0_25, %c0_26] : memref<4x1024x64xf32, #tpu.memory_space<vmem>>, vector<1x1024x64xf32>
    %29 = vector.shape_cast %28 : vector<1x1024x64xf32> to vector<1024x64xf32>
    %cst_27 = arith.constant dense<0.000000e+00> : vector<2x64xf32>
    %30 = tpu.matmul %27, %29, %cst_27 {dimension_numbers = #tpu.dot_dimension_numbers<[1], [0], [0], [1], [0, 0, 1, 1], [], []>} : vector<2x1024xf32>, vector<1024x64xf32>, vector<2x64xf32> -> vector<2x64xf32>
    %31 = tpu.concatenate %18, %22, %26, %30 in 1 : vector<2x64xf32>, vector<2x64xf32>, vector<2x64xf32>, vector<2x64xf32> -> vector<2x256xf32>
    %c0_28 = arith.constant 0 : index
    %c0_29 = arith.constant 0 : index
    %32 = vector.load %arg7[%c0_28, %c0_29] : memref<1x256xf32, #tpu.memory_space<vmem>>, vector<1x256xf32>
    %33 = vector.broadcast %32 : vector<1x256xf32> to vector<2x256xf32>
    %34 = arith.addf %31, %33 : vector<2x256xf32>
    %c0_30 = arith.constant 0 : index
    %c0_31 = arith.constant 0 : index
    %35 = vector.load %arg9[%c0_30, %c0_31] : memref<2x256xf32, #tpu.memory_space<vmem>>, vector<2x256xf32>
    tpu.vector_store %arg9[%c0_30, %c0_31], %34 {strides = array<i32>} : memref<2x256xf32, #tpu.memory_space<vmem>>, vector<2x256xf32>,
    return
  }
}

module attributes {stable_mosaic.version = 11 : i64} {
  func.func @_attn_res_ln_kernel(%arg0: i32, %arg1: memref<1x8x64xf32, #tpu.memory_space<vmem>>, %arg2: memref<1x4x8x16xf32, #tpu.memory_space<vmem>>, %arg3: memref<1x4x8x16xf32, #tpu.memory_space<vmem>>, %arg4: memref<1x4x8x16xf32, #tpu.memory_space<vmem>>, %arg5: memref<1x4x8x8xf32, #tpu.memory_space<vmem>>, %arg6: memref<64x64xf32, #tpu.memory_space<vmem>>, %arg7: memref<1x64xf32, #tpu.memory_space<vmem>>, %arg8: memref<1x64xf32, #tpu.memory_space<vmem>>, %arg9: memref<1x64xf32, #tpu.memory_space<vmem>>, %arg10: memref<1x8x64xf32, #tpu.memory_space<vmem>>, %arg11: memref<1x1x1xf32, #tpu.memory_space<vmem>>) attributes {dimension_semantics = [#tpu.dimension_semantics<parallel>], iteration_bounds = array<i64: 2>, scalar_prefetch = 0 : i64, scratch_operands = 0 : i64, tpu.core_type = #tpu.core_type<tc>, window_params = [{transform_indices = @transform_0, window_bounds = array<i64: 1, 8, 64>}, {transform_indices = @transform_1, window_bounds = array<i64: 1, 4, 8, 16>}, {transform_indices = @transform_2, window_bounds = array<i64: 1, 4, 8, 16>}, {transform_indices = @transform_3, window_bounds = array<i64: 1, 4, 8, 16>}, {transform_indices = @transform_4, window_bounds = array<i64: 1, 4, 8, 8>}, {pipeline_mode = #tpu.pipeline_mode<synchronous>, transform_indices = @transform_5, window_bounds = array<i64: 64, 64>}, {pipeline_mode = #tpu.pipeline_mode<synchronous>, transform_indices = @transform_6, window_bounds = array<i64: 1, 64>}, {pipeline_mode = #tpu.pipeline_mode<synchronous>, transform_indices = @transform_7, window_bounds = array<i64: 1, 64>}, {pipeline_mode = #tpu.pipeline_mode<synchronous>, transform_indices = @transform_8, window_bounds = array<i64: 1, 64>}, {transform_indices = @transform_9, window_bounds = array<i64: 1, 8, 64>}, {transform_indices = @transform_10, window_bounds = array<i64: 1, 1, 1>}]} {
    %c0 = arith.constant 0 : index
    %c0_0 = arith.constant 0 : index
    %c0_1 = arith.constant 0 : index
    %0 = vector.load %arg1[%c0, %c0_0, %c0_1] : memref<1x8x64xf32, #tpu.memory_space<vmem>>, vector<1x8x64xf32>
    %1 = vector.shape_cast %0 : vector<1x8x64xf32> to vector<8x64xf32>
    %c0_2 = arith.constant 0 : index
    %c0_3 = arith.constant 0 : index
    %c0_4 = arith.constant 0 : index
    %c0_5 = arith.constant 0 : index
    %2 = vector.load %arg2[%c0_2, %c0_3, %c0_4, %c0_5] : memref<1x4x8x16xf32, #tpu.memory_space<vmem>>, vector<1x4x8x16xf32>
    %3 = vector.shape_cast %2 : vector<1x4x8x16xf32> to vector<4x8x16xf32>
    %c0_6 = arith.constant 0 : index
    %c0_7 = arith.constant 0 : index
    %c0_8 = arith.constant 0 : index
    %c0_9 = arith.constant 0 : index
    %4 = vector.load %arg3[%c0_6, %c0_7, %c0_8, %c0_9] : memref<1x4x8x16xf32, #tpu.memory_space<vmem>>, vector<1x4x8x16xf32>
    %5 = vector.shape_cast %4 : vector<1x4x8x16xf32> to vector<4x8x16xf32>
    %c0_10 = arith.constant 0 : index
    %c0_11 = arith.constant 0 : index
    %c0_12 = arith.constant 0 : index
    %c0_13 = arith.constant 0 : index
    %6 = vector.load %arg4[%c0_10, %c0_11, %c0_12, %c0_13] : memref<1x4x8x16xf32, #tpu.memory_space<vmem>>, vector<1x4x8x16xf32>
    %7 = vector.shape_cast %6 : vector<1x4x8x16xf32> to vector<4x8x16xf32>
    %c0_14 = arith.constant 0 : index
    %c0_15 = arith.constant 0 : index
    %c0_16 = arith.constant 0 : index
    %c0_17 = arith.constant 0 : index
    %8 = vector.load %arg5[%c0_14, %c0_15, %c0_16, %c0_17] : memref<1x4x8x8xf32, #tpu.memory_space<vmem>>, vector<1x4x8x8xf32>
    %9 = vector.shape_cast %8 : vector<1x4x8x8xf32> to vector<4x8x8xf32>
    %cst = arith.constant 0.000000e+00 : f32
    %10 = vector.broadcast %cst : f32 to vector<1x1x1xf32>
    %11 = vector.extract_strided_slice %3 {offsets = [0, 0, 0], sizes = [1, 8, 16], strides = [1, 1, 1]} : vector<4x8x16xf32> to vector<1x8x16xf32>
    %12 = vector.shape_cast %11 : vector<1x8x16xf32> to vector<8x16xf32>
    %13 = vector.extract_strided_slice %5 {offsets = [0, 0, 0], sizes = [1, 8, 16], strides = [1, 1, 1]} : vector<4x8x16xf32> to vector<1x8x16xf32>
    %14 = vector.shape_cast %13 : vector<1x8x16xf32> to vector<8x16xf32>
    %15 = vector.extract_strided_slice %7 {offsets = [0, 0, 0], sizes = [1, 8, 16], strides = [1, 1, 1]} : vector<4x8x16xf32> to vector<1x8x16xf32>
    %16 = vector.shape_cast %15 : vector<1x8x16xf32> to vector<8x16xf32>
    %17 = vector.extract_strided_slice %9 {offsets = [0, 0, 0], sizes = [1, 8, 8], strides = [1, 1, 1]} : vector<4x8x8xf32> to vector<1x8x8xf32>
    %18 = vector.shape_cast %17 : vector<1x8x8xf32> to vector<8x8xf32>
    %19 = tpu.transpose %14, [1, 0] : vector<8x16xf32> -> vector<16x8xf32>
    %cst_18 = arith.constant dense<0.000000e+00> : vector<8x8xf32>
    %20 = tpu.matmul %12, %19, %cst_18 {dimension_numbers = #tpu.dot_dimension_numbers<[1], [0], [0], [1], [0, 0, 1, 1], [], []>} : vector<8x16xf32>, vector<16x8xf32>, vector<8x8xf32> -> vector<8x8xf32>
    %cst_19 = arith.constant 2.500000e-01 : f32
    %21 = vector.broadcast %cst_19 : f32 to vector<8x8xf32>
    %22 = arith.mulf %20, %21 : vector<8x8xf32>
    %cst_20 = arith.constant dense<0xFF800000> : vector<8xf32>
    %23 = vector.multi_reduction <maximumf>, %22, %cst_20 [1] : vector<8x8xf32> to vector<8xf32>
    %24 = vector.shape_cast %23 : vector<8xf32> to vector<8x1xf32>
    %25 = vector.broadcast %24 : vector<8x1xf32> to vector<8x8xf32>
    %26 = arith.subf %22, %25 : vector<8x8xf32>
    %27 = math.exp %26 : vector<8x8xf32>
    %cst_21 = arith.constant dense<0.000000e+00> : vector<8xf32>
    %28 = vector.multi_reduction <add>, %27, %cst_21 [1] : vector<8x8xf32> to vector<8xf32>
    %29 = vector.shape_cast %28 : vector<8xf32> to vector<8x1xf32>
    %30 = tpu.reciprocal %29 {approx = true} : vector<8x1xf32> -> vector<8x1xf32>
    %31 = vector.broadcast %30 : vector<8x1xf32> to vector<8x8xf32>
    %32 = arith.mulf %27, %31 : vector<8x8xf32>
    %33 = arith.addf %32, %18 : vector<8x8xf32>
    %cst_22 = arith.constant dense<0.000000e+00> : vector<8x16xf32>
    %34 = tpu.matmul %33, %16, %cst_22 {dimension_numbers = #tpu.dot_dimension_numbers<[1], [0], [0], [1], [0, 0, 1, 1], [], []>} : vector<8x8xf32>, vector<8x16xf32>, vector<8x16xf32> -> vector<8x16xf32>
    %35 = vector.extract_strided_slice %18 {offsets = [1, 0], sizes = [7, 8], strides = [1, 1]} : vector<8x8xf32> to vector<7x8xf32>
    %36 = vector.extract_strided_slice %18 {offsets = [0, 0], sizes = [7, 8], strides = [1, 1]} : vector<8x8xf32> to vector<7x8xf32>
    %37 = arith.subf %35, %36 : vector<7x8xf32>
    %38 = math.absf %37 : vector<7x8xf32>
    %39 = vector.shape_cast %38 : vector<7x8xf32> to vector<1x7x8xf32>
    %cst_23 = arith.constant dense<0.000000e+00> : vector<1xf32>
    %40 = vector.multi_reduction <add>, %39, %cst_23 [1, 2] : vector<1x7x8xf32> to vector<1xf32>
    %41 = vector.shape_cast %40 : vector<1xf32> to vector<1x1x1xf32>
    %42 = vector.extract %41[0, 0, 0] : f32 from vector<1x1x1xf32>
    %43 = vector.extract_strided_slice %18 {offsets = [0, 1], sizes = [8, 7], strides = [1, 1]} : vector<8x8xf32> to vector<8x7xf32>
    %44 = vector.extract_strided_slice %18 {offsets = [0, 0], sizes = [8, 7], strides = [1, 1]} : vector<8x8xf32> to vector<8x7xf32>
    %45 = arith.subf %43, %44 : vector<8x7xf32>
    %46 = math.absf %45 : vector<8x7xf32>
    %47 = vector.shape_cast %46 : vector<8x7xf32> to vector<1x8x7xf32>
    %cst_24 = arith.constant dense<0.000000e+00> : vector<1xf32>
    %48 = vector.multi_reduction <add>, %47, %cst_24 [1, 2] : vector<1x8x7xf32> to vector<1xf32>
    %49 = vector.shape_cast %48 : vector<1xf32> to vector<1x1x1xf32>
    %50 = vector.extract %49[0, 0, 0] : f32 from vector<1x1x1xf32>
    %51 = vector.broadcast %42 : f32 to vector<1x1x1xf32>
    %52 = arith.addf %10, %51 : vector<1x1x1xf32>
    %53 = vector.broadcast %50 : f32 to vector<1x1x1xf32>
    %54 = arith.addf %52, %53 : vector<1x1x1xf32>
    %55 = vector.extract_strided_slice %3 {offsets = [1, 0, 0], sizes = [1, 8, 16], strides = [1, 1, 1]} : vector<4x8x16xf32> to vector<1x8x16xf32>
    %56 = vector.shape_cast %55 : vector<1x8x16xf32> to vector<8x16xf32>
    %57 = vector.extract_strided_slice %5 {offsets = [1, 0, 0], sizes = [1, 8, 16], strides = [1, 1, 1]} : vector<4x8x16xf32> to vector<1x8x16xf32>
    %58 = vector.shape_cast %57 : vector<1x8x16xf32> to vector<8x16xf32>
    %59 = vector.extract_strided_slice %7 {offsets = [1, 0, 0], sizes = [1, 8, 16], strides = [1, 1, 1]} : vector<4x8x16xf32> to vector<1x8x16xf32>
    %60 = vector.shape_cast %59 : vector<1x8x16xf32> to vector<8x16xf32>
    %61 = vector.extract_strided_slice %9 {offsets = [1, 0, 0], sizes = [1, 8, 8], strides = [1, 1, 1]} : vector<4x8x8xf32> to vector<1x8x8xf32>
    %62 = vector.shape_cast %61 : vector<1x8x8xf32> to vector<8x8xf32>
    %63 = tpu.transpose %58, [1, 0] : vector<8x16xf32> -> vector<16x8xf32>
    %cst_25 = arith.constant dense<0.000000e+00> : vector<8x8xf32>
    %64 = tpu.matmul %56, %63, %cst_25 {dimension_numbers = #tpu.dot_dimension_numbers<[1], [0], [0], [1], [0, 0, 1, 1], [], []>} : vector<8x16xf32>, vector<16x8xf32>, vector<8x8xf32> -> vector<8x8xf32>
    %cst_26 = arith.constant 2.500000e-01 : f32
    %65 = vector.broadcast %cst_26 : f32 to vector<8x8xf32>
    %66 = arith.mulf %64, %65 : vector<8x8xf32>
    %cst_27 = arith.constant dense<0xFF800000> : vector<8xf32>
    %67 = vector.multi_reduction <maximumf>, %66, %cst_27 [1] : vector<8x8xf32> to vector<8xf32>
    %68 = vector.shape_cast %67 : vector<8xf32> to vector<8x1xf32>
    %69 = vector.broadcast %68 : vector<8x1xf32> to vector<8x8xf32>
    %70 = arith.subf %66, %69 : vector<8x8xf32>
    %71 = math.exp %70 : vector<8x8xf32>
    %cst_28 = arith.constant dense<0.000000e+00> : vector<8xf32>
    %72 = vector.multi_reduction <add>, %71, %cst_28 [1] : vector<8x8xf32> to vector<8xf32>
    %73 = vector.shape_cast %72 : vector<8xf32> to vector<8x1xf32>
    %74 = tpu.reciprocal %73 {approx = true} : vector<8x1xf32> -> vector<8x1xf32>
    %75 = vector.broadcast %74 : vector<8x1xf32> to vector<8x8xf32>
    %76 = arith.mulf %71, %75 : vector<8x8xf32>
    %77 = arith.addf %76, %62 : vector<8x8xf32>
    %cst_29 = arith.constant dense<0.000000e+00> : vector<8x16xf32>
    %78 = tpu.matmul %77, %60, %cst_29 {dimension_numbers = #tpu.dot_dimension_numbers<[1], [0], [0], [1], [0, 0, 1, 1], [], []>} : vector<8x8xf32>, vector<8x16xf32>, vector<8x16xf32> -> vector<8x16xf32>
    %79 = vector.extract_strided_slice %62 {offsets = [1, 0], sizes = [7, 8], strides = [1, 1]} : vector<8x8xf32> to vector<7x8xf32>
    %80 = vector.extract_strided_slice %62 {offsets = [0, 0], sizes = [7, 8], strides = [1, 1]} : vector<8x8xf32> to vector<7x8xf32>
    %81 = arith.subf %79, %80 : vector<7x8xf32>
    %82 = math.absf %81 : vector<7x8xf32>
    %83 = vector.shape_cast %82 : vector<7x8xf32> to vector<1x7x8xf32>
    %cst_30 = arith.constant dense<0.000000e+00> : vector<1xf32>
    %84 = vector.multi_reduction <add>, %83, %cst_30 [1, 2] : vector<1x7x8xf32> to vector<1xf32>
    %85 = vector.shape_cast %84 : vector<1xf32> to vector<1x1x1xf32>
    %86 = vector.extract %85[0, 0, 0] : f32 from vector<1x1x1xf32>
    %87 = vector.extract_strided_slice %62 {offsets = [0, 1], sizes = [8, 7], strides = [1, 1]} : vector<8x8xf32> to vector<8x7xf32>
    %88 = vector.extract_strided_slice %62 {offsets = [0, 0], sizes = [8, 7], strides = [1, 1]} : vector<8x8xf32> to vector<8x7xf32>
    %89 = arith.subf %87, %88 : vector<8x7xf32>
    %90 = math.absf %89 : vector<8x7xf32>
    %91 = vector.shape_cast %90 : vector<8x7xf32> to vector<1x8x7xf32>
    %cst_31 = arith.constant dense<0.000000e+00> : vector<1xf32>
    %92 = vector.multi_reduction <add>, %91, %cst_31 [1, 2] : vector<1x8x7xf32> to vector<1xf32>
    %93 = vector.shape_cast %92 : vector<1xf32> to vector<1x1x1xf32>
    %94 = vector.extract %93[0, 0, 0] : f32 from vector<1x1x1xf32>
    %95 = vector.broadcast %86 : f32 to vector<1x1x1xf32>
    %96 = arith.addf %54, %95 : vector<1x1x1xf32>
    %97 = vector.broadcast %94 : f32 to vector<1x1x1xf32>
    %98 = arith.addf %96, %97 : vector<1x1x1xf32>
    %99 = vector.extract_strided_slice %3 {offsets = [2, 0, 0], sizes = [1, 8, 16], strides = [1, 1, 1]} : vector<4x8x16xf32> to vector<1x8x16xf32>
    %100 = vector.shape_cast %99 : vector<1x8x16xf32> to vector<8x16xf32>
    %101 = vector.extract_strided_slice %5 {offsets = [2, 0, 0], sizes = [1, 8, 16], strides = [1, 1, 1]} : vector<4x8x16xf32> to vector<1x8x16xf32>
    %102 = vector.shape_cast %101 : vector<1x8x16xf32> to vector<8x16xf32>
    %103 = vector.extract_strided_slice %7 {offsets = [2, 0, 0], sizes = [1, 8, 16], strides = [1, 1, 1]} : vector<4x8x16xf32> to vector<1x8x16xf32>
    %104 = vector.shape_cast %103 : vector<1x8x16xf32> to vector<8x16xf32>
    %105 = vector.extract_strided_slice %9 {offsets = [2, 0, 0], sizes = [1, 8, 8], strides = [1, 1, 1]} : vector<4x8x8xf32> to vector<1x8x8xf32>
    %106 = vector.shape_cast %105 : vector<1x8x8xf32> to vector<8x8xf32>
    %107 = tpu.transpose %102, [1, 0] : vector<8x16xf32> -> vector<16x8xf32>
    %cst_32 = arith.constant dense<0.000000e+00> : vector<8x8xf32>
    %108 = tpu.matmul %100, %107, %cst_32 {dimension_numbers = #tpu.dot_dimension_numbers<[1], [0], [0], [1], [0, 0, 1, 1], [], []>} : vector<8x16xf32>, vector<16x8xf32>, vector<8x8xf32> -> vector<8x8xf32>
    %cst_33 = arith.constant 2.500000e-01 : f32
    %109 = vector.broadcast %cst_33 : f32 to vector<8x8xf32>
    %110 = arith.mulf %108, %109 : vector<8x8xf32>
    %cst_34 = arith.constant dense<0xFF800000> : vector<8xf32>
    %111 = vector.multi_reduction <maximumf>, %110, %cst_34 [1] : vector<8x8xf32> to vector<8xf32>
    %112 = vector.shape_cast %111 : vector<8xf32> to vector<8x1xf32>
    %113 = vector.broadcast %112 : vector<8x1xf32> to vector<8x8xf32>
    %114 = arith.subf %110, %113 : vector<8x8xf32>
    %115 = math.exp %114 : vector<8x8xf32>
    %cst_35 = arith.constant dense<0.000000e+00> : vector<8xf32>
    %116 = vector.multi_reduction <add>, %115, %cst_35 [1] : vector<8x8xf32> to vector<8xf32>
    %117 = vector.shape_cast %116 : vector<8xf32> to vector<8x1xf32>
    %118 = tpu.reciprocal %117 {approx = true} : vector<8x1xf32> -> vector<8x1xf32>
    %119 = vector.broadcast %118 : vector<8x1xf32> to vector<8x8xf32>
    %120 = arith.mulf %115, %119 : vector<8x8xf32>
    %121 = arith.addf %120, %106 : vector<8x8xf32>
    %cst_36 = arith.constant dense<0.000000e+00> : vector<8x16xf32>
    %122 = tpu.matmul %121, %104, %cst_36 {dimension_numbers = #tpu.dot_dimension_numbers<[1], [0], [0], [1], [0, 0, 1, 1], [], []>} : vector<8x8xf32>, vector<8x16xf32>, vector<8x16xf32> -> vector<8x16xf32>
    %123 = vector.extract_strided_slice %106 {offsets = [1, 0], sizes = [7, 8], strides = [1, 1]} : vector<8x8xf32> to vector<7x8xf32>
    %124 = vector.extract_strided_slice %106 {offsets = [0, 0], sizes = [7, 8], strides = [1, 1]} : vector<8x8xf32> to vector<7x8xf32>
    %125 = arith.subf %123, %124 : vector<7x8xf32>
    %126 = math.absf %125 : vector<7x8xf32>
    %127 = vector.shape_cast %126 : vector<7x8xf32> to vector<1x7x8xf32>
    %cst_37 = arith.constant dense<0.000000e+00> : vector<1xf32>
    %128 = vector.multi_reduction <add>, %127, %cst_37 [1, 2] : vector<1x7x8xf32> to vector<1xf32>
    %129 = vector.shape_cast %128 : vector<1xf32> to vector<1x1x1xf32>
    %130 = vector.extract %129[0, 0, 0] : f32 from vector<1x1x1xf32>
    %131 = vector.extract_strided_slice %106 {offsets = [0, 1], sizes = [8, 7], strides = [1, 1]} : vector<8x8xf32> to vector<8x7xf32>
    %132 = vector.extract_strided_slice %106 {offsets = [0, 0], sizes = [8, 7], strides = [1, 1]} : vector<8x8xf32> to vector<8x7xf32>
    %133 = arith.subf %131, %132 : vector<8x7xf32>
    %134 = math.absf %133 : vector<8x7xf32>
    %135 = vector.shape_cast %134 : vector<8x7xf32> to vector<1x8x7xf32>
    %cst_38 = arith.constant dense<0.000000e+00> : vector<1xf32>
    %136 = vector.multi_reduction <add>, %135, %cst_38 [1, 2] : vector<1x8x7xf32> to vector<1xf32>
    %137 = vector.shape_cast %136 : vector<1xf32> to vector<1x1x1xf32>
    %138 = vector.extract %137[0, 0, 0] : f32 from vector<1x1x1xf32>
    %139 = vector.broadcast %130 : f32 to vector<1x1x1xf32>
    %140 = arith.addf %98, %139 : vector<1x1x1xf32>
    %141 = vector.broadcast %138 : f32 to vector<1x1x1xf32>
    %142 = arith.addf %140, %141 : vector<1x1x1xf32>
    %143 = vector.extract_strided_slice %3 {offsets = [3, 0, 0], sizes = [1, 8, 16], strides = [1, 1, 1]} : vector<4x8x16xf32> to vector<1x8x16xf32>
    %144 = vector.shape_cast %143 : vector<1x8x16xf32> to vector<8x16xf32>
    %145 = vector.extract_strided_slice %5 {offsets = [3, 0, 0], sizes = [1, 8, 16], strides = [1, 1, 1]} : vector<4x8x16xf32> to vector<1x8x16xf32>
    %146 = vector.shape_cast %145 : vector<1x8x16xf32> to vector<8x16xf32>
    %147 = vector.extract_strided_slice %7 {offsets = [3, 0, 0], sizes = [1, 8, 16], strides = [1, 1, 1]} : vector<4x8x16xf32> to vector<1x8x16xf32>
    %148 = vector.shape_cast %147 : vector<1x8x16xf32> to vector<8x16xf32>
    %149 = vector.extract_strided_slice %9 {offsets = [3, 0, 0], sizes = [1, 8, 8], strides = [1, 1, 1]} : vector<4x8x8xf32> to vector<1x8x8xf32>
    %150 = vector.shape_cast %149 : vector<1x8x8xf32> to vector<8x8xf32>
    %151 = tpu.transpose %146, [1, 0] : vector<8x16xf32> -> vector<16x8xf32>
    %cst_39 = arith.constant dense<0.000000e+00> : vector<8x8xf32>
    %152 = tpu.matmul %144, %151, %cst_39 {dimension_numbers = #tpu.dot_dimension_numbers<[1], [0], [0], [1], [0, 0, 1, 1], [], []>} : vector<8x16xf32>, vector<16x8xf32>, vector<8x8xf32> -> vector<8x8xf32>
    %cst_40 = arith.constant 2.500000e-01 : f32
    %153 = vector.broadcast %cst_40 : f32 to vector<8x8xf32>
    %154 = arith.mulf %152, %153 : vector<8x8xf32>
    %cst_41 = arith.constant dense<0xFF800000> : vector<8xf32>
    %155 = vector.multi_reduction <maximumf>, %154, %cst_41 [1] : vector<8x8xf32> to vector<8xf32>
    %156 = vector.shape_cast %155 : vector<8xf32> to vector<8x1xf32>
    %157 = vector.broadcast %156 : vector<8x1xf32> to vector<8x8xf32>
    %158 = arith.subf %154, %157 : vector<8x8xf32>
    %159 = math.exp %158 : vector<8x8xf32>
    %cst_42 = arith.constant dense<0.000000e+00> : vector<8xf32>
    %160 = vector.multi_reduction <add>, %159, %cst_42 [1] : vector<8x8xf32> to vector<8xf32>
    %161 = vector.shape_cast %160 : vector<8xf32> to vector<8x1xf32>
    %162 = tpu.reciprocal %161 {approx = true} : vector<8x1xf32> -> vector<8x1xf32>
    %163 = vector.broadcast %162 : vector<8x1xf32> to vector<8x8xf32>
    %164 = arith.mulf %159, %163 : vector<8x8xf32>
    %165 = arith.addf %164, %150 : vector<8x8xf32>
    %cst_43 = arith.constant dense<0.000000e+00> : vector<8x16xf32>
    %166 = tpu.matmul %165, %148, %cst_43 {dimension_numbers = #tpu.dot_dimension_numbers<[1], [0], [0], [1], [0, 0, 1, 1], [], []>} : vector<8x8xf32>, vector<8x16xf32>, vector<8x16xf32> -> vector<8x16xf32>
    %167 = vector.extract_strided_slice %150 {offsets = [1, 0], sizes = [7, 8], strides = [1, 1]} : vector<8x8xf32> to vector<7x8xf32>
    %168 = vector.extract_strided_slice %150 {offsets = [0, 0], sizes = [7, 8], strides = [1, 1]} : vector<8x8xf32> to vector<7x8xf32>
    %169 = arith.subf %167, %168 : vector<7x8xf32>
    %170 = math.absf %169 : vector<7x8xf32>
    %171 = vector.shape_cast %170 : vector<7x8xf32> to vector<1x7x8xf32>
    %cst_44 = arith.constant dense<0.000000e+00> : vector<1xf32>
    %172 = vector.multi_reduction <add>, %171, %cst_44 [1, 2] : vector<1x7x8xf32> to vector<1xf32>
    %173 = vector.shape_cast %172 : vector<1xf32> to vector<1x1x1xf32>
    %174 = vector.extract %173[0, 0, 0] : f32 from vector<1x1x1xf32>
    %175 = vector.extract_strided_slice %150 {offsets = [0, 1], sizes = [8, 7], strides = [1, 1]} : vector<8x8xf32> to vector<8x7xf32>
    %176 = vector.extract_strided_slice %150 {offsets = [0, 0], sizes = [8, 7], strides = [1, 1]} : vector<8x8xf32> to vector<8x7xf32>
    %177 = arith.subf %175, %176 : vector<8x7xf32>
    %178 = math.absf %177 : vector<8x7xf32>
    %179 = vector.shape_cast %178 : vector<8x7xf32> to vector<1x8x7xf32>
    %cst_45 = arith.constant dense<0.000000e+00> : vector<1xf32>
    %180 = vector.multi_reduction <add>, %179, %cst_45 [1, 2] : vector<1x8x7xf32> to vector<1xf32>
    %181 = vector.shape_cast %180 : vector<1xf32> to vector<1x1x1xf32>
    %182 = vector.extract %181[0, 0, 0] : f32 from vector<1x1x1xf32>
    %183 = vector.broadcast %174 : f32 to vector<1x1x1xf32>
    %184 = arith.addf %142, %183 : vector<1x1x1xf32>
    %185 = vector.broadcast %182 : f32 to vector<1x1x1xf32>
    %186 = arith.addf %184, %185 : vector<1x1x1xf32>
    %187 = tpu.concatenate %34, %78, %122, %166 in 1 : vector<8x16xf32>, vector<8x16xf32>, vector<8x16xf32>, vector<8x16xf32> -> vector<8x64xf32>
    %c0_46 = arith.constant 0 : index
    %c0_47 = arith.constant 0 : index
    %188 = vector.load %arg6[%c0_46, %c0_47] : memref<64x64xf32, #tpu.memory_space<vmem>>, vector<64x64xf32>
    %cst_48 = arith.constant dense<0.000000e+00> : vector<8x64xf32>
    %189 = tpu.matmul %187, %188, %cst_48 {dimension_numbers = #tpu.dot_dimension_numbers<[1], [0], [0], [1], [0, 0, 1, 1], [], []>} : vector<8x64xf32>, vector<64x64xf32>, vector<8x64xf32> -> vector<8x64xf32>
    %c0_49 = arith.constant 0 : index
    %c0_50 = arith.constant 0 : index
    %190 = vector.load %arg7[%c0_49, %c0_50] : memref<1x64xf32, #tpu.memory_space<vmem>>, vector<1x64xf32>
    %191 = vector.broadcast %190 : vector<1x64xf32> to vector<8x64xf32>
    %192 = arith.addf %189, %191 : vector<8x64xf32>
    %193 = arith.addf %1, %192 : vector<8x64xf32>
    %cst_51 = arith.constant dense<0.000000e+00> : vector<8xf32>
    %194 = vector.multi_reduction <add>, %193, %cst_51 [1] : vector<8x64xf32> to vector<8xf32>
    %195 = vector.shape_cast %194 : vector<8xf32> to vector<8x1xf32>
    %cst_52 = arith.constant 6.400000e+01 : f32
    %196 = vector.broadcast %cst_52 : f32 to vector<8x1xf32>
    %197 = arith.divf %195, %196 : vector<8x1xf32>
    %198 = vector.broadcast %197 : vector<8x1xf32> to vector<8x64xf32>
    %199 = arith.subf %193, %198 : vector<8x64xf32>
    %200 = arith.mulf %199, %199 : vector<8x64xf32>
    %cst_53 = arith.constant dense<0.000000e+00> : vector<8xf32>
    %201 = vector.multi_reduction <add>, %200, %cst_53 [1] : vector<8x64xf32> to vector<8xf32>
    %202 = vector.shape_cast %201 : vector<8xf32> to vector<8x1xf32>
    %cst_54 = arith.constant 6.400000e+01 : f32
    %203 = vector.broadcast %cst_54 : f32 to vector<8x1xf32>
    %204 = arith.divf %202, %203 : vector<8x1xf32>
    %cst_55 = arith.constant 9.99999974E-6 : f32
    %205 = vector.broadcast %cst_55 : f32 to vector<8x1xf32>
    %206 = arith.addf %204, %205 : vector<8x1xf32>
    %207 = math.rsqrt %206 : vector<8x1xf32>
    %208 = vector.broadcast %207 : vector<8x1xf32> to vector<8x64xf32>
    %209 = arith.mulf %199, %208 : vector<8x64xf32>
    %c0_56 = arith.constant 0 : index
    %c0_57 = arith.constant 0 : index
    %210 = vector.load %arg8[%c0_56, %c0_57] : memref<1x64xf32, #tpu.memory_space<vmem>>, vector<1x64xf32>
    %211 = vector.broadcast %210 : vector<1x64xf32> to vector<8x64xf32>
    %212 = arith.mulf %209, %211 : vector<8x64xf32>
    %c0_58 = arith.constant 0 : index
    %c0_59 = arith.constant 0 : index
    %213 = vector.load %arg9[%c0_58, %c0_59] : memref<1x64xf32, #tpu.memory_space<vmem>>, vector<1x64xf32>
    %214 = vector.broadcast %213 : vector<1x64xf32> to vector<8x64xf32>
    %215 = arith.addf %212, %214 : vector<8x64xf32>
    %c0_60 = arith.constant 0 : index
    %c0_61 = arith.constant 0 : index
    %c0_62 = arith.constant 0 : index
    %216 = vector.load %arg10[%c0_60, %c0_61, %c0_62] : memref<1x8x64xf32, #tpu.memory_space<vmem>>, vector<1x8x64xf32>
    %217 = vector.shape_cast %216 : vector<1x8x64xf32> to vector<8x64xf32>
    %218 = vector.shape_cast %215 : vector<8x64xf32> to vector<1x8x64xf32>
    tpu.vector_store %arg10[%c0_60, %c0_61, %c0_62], %218 {strides = array<i32>} : memref<1x8x64xf32, #tpu.memory_space<vmem>>, vector<1x8x64xf32>,
    %c0_63 = arith.constant 0 : index
    %c0_64 = arith.constant 0 : index
    %c0_65 = arith.constant 0 : index
    %219 = vector.load %arg11[%c0_63, %c0_64, %c0_65] : memref<1x1x1xf32, #tpu.memory_space<vmem>>, vector<1x1x1xf32>
    tpu.vector_store %arg11[%c0_63, %c0_64, %c0_65], %186 {strides = array<i32>} : memref<1x1x1xf32, #tpu.memory_space<vmem>>, vector<1x1x1xf32>,
    return
  }
  func.func @transform_0(%arg0: i32) -> (i32, i32, i32) {
    %c0_i32 = arith.constant 0 : i32
    %c0_i32_0 = arith.constant 0 : i32
    %c0_i32_1 = arith.constant 0 : i32
    return %arg0, %c0_i32, %c0_i32_0 : i32, i32, i32
  }
  func.func @transform_1(%arg0: i32) -> (i32, i32, i32, i32) {
    %c0_i32 = arith.constant 0 : i32
    %c0_i32_0 = arith.constant 0 : i32
    %c0_i32_1 = arith.constant 0 : i32
    %c0_i32_2 = arith.constant 0 : i32
    return %arg0, %c0_i32, %c0_i32_0, %c0_i32_1 : i32, i32, i32, i32
  }
  func.func @transform_2(%arg0: i32) -> (i32, i32, i32, i32) {
    %c0_i32 = arith.constant 0 : i32
    %c0_i32_0 = arith.constant 0 : i32
    %c0_i32_1 = arith.constant 0 : i32
    %c0_i32_2 = arith.constant 0 : i32
    return %arg0, %c0_i32, %c0_i32_0, %c0_i32_1 : i32, i32, i32, i32
  }
  func.func @transform_3(%arg0: i32) -> (i32, i32, i32, i32) {
    %c0_i32 = arith.constant 0 : i32
    %c0_i32_0 = arith.constant 0 : i32
    %c0_i32_1 = arith.constant 0 : i32
    %c0_i32_2 = arith.constant 0 : i32
    return %arg0, %c0_i32, %c0_i32_0, %c0_i32_1 : i32, i32, i32, i32
  }
  func.func @transform_4(%arg0: i32) -> (i32, i32, i32, i32) {
    %c0_i32 = arith.constant 0 : i32
    %c0_i32_0 = arith.constant 0 : i32
    %c0_i32_1 = arith.constant 0 : i32
    %c0_i32_2 = arith.constant 0 : i32
    return %arg0, %c0_i32, %c0_i32_0, %c0_i32_1 : i32, i32, i32, i32
  }
  func.func @transform_5(%arg0: i32) -> (i32, i32) {
    %c0_i32 = arith.constant 0 : i32
    %c0_i32_0 = arith.constant 0 : i32
    %c0_i32_1 = arith.constant 0 : i32
    return %c0_i32, %c0_i32_0 : i32, i32
  }
  func.func @transform_6(%arg0: i32) -> (i32, i32) {
    %c0_i32 = arith.constant 0 : i32
    %c0_i32_0 = arith.constant 0 : i32
    %c0_i32_1 = arith.constant 0 : i32
    return %c0_i32, %c0_i32_0 : i32, i32
  }
  func.func @transform_7(%arg0: i32) -> (i32, i32) {
    %c0_i32 = arith.constant 0 : i32
    %c0_i32_0 = arith.constant 0 : i32
    %c0_i32_1 = arith.constant 0 : i32
    return %c0_i32, %c0_i32_0 : i32, i32
  }
  func.func @transform_8(%arg0: i32) -> (i32, i32) {
    %c0_i32 = arith.constant 0 : i32
    %c0_i32_0 = arith.constant 0 : i32
    %c0_i32_1 = arith.constant 0 : i32
    return %c0_i32, %c0_i32_0 : i32, i32
  }
  func.func @transform_9(%arg0: i32) -> (i32, i32, i32) {
    %c0_i32 = arith.constant 0 : i32
    %c0_i32_0 = arith.constant 0 : i32
    %c0_i32_1 = arith.constant 0 : i32
    return %arg0, %c0_i32, %c0_i32_0 : i32, i32, i32
  }
  func.func @transform_10(%arg0: i32) -> (i32, i32, i32) {
    %c0_i32 = arith.constant 0 : i32
    %c0_i32_0 = arith.constant 0 : i32
    %c0_i32_1 = arith.constant 0 : i32
    return %arg0, %c0_i32, %c0_i32_0 : i32, i32, i32
  }
}

</mosaic_0001>

<llo_original>
// kernel: residual_mh_forward.3
$region0: #{residual_mh_forward.3}
  #allocation0 [shape = 'u32[]', space=smem, size = 0x4, offset = 0x4, fixed_abs, tag = 'smem constant byte address 0x4 - core index']
  #allocation1 [shape = 'u32[72,128]{1,0:T(1,128)}', space=vmem, size = 0x9000, scoped, tag = 'internal scratch']
  %s0 = inlined_call_operand.vmem [shape: f32[2,8,64], index: 0, kind: input, shape index: {}]
  %s1 = inlined_call_operand.vmem [shape: f32[2,4,8,16], index: 1, kind: input, shape index: {}]
  %s2 = inlined_call_operand.vmem [shape: f32[2,4,8,16], index: 2, kind: input, shape index: {}]
  %s3 = inlined_call_operand.vmem [shape: f32[2,4,8,16], index: 3, kind: input, shape index: {}]
  %s4 = inlined_call_operand.vmem [shape: f32[2,4,8,8], index: 4, kind: input, shape index: {}]
  %s5 = inlined_call_operand.vmem [shape: f32[64,64], index: 5, kind: input, shape index: {}]
  %s6 = inlined_call_operand.vmem [shape: f32[1,64], index: 6, kind: input, shape index: {}]
  %s7 = inlined_call_operand.vmem [shape: f32[1,64], index: 7, kind: input, shape index: {}]
  %s8 = inlined_call_operand.vmem [shape: f32[1,64], index: 8, kind: input, shape index: {}]
  %s9 = inlined_call_operand.hbm [shape: f32[2,8,64], index: 9, kind: output, shape index: {0}]
  %s10 = inlined_call_operand.vmem [shape: f32[2,1,1], index: 10, kind: output, shape index: {1}]
  %11 = xla_tuple %s9, %s10
  %s12 = sld [smem:[#allocation0]]
  $region77: #{residual_mh_forward.3} parent=0
    _
  %s14 = ssub.s32 1, %s12
  %s15 = scalar_select 0, %s14, %s12
  $region1: #{residual_mh_forward.3} parent=0
    #allocation2 [shape = 'u8[8192]{0}', space=vmem, size = 0x2000, scoped, tag = 'output window, operand 0']
    #allocation3 [shape = 's32[2]{0}', space=sflag, size = 0x8, scoped, tag = 'scoped memory for residual_mh_forward.3']
    %16 = vsyncpa [#allocation3], 0
    %s17 = scalar_lea.sflag [#allocation3], 1
    %18 = vsyncpa %s17, 0
    loop: start=0, step=1, limit=4
    $region2: #{residual_mh_forward.3} parent=1 // loop_pre_header
      _
    $region3: #{residual_mh_forward.3} parent=1 // loop_header
      %s20 = sphi 0, %s24
      %p21 = scmp.ge.s32.totalorder %s20, 4
      %s30 = sphi 0, %s32
      %s33 = sphi 0, %s30
      %s34 = sphi 0, %s33
      %s50 = sphi 0, %s34
      %s56 = sphi 0, %s58
      %s59 = sphi 0, %s56
      %s60 = sphi 0, %s59
      %s76 = sphi 0, %s60
      %s82 = sphi 0, %s84
      %s85 = sphi 0, %s82
      %s86 = sphi 0, %s85
      %s102 = sphi 0, %s86
      %s108 = sphi 0, %s110
      %s111 = sphi 0, %s108
      %s112 = sphi 0, %s111
      %s128 = sphi 0, %s112
      %s134 = sphi 0, %s136
      %s137 = sphi 0, %s134
      %s138 = sphi 0, %s137
      %s154 = sphi 0, %s138
      %s158 = sphi 0, %s158
      %s160 = sphi 0, %s158
      %s161 = sphi 0, %s160
      %s175 = sphi 0, %s161
      %s179 = sphi 0, %s179
      %s181 = sphi 0, %s179
      %s182 = sphi 0, %s181
      %s196 = sphi 0, %s182
      %s200 = sphi 0, %s200
      %s202 = sphi 0, %s200
      %s203 = sphi 0, %s202
      %s217 = sphi 0, %s203
      %s221 = sphi 0, %s221
      %s223 = sphi 0, %s221
      %s224 = sphi 0, %s223
      %s238 = sphi 0, %s224
      %s244 = sphi 0, %s246
      %s247 = sphi 0, %s244
      %s248 = sphi 0, %s247
      %s264 = sphi 0, %s248
      %s270 = sphi 0, %s272
      %s273 = sphi 0, %s270
      %s274 = sphi 0, %s273
      %s290 = sphi 0, %s274
    $region4: #{residual_mh_forward.3} parent=1 // loop_header_branch
      %23 = sbr.rel (%p21) target = $region8
    $region5: #{residual_mh_forward.3} parent=1 // loop_body
      %s25 = ssub.s32 %s20, 1
      %s26 = ssub.s32 %s20, 2
      %s27 = sadd.s32 %s20, 1
      %s28 = ssub.s32 %s20, %s27
      %p29 = scmp.eq.s32.totalorder %s28, 0
      %s31 = sadd.s32 %s30, 1
      %s32 = scalar_select %p29, %s30, %s31
      %p35 = pneg %p29
      %p36 = scmp.eq.s32.totalorder %s20, 1
      %p37 = por %p35, %p36
      %p38 = scmp.ne.s32.totalorder %s30, %s33
      %p39 = scmp.eq.s32.totalorder %s20, 0
      %p40 = por %p38, %p39
      %p41 = scmp.ne.s32.totalorder %s30, %s33
      %p42 = scmp.eq.s32.totalorder %s25, 1
      %p43 = por %p41, %p42
      %p44 = scmp.ne.s32.totalorder %s33, %s34
      %p45 = scmp.eq.s32.totalorder %s25, 0
      %p46 = por %p44, %p45
      %p47 = scmp.ne.s32.totalorder %s33, %s34
      %p48 = scmp.eq.s32.totalorder %s26, 1
      %p49 = por %p47, %p48
      %p51 = scmp.ne.s32.totalorder %s34, %s50
      %p52 = scmp.eq.s32.totalorder %s26, 0
      %p53 = por %p51, %p52
      %s54 = ssub.s32 %s20, %s27
      %p55 = scmp.eq.s32.totalorder %s54, 0
      %s57 = sadd.s32 %s56, 1
      %s58 = scalar_select %p55, %s56, %s57
      %p61 = pneg %p55
      %p62 = scmp.eq.s32.totalorder %s20, 1
      %p63 = por %p61, %p62
      %p64 = scmp.ne.s32.totalorder %s56, %s59
      %p65 = scmp.eq.s32.totalorder %s20, 0
      %p66 = por %p64, %p65
      %p67 = scmp.ne.s32.totalorder %s56, %s59
      %p68 = scmp.eq.s32.totalorder %s25, 1
      %p69 = por %p67, %p68
      %p70 = scmp.ne.s32.totalorder %s59, %s60
      %p71 = scmp.eq.s32.totalorder %s25, 0
      %p72 = por %p70, %p71
      %p73 = scmp.ne.s32.totalorder %s59, %s60
      %p74 = scmp.eq.s32.totalorder %s26, 1
      %p75 = por %p73, %p74
      %p77 = scmp.ne.s32.totalorder %s60, %s76
      %p78 = scmp.eq.s32.totalorder %s26, 0
      %p79 = por %p77, %p78
      %s80 = ssub.s32 %s20, %s27
      %p81 = scmp.eq.s32.totalorder %s80, 0
      %s83 = sadd.s32 %s82, 1
      %s84 = scalar_select %p81, %s82, %s83
      %p87 = pneg %p81
      %p88 = scmp.eq.s32.totalorder %s20, 1
      %p89 = por %p87, %p88
      %p90 = scmp.ne.s32.totalorder %s82, %s85
      %p91 = scmp.eq.s32.totalorder %s20, 0
      %p92 = por %p90, %p91
      %p93 = scmp.ne.s32.totalorder %s82, %s85
      %p94 = scmp.eq.s32.totalorder %s25, 1
      %p95 = por %p93, %p94
      %p96 = scmp.ne.s32.totalorder %s85, %s86
      %p97 = scmp.eq.s32.totalorder %s25, 0
      %p98 = por %p96, %p97
      %p99 = scmp.ne.s32.totalorder %s85, %s86
      %p100 = scmp.eq.s32.totalorder %s26, 1
      %p101 = por %p99, %p100
      %p103 = scmp.ne.s32.totalorder %s86, %s102
      %p104 = scmp.eq.s32.totalorder %s26, 0
      %p105 = por %p103, %p104
      %s106 = ssub.s32 %s20, %s27
      %p107 = scmp.eq.s32.totalorder %s106, 0
      %s109 = sadd.s32 %s108, 1
      %s110 = scalar_select %p107, %s108, %s109
      %p113 = pneg %p107
      %p114 = scmp.eq.s32.totalorder %s20, 1
      %p115 = por %p113, %p114
      %p116 = scmp.ne.s32.totalorder %s108, %s111
      %p117 = scmp.eq.s32.totalorder %s20, 0
      %p118 = por %p116, %p117
      %p119 = scmp.ne.s32.totalorder %s108, %s111
      %p120 = scmp.eq.s32.totalorder %s25, 1
      %p121 = por %p119, %p120
      %p122 = scmp.ne.s32.totalorder %s111, %s112
      %p123 = scmp.eq.s32.totalorder %s25, 0
      %p124 = por %p122, %p123
      %p125 = scmp.ne.s32.totalorder %s111, %s112
      %p126 = scmp.eq.s32.totalorder %s26, 1
      %p127 = por %p125, %p126
      %p129 = scmp.ne.s32.totalorder %s112, %s128
      %p130 = scmp.eq.s32.totalorder %s26, 0
      %p131 = por %p129, %p130
      %s132 = ssub.s32 %s20, %s27
      %p133 = scmp.eq.s32.totalorder %s132, 0
      %s135 = sadd.s32 %s134, 1
      %s136 = scalar_select %p133, %s134, %s135
      %p139 = pneg %p133
      %p140 = scmp.eq.s32.totalorder %s20, 1
      %p141 = por %p139, %p140
      %p142 = scmp.ne.s32.totalorder %s134, %s137
      %p143 = scmp.eq.s32.totalorder %s20, 0
      %p144 = por %p142, %p143
      %p145 = scmp.ne.s32.totalorder %s134, %s137
      %p146 = scmp.eq.s32.totalorder %s25, 1
      %p147 = por %p145, %p146
      %p148 = scmp.ne.s32.totalorder %s137, %s138
      %p149 = scmp.eq.s32.totalorder %s25, 0
      %p150 = por %p148, %p149
      %p151 = scmp.ne.s32.totalorder %s137, %s138
      %p152 = scmp.eq.s32.totalorder %s26, 1
      %p153 = por %p151, %p152
      %p155 = scmp.ne.s32.totalorder %s138, %s154
      %p156 = scmp.eq.s32.totalorder %s26, 0
      %p157 = por %p155, %p156
      %s159 = sadd.s32 %s158, 1
      %p162 = scmp.eq.s32.totalorder %s20, 1
      %p163 = scmp.ne.s32.totalorder %s158, %s160
      %p164 = scmp.eq.s32.totalorder %s20, 0
      %p165 = por %p163, %p164
      %p166 = scmp.ne.s32.totalorder %s158, %s160
      %p167 = scmp.eq.s32.totalorder %s25, 1
      %p168 = por %p166, %p167
      %p169 = scmp.ne.s32.totalorder %s160, %s161
      %p170 = scmp.eq.s32.totalorder %s25, 0
      %p171 = por %p169, %p170
      %p172 = scmp.ne.s32.totalorder %s160, %s161
      %p173 = scmp.eq.s32.totalorder %s26, 1
      %p174 = por %p172, %p173
      %p176 = scmp.ne.s32.totalorder %s161, %s175
      %p177 = scmp.eq.s32.totalorder %s26, 0
      %p178 = por %p176, %p177
      %s180 = sadd.s32 %s179, 1
      %p183 = scmp.eq.s32.totalorder %s20, 1
      %p184 = scmp.ne.s32.totalorder %s179, %s181
      %p185 = scmp.eq.s32.totalorder %s20, 0
      %p186 = por %p184, %p185
      %p187 = scmp.ne.s32.totalorder %s179, %s181
      %p188 = scmp.eq.s32.totalorder %s25, 1
      %p189 = por %p187, %p188
      %p190 = scmp.ne.s32.totalorder %s181, %s182
      %p191 = scmp.eq.s32.totalorder %s25, 0
      %p192 = por %p190, %p191
      %p193 = scmp.ne.s32.totalorder %s181, %s182
      %p194 = scmp.eq.s32.totalorder %s26, 1
      %p195 = por %p193, %p194
      %p197 = scmp.ne.s32.totalorder %s182, %s196
      %p198 = scmp.eq.s32.totalorder %s26, 0
      %p199 = por %p197, %p198
      %s201 = sadd.s32 %s200, 1
      %p204 = scmp.eq.s32.totalorder %s20, 1
      %p205 = scmp.ne.s32.totalorder %s200, %s202
      %p206 = scmp.eq.s32.totalorder %s20, 0
      %p207 = por %p205, %p206
      %p208 = scmp.ne.s32.totalorder %s200, %s202
      %p209 = scmp.eq.s32.totalorder %s25, 1
      %p210 = por %p208, %p209
      %p211 = scmp.ne.s32.totalorder %s202, %s203
      %p212 = scmp.eq.s32.totalorder %s25, 0
      %p213 = por %p211, %p212
      %p214 = scmp.ne.s32.totalorder %s202, %s203
      %p215 = scmp.eq.s32.totalorder %s26, 1
      %p216 = por %p214, %p215
      %p218 = scmp.ne.s32.totalorder %s203, %s217
      %p219 = scmp.eq.s32.totalorder %s26, 0
      %p220 = por %p218, %p219
      %s222 = sadd.s32 %s221, 1
      %p225 = scmp.eq.s32.totalorder %s20, 1
      %p226 = scmp.ne.s32.totalorder %s221, %s223
      %p227 = scmp.eq.s32.totalorder %s20, 0
      %p228 = por %p226, %p227
      %p229 = scmp.ne.s32.totalorder %s221, %s223
      %p230 = scmp.eq.s32.totalorder %s25, 1
      %p231 = por %p229, %p230
      %p232 = scmp.ne.s32.totalorder %s223, %s224
      %p233 = scmp.eq.s32.totalorder %s25, 0
      %p234 = por %p232, %p233
      %p235 = scmp.ne.s32.totalorder %s223, %s224
      %p236 = scmp.eq.s32.totalorder %s26, 1
      %p237 = por %p235, %p236
      %p239 = scmp.ne.s32.totalorder %s224, %s238
      %p240 = scmp.eq.s32.totalorder %s26, 0
      %p241 = por %p239, %p240
      %s242 = ssub.s32 %s20, %s27
      %p243 = scmp.eq.s32.totalorder %s242, 0
      %s245 = sadd.s32 %s244, 1
      %s246 = scalar_select %p243, %s244, %s245
      %p249 = pneg %p243
      %p250 = scmp.eq.s32.totalorder %s20, 1
      %p251 = por %p249, %p250
      %p252 = scmp.ne.s32.totalorder %s244, %s247
      %p253 = scmp.eq.s32.totalorder %s20, 0
      %p254 = por %p252, %p253
      %p255 = scmp.ne.s32.totalorder %s244, %s247
      %p256 = scmp.eq.s32.totalorder %s25, 1
      %p257 = por %p255, %p256
      %p258 = scmp.ne.s32.totalorder %s247, %s248
      %p259 = scmp.eq.s32.totalorder %s25, 0
      %p260 = por %p258, %p259
      %p261 = scmp.ne.s32.totalorder %s247, %s248
      %p262 = scmp.eq.s32.totalorder %s26, 1
      %p263 = por %p261, %p262
      %p265 = scmp.ne.s32.totalorder %s248, %s264
      %p266 = scmp.eq.s32.totalorder %s26, 0
      %p267 = por %p265, %p266
      %s268 = ssub.s32 %s20, %s27
      %p269 = scmp.eq.s32.totalorder %s268, 0
      %s271 = sadd.s32 %s270, 1
      %s272 = scalar_select %p269, %s270, %s271
      %p275 = pneg %p269
      %p276 = scmp.eq.s32.totalorder %s20, 1
      %p277 = por %p275, %p276
      %p278 = scmp.ne.s32.totalorder %s270, %s273
      %p279 = scmp.eq.s32.totalorder %s20, 0
      %p280 = por %p278, %p279
      %p281 = scmp.ne.s32.totalorder %s270, %s273
      %p282 = scmp.eq.s32.totalorder %s25, 1
      %p283 = por %p281, %p282
      %p284 = scmp.ne.s32.totalorder %s273, %s274
      %p285 = scmp.eq.s32.totalorder %s25, 0
      %p286 = por %p284, %p285
      %p287 = scmp.ne.s32.totalorder %s273, %s274
      %p288 = scmp.eq.s32.totalorder %s26, 1
      %p289 = por %p287, %p288
      %p291 = scmp.ne.s32.totalorder %s274, %s290
      %p292 = scmp.eq.s32.totalorder %s26, 0
      %p293 = por %p291, %p292
      %p294 = scmp.le.s32.totalorder 1, %s20
      %p295 = scmp.lt.s32.totalorder %s20, 3
      %p296 = pnand %p294, %p295
      %p297 = pneg %p296
      // Predicated region
      $region9: #{residual_mh_forward.3} parent=5 // pred_check
        _
      $region10: #{residual_mh_forward.3} parent=5 // pred_check_branch
        %299 = sbr.rel (%p296) target = $region12
      $region11: #{residual_mh_forward.3} parent=5 // pred_region
        %s300 = ssub.s32 %s20, 1
        // Predicated region
        $region13: #{residual_mh_forward.3} parent=11 // pred_check
          %p301 = pneg %p171
        $region14: #{residual_mh_forward.3} parent=11 // pred_check_branch
          %303 = sbr.rel (%p301) target = $region16
        $region15: #{residual_mh_forward.3} parent=11 // pred_region
          _
        $region16: #{residual_mh_forward.3} parent=11 // pred_fallthru
          _
        // Predicated region
        $region17: #{residual_mh_forward.3} parent=11 // pred_check
          %p304 = pneg %p192
        $region18: #{residual_mh_forward.3} parent=11 // pred_check_branch
          %306 = sbr.rel (%p304) target = $region20
        $region19: #{residual_mh_forward.3} parent=11 // pred_region
          _
        $region20: #{residual_mh_forward.3} parent=11 // pred_fallthru
          _
        // Predicated region
        $region21: #{residual_mh_forward.3} parent=11 // pred_check
          %p307 = pneg %p213
        $region22: #{residual_mh_forward.3} parent=11 // pred_check_branch
          %309 = sbr.rel (%p307) target = $region24
        $region23: #{residual_mh_forward.3} parent=11 // pred_region
          _
        $region24: #{residual_mh_forward.3} parent=11 // pred_fallthru
          _
        // Predicated region
        $region25: #{residual_mh_forward.3} parent=11 // pred_check
          %p310 = pneg %p234
        $region26: #{residual_mh_forward.3} parent=11 // pred_check_branch
          %312 = sbr.rel (%p310) target = $region28
        $region27: #{residual_mh_forward.3} parent=11 // pred_region
          _
        $region28: #{residual_mh_forward.3} parent=11 // pred_fallthru
          _
      $region12: #{residual_mh_forward.3} parent=5 // pred_fallthru
        _
      %p313 = scmp.lt.s32.totalorder %s20, 2
      // Predicated region
      $region29: #{residual_mh_forward.3} parent=5 // pred_check
        %p314 = pneg %p313
      $region30: #{residual_mh_forward.3} parent=5 // pred_check_branch
        %316 = sbr.rel (%p314) target = $region32
      $region31: #{residual_mh_forward.3} parent=5 // pred_region
        // Predicated region
        $region33: #{residual_mh_forward.3} parent=31 // pred_check
          %p317 = pneg %p40
        $region34: #{residual_mh_forward.3} parent=31 // pred_check_branch
          %319 = sbr.rel (%p317) target = $region36
        $region35: #{residual_mh_forward.3} parent=31 // pred_region
          %p320 = scmp.lt.s32.totalorder %s20, 1
          %s321 = scalar_select %p320, %s20, 1
          %s322 = smul.addr %s321, 8
          %s323 = scalar_lea.vmem %s0, %s322
        $region36: #{residual_mh_forward.3} parent=31 // pred_fallthru
          _
        // Predicated region
        $region37: #{residual_mh_forward.3} parent=31 // pred_check
          %p324 = pneg %p66
        $region38: #{residual_mh_forward.3} parent=31 // pred_check_branch
          %326 = sbr.rel (%p324) target = $region40
        $region39: #{residual_mh_forward.3} parent=31 // pred_region
          %p327 = scmp.lt.s32.totalorder %s20, 1
          %s328 = scalar_select %p327, %s20, 1
          %s329 = smul.addr %s328, 4
          %s330 = smul.addr %s329, 8
          %s331 = scalar_lea.vmem %s1, %s330
        $region40: #{residual_mh_forward.3} parent=31 // pred_fallthru
          _
        // Predicated region
        $region41: #{residual_mh_forward.3} parent=31 // pred_check
          %p332 = pneg %p92
        $region42: #{residual_mh_forward.3} parent=31 // pred_check_branch
          %334 = sbr.rel (%p332) target = $region44
        $region43: #{residual_mh_forward.3} parent=31 // pred_region
          %p335 = scmp.lt.s32.totalorder %s20, 1
          %s336 = scalar_select %p335, %s20, 1
          %s337 = smul.addr %s336, 4
          %s338 = smul.addr %s337, 8
          %s339 = scalar_lea.vmem %s2, %s338
        $region44: #{residual_mh_forward.3} parent=31 // pred_fallthru
          _
        // Predicated region
        $region45: #{residual_mh_forward.3} parent=31 // pred_check
          %p340 = pneg %p118
        $region46: #{residual_mh_forward.3} parent=31 // pred_check_branch
          %342 = sbr.rel (%p340) target = $region48
        $region47: #{residual_mh_forward.3} parent=31 // pred_region
          %p343 = scmp.lt.s32.totalorder %s20, 1
          %s344 = scalar_select %p343, %s20, 1
          %s345 = smul.addr %s344, 4
          %s346 = smul.addr %s345, 8
          %s347 = scalar_lea.vmem %s3, %s346
        $region48: #{residual_mh_forward.3} parent=31 // pred_fallthru
          _
        // Predicated region
        $region49: #{residual_mh_forward.3} parent=31 // pred_check
          %p348 = pneg %p144
        $region50: #{residual_mh_forward.3} parent=31 // pred_check_branch
          %350 = sbr.rel (%p348) target = $region52
        $region51: #{residual_mh_forward.3} parent=31 // pred_region
          %p351 = scmp.lt.s32.totalorder %s20, 1
          %s352 = scalar_select %p351, %s20, 1
          %s353 = smul.addr %s352, 4
          %s354 = smul.addr %s353, 8
          %s355 = scalar_lea.vmem %s4, %s354
        $region52: #{residual_mh_forward.3} parent=31 // pred_fallthru
          _
      $region32: #{residual_mh_forward.3} parent=5 // pred_fallthru
        _
      %p356 = scmp.le.s32.totalorder 1, %s20
      %p357 = scmp.lt.s32.totalorder %s20, 3
      %p358 = pnand %p356, %p357
      %p359 = pneg %p358
      // Predicated region
      $region53: #{residual_mh_forward.3} parent=5 // pred_check
        _
      $region54: #{residual_mh_forward.3} parent=5 // pred_check_branch
        %361 = sbr.rel (%p358) target = $region56
      $region55: #{residual_mh_forward.3} parent=5 // pred_region
        %s362 = ssub.s32 %s20, 1
        %p363 = scmp.lt.s32.totalorder %s25, 1
        %s364 = scalar_select %p363, %s25, 1
        %s365 = smul.addr %s364, 8
        %s366 = scalar_lea.vmem %s0, %s365
        %p367 = pneg %p46
        %p368 = pneg %p43
        %p369 = scmp.lt.s32.totalorder %s25, 1
        %s370 = scalar_select %p369, %s25, 1
        %s371 = smul.addr %s370, 4
        %s372 = smul.addr %s371, 8
        %s373 = scalar_lea.vmem %s1, %s372
        %p374 = pneg %p72
        %p375 = pneg %p69
        %p376 = scmp.lt.s32.totalorder %s25, 1
        %s377 = scalar_select %p376, %s25, 1
        %s378 = smul.addr %s377, 4
        %s379 = smul.addr %s378, 8
        %s380 = scalar_lea.vmem %s2, %s379
        %p381 = pneg %p98
        %p382 = pneg %p95
        %p383 = scmp.lt.s32.totalorder %s25, 1
        %s384 = scalar_select %p383, %s25, 1
        %s385 = smul.addr %s384, 4
        %s386 = smul.addr %s385, 8
        %s387 = scalar_lea.vmem %s3, %s386
        %p388 = pneg %p124
        %p389 = pneg %p121
        %p390 = scmp.lt.s32.totalorder %s25, 1
        %s391 = scalar_select %p390, %s25, 1
        %s392 = smul.addr %s391, 4
        %s393 = smul.addr %s392, 8
        %s394 = scalar_lea.vmem %s4, %s393
        %p395 = pneg %p150
        %p396 = pneg %p147
        %p397 = pneg %p171
        %p398 = pneg %p168
        %p399 = pneg %p192
        %p400 = pneg %p189
        %p401 = pneg %p213
        %p402 = pneg %p210
        %p403 = pneg %p234
        %p404 = pneg %p231
        %p405 = pneg %p260
        %p406 = pneg %p257
        %s407 = sand.u32 %s247, 1
        %s408 = scalar_lea.sflag [#allocation3], %s407
        %s409 = sand.u32 %s247, 1
        %s410 = smul.addr %s409, 8
        %s411 = scalar_lea.vmem [#allocation2], %s410
        %p412 = pneg %p286
        %p413 = pneg %p283
        %p414 = scmp.lt.s32.totalorder %s25, 1
        %s415 = scalar_select %p414, %s25, 1
        %s416 = scalar_lea.vmem %s10, %s415
        %p417 = scmp.lt.s32.totalorder %s25, 1
        %s418 = scalar_select %p417, %s25, 1
        %s419 = smul.addr %s418, 8
        %s420 = scalar_lea.vmem %s0, %s419
        %p421 = scmp.lt.s32.totalorder %s25, 1
        %s422 = scalar_select %p421, %s25, 1
        %s423 = smul.addr %s422, 4
        %s424 = smul.addr %s423, 8
        %s425 = scalar_lea.vmem %s1, %s424
        %p426 = scmp.lt.s32.totalorder %s25, 1
        %s427 = scalar_select %p426, %s25, 1
        %s428 = smul.addr %s427, 4
        %s429 = smul.addr %s428, 8
        %s430 = scalar_lea.vmem %s2, %s429
        %p431 = scmp.lt.s32.totalorder %s25, 1
        %s432 = scalar_select %p431, %s25, 1
        %s433 = smul.addr %s432, 4
        %s434 = smul.addr %s433, 8
        %s435 = scalar_lea.vmem %s3, %s434
        %p436 = scmp.lt.s32.totalorder %s25, 1
        %s437 = scalar_select %p436, %s25, 1
        %s438 = smul.addr %s437, 4
        %s439 = smul.addr %s438, 8
        %s440 = scalar_lea.vmem %s4, %s439
        %p441 = scmp.lt.s32.totalorder %s25, 1
        %s442 = scalar_select %p441, %s25, 1
        %s443 = scalar_lea.vmem %s10, %s442
        %v444 = vld [vmem:[%s420] sm:$0xff]
        %v445 = vld [vmem:[%s425] sm:$0xff]
        %v446 = vld [vmem:[%s425 + $0x8] sm:$0xff]
        %v447 = vld [vmem:[%s425 + $0x10] sm:$0xff]
        %v448 = vld [vmem:[%s425 + $0x18] sm:$0xff]
        %v449 = vld [vmem:[%s430] sm:$0xff]
        %v450 = vld [vmem:[%s430 + $0x8] sm:$0xff]
        %v451 = vld [vmem:[%s430 + $0x10] sm:$0xff]
        %v452 = vld [vmem:[%s430 + $0x18] sm:$0xff]
        %v453 = vld [vmem:[%s435] sm:$0xff]
        %v454 = vld [vmem:[%s435 + $0x8] sm:$0xff]
        %v455 = vld [vmem:[%s435 + $0x10] sm:$0xff]
        %v456 = vld [vmem:[%s435 + $0x18] sm:$0xff]
        %v457 = vld [vmem:[%s440] sm:$0xff]
        %v458 = vld [vmem:[%s440 + $0x8] sm:$0xff]
        %v459 = vld [vmem:[%s440 + $0x10] sm:$0xff]
        %v460 = vld [vmem:[%s440 + $0x18] sm:$0xff]
        %vm461 = vcmask 130048
        %v463 = vsel %vm461, %v445, 0
        %v466 = vsel %vm461, %v449, 0
        %468 = vmatpush.xpose.msra.mxu0 0.0
        %469 = vmatpush.xpose.msra.mxu0 0.0
        %470 = vmatpush.xpose.msra.mxu0 0.0
        %471 = vmatpush.xpose.msra.mxu0 0.0
        %472 = vmatpush.xpose.msra.mxu0 0.0
        %473 = vmatpush.xpose.msra.mxu0 0.0
        %474 = vmatpush.xpose.msra.mxu0 0.0
        %475 = vmatpush.xpose.msra.mxu0 0.0
        %476 = vmatpush.xpose.msra.mxu0 0.0
        %477 = vmatpush.xpose.msra.mxu0 0.0
        %478 = vmatpush.xpose.msra.mxu0 0.0
        %479 = vmatpush.xpose.msra.mxu0 0.0
        %480 = vmatpush.xpose.msra.mxu0 0.0
        %481 = vmatpush.xpose.msra.mxu0 0.0
        %482 = vmatpush.xpose.msra.mxu0 0.0
        %483 = vmatpush.xpose.msra.mxu0 %v466
        %484 = vmatmul.f32.gmra.mxu0 %v463
        %v485 = vpop.f32.mrf.mxu0
        %v486 = vadd.f32 0.0, %v485
        %487 = vdwg.mxu0
        %v488 = vmul.f32 %v486, 0.25
        %vm489 = vcmask 64512
        %v490 = vsel %vm489, %v488, -inf
        %491 = vmax.xlane.f32.xlu0 %v490
        %v492 = vpop.xlane.xlu0 %491
        %v493 = vsub.f32 %v488, %v492
        %v494 = vmul.f32 %v493, 1.442695
        %v495 = vpow.pop %v494
        %v496 = vsel %vm489, %v495, 0.0
        %497 = vadd.xlane.f32.xlu0 %v496
        %v498 = vpop.xlane.xlu0 %497
        %v499 = vrcp.pop %v498
        %v500 = vmul.f32 %v495, %v499
        %v501 = vadd.f32 %v500, %v457
        %v503 = vsel %vm489, %v501, 0
        %505 = vmatpush.msra.mxu0 0.0
        %506 = vmatpush.msra.mxu0 0.0
        %507 = vmatpush.msra.mxu0 0.0
        %508 = vmatpush.msra.mxu0 0.0
        %509 = vmatpush.msra.mxu0 0.0
        %510 = vmatpush.msra.mxu0 0.0
        %511 = vmatpush.msra.mxu0 0.0
        %512 = vmatpush.msra.mxu0 0.0
        %513 = vmatpush.msra.mxu0 0.0
        %514 = vmatpush.msra.mxu0 0.0
        %515 = vmatpush.msra.mxu0 0.0
        %516 = vmatpush.msra.mxu0 0.0
        %517 = vmatpush.msra.mxu0 0.0
        %518 = vmatpush.msra.mxu0 0.0
        %519 = vmatpush.msra.mxu0 0.0
        %520 = vmatpush.msra.mxu0 %v453
        %521 = vmatmul.f32.gmra.mxu0 %v503
        %v522 = vpop.f32.mrf.mxu0
        %v523 = vadd.f32 0.0, %v522
        %524 = vdwg.mxu0
        %v526 = vrot.slane %v457, 7
        %v528 = vsub.f32 %v457, %v526
        %v529 = vand.u32 2147483647, %v528
        %v531 = vrot.slane %v529, 1
        %vm533 = vcmask 63488
        %v534 = vsel %vm533, %v531, 0.0
        %535 = vadd.xlane.f32.xlu0 %v534
        %v536 = vpop.xlane.xlu0 %535
        %v537 = vrot.slane %v536, 4
        %v538 = vadd.f32 %v536, %v537
        %v539 = vrot.slane %v538, 2
        %v540 = vadd.f32 %v538, %v539
        %v541 = vrot.slane %v540, 1
        %v542 = vadd.f32 %v540, %v541
        %s543 = vtos %v542
        %544 = vrot.lane.b32.xlu0 %v457, 1
        %v545 = vpop.permute.xlu0 %544
        %v547 = vsub.f32 %v457, %v545
        %v548 = vand.u32 2147483647, %v547
        %550 = vrot.lane.b32.xlu0 %v548, 127
        %v551 = vpop.permute.xlu0 %550
        %vm553 = vcmask 56320
        %v554 = vsel %vm553, %v551, 0.0
        %555 = vadd.xlane.f32.xlu0 %v554
        %v556 = vpop.xlane.xlu0 %555
        %v557 = vrot.slane %v556, 4
        %v558 = vadd.f32 %v556, %v557
        %v559 = vrot.slane %v558, 2
        %v560 = vadd.f32 %v558, %v559
        %v561 = vrot.slane %v560, 1
        %v562 = vadd.f32 %v560, %v561
        %s563 = vtos %v562
        %v564 = vstv %s543
        %v565 = vadd.f32 %v564, 0.0
        %v566 = vstv %s563
        %v567 = vadd.f32 %v565, %v566
        %v569 = vsel %vm461, %v446, 0
        %v572 = vsel %vm461, %v450, 0
        %574 = vmatpush.xpose.msra.mxu0 0.0
        %575 = vmatpush.xpose.msra.mxu0 0.0
        %576 = vmatpush.xpose.msra.mxu0 0.0
        %577 = vmatpush.xpose.msra.mxu0 0.0
        %578 = vmatpush.xpose.msra.mxu0 0.0
        %579 = vmatpush.xpose.msra.mxu0 0.0
        %580 = vmatpush.xpose.msra.mxu0 0.0
        %581 = vmatpush.xpose.msra.mxu0 0.0
        %582 = vmatpush.xpose.msra.mxu0 0.0
        %583 = vmatpush.xpose.msra.mxu0 0.0
        %584 = vmatpush.xpose.msra.mxu0 0.0
        %585 = vmatpush.xpose.msra.mxu0 0.0
        %586 = vmatpush.xpose.msra.mxu0 0.0
        %587 = vmatpush.xpose.msra.mxu0 0.0
        %588 = vmatpush.xpose.msra.mxu0 0.0
        %589 = vmatpush.xpose.msra.mxu0 %v572
        %590 = vmatmul.f32.gmra.mxu0 %v569
        %v591 = vpop.f32.mrf.mxu0
        %v592 = vadd.f32 0.0, %v591
        %593 = vdwg.mxu0
        %v594 = vmul.f32 %v592, 0.25
        %v595 = vsel %vm489, %v594, -inf
        %596 = vmax.xlane.f32.xlu0 %v595
        %v597 = vpop.xlane.xlu0 %596
        %v598 = vsub.f32 %v594, %v597
        %v599 = vmul.f32 %v598, 1.442695
        %v600 = vpow.pop %v599
        %v601 = vsel %vm489, %v600, 0.0
        %602 = vadd.xlane.f32.xlu0 %v601
        %v603 = vpop.xlane.xlu0 %602
        %v604 = vrcp.pop %v603
        %v605 = vmul.f32 %v600, %v604
        %v606 = vadd.f32 %v605, %v458
        %v608 = vsel %vm489, %v606, 0
        %610 = vmatpush.msra.mxu0 0.0
        %611 = vmatpush.msra.mxu0 0.0
        %612 = vmatpush.msra.mxu0 0.0
        %613 = vmatpush.msra.mxu0 0.0
        %614 = vmatpush.msra.mxu0 0.0
        %615 = vmatpush.msra.mxu0 0.0
        %616 = vmatpush.msra.mxu0 0.0
        %617 = vmatpush.msra.mxu0 0.0
        %618 = vmatpush.msra.mxu0 0.0
        %619 = vmatpush.msra.mxu0 0.0
        %620 = vmatpush.msra.mxu0 0.0
        %621 = vmatpush.msra.mxu0 0.0
        %622 = vmatpush.msra.mxu0 0.0
        %623 = vmatpush.msra.mxu0 0.0
        %624 = vmatpush.msra.mxu0 0.0
        %625 = vmatpush.msra.mxu0 %v454
        %626 = vmatmul.f32.gmra.mxu0 %v608
        %v627 = vpop.f32.mrf.mxu0
        %v628 = vadd.f32 0.0, %v627
        %629 = vdwg.mxu0
        %v631 = vrot.slane %v458, 7
        %v633 = vsub.f32 %v458, %v631
        %v634 = vand.u32 2147483647, %v633
        %v636 = vrot.slane %v634, 1
        %v638 = vsel %vm533, %v636, 0.0
        %639 = vadd.xlane.f32.xlu0 %v638
        %v640 = vpop.xlane.xlu0 %639
        %v641 = vrot.slane %v640, 4
        %v642 = vadd.f32 %v640, %v641
        %v643 = vrot.slane %v642, 2
        %v644 = vadd.f32 %v642, %v643
        %v645 = vrot.slane %v644, 1
        %v646 = vadd.f32 %v644, %v645
        %s647 = vtos %v646
        %648 = vrot.lane.b32.xlu0 %v458, 1
        %v649 = vpop.permute.xlu0 %648
        %v651 = vsub.f32 %v458, %v649
        %v652 = vand.u32 2147483647, %v651
        %654 = vrot.lane.b32.xlu0 %v652, 127
        %v655 = vpop.permute.xlu0 %654
        %v657 = vsel %vm553, %v655, 0.0
        %658 = vadd.xlane.f32.xlu0 %v657
        %v659 = vpop.xlane.xlu0 %658
        %v660 = vrot.slane %v659, 4
        %v661 = vadd.f32 %v659, %v660
        %v662 = vrot.slane %v661, 2
        %v663 = vadd.f32 %v661, %v662
        %v664 = vrot.slane %v663, 1
        %v665 = vadd.f32 %v663, %v664
        %s666 = vtos %v665
        %v667 = vstv %s647
        %v668 = vadd.f32 %v567, %v667
        %v669 = vstv %s666
        %v670 = vadd.f32 %v668, %v669
        %v672 = vsel %vm461, %v447, 0
        %v675 = vsel %vm461, %v451, 0
        %677 = vmatpush.xpose.msra.mxu0 0.0
        %678 = vmatpush.xpose.msra.mxu0 0.0
        %679 = vmatpush.xpose.msra.mxu0 0.0
        %680 = vmatpush.xpose.msra.mxu0 0.0
        %681 = vmatpush.xpose.msra.mxu0 0.0
        %682 = vmatpush.xpose.msra.mxu0 0.0
        %683 = vmatpush.xpose.msra.mxu0 0.0
        %684 = vmatpush.xpose.msra.mxu0 0.0
        %685 = vmatpush.xpose.msra.mxu0 0.0
        %686 = vmatpush.xpose.msra.mxu0 0.0
        %687 = vmatpush.xpose.msra.mxu0 0.0
        %688 = vmatpush.xpose.msra.mxu0 0.0
        %689 = vmatpush.xpose.msra.mxu0 0.0
        %690 = vmatpush.xpose.msra.mxu0 0.0
        %691 = vmatpush.xpose.msra.mxu0 0.0
        %692 = vmatpush.xpose.msra.mxu0 %v675
        %693 = vmatmul.f32.gmra.mxu0 %v672
        %v694 = vpop.f32.mrf.mxu0
        %v695 = vadd.f32 0.0, %v694
        %696 = vdwg.mxu0
        %v697 = vmul.f32 %v695, 0.25
        %v698 = vsel %vm489, %v697, -inf
        %699 = vmax.xlane.f32.xlu0 %v698
        %v700 = vpop.xlane.xlu0 %699
        %v701 = vsub.f32 %v697, %v700
        %v702 = vmul.f32 %v701, 1.442695
        %v703 = vpow.pop %v702
        %v704 = vsel %vm489, %v703, 0.0
        %705 = vadd.xlane.f32.xlu0 %v704
        %v706 = vpop.xlane.xlu0 %705
        %v707 = vrcp.pop %v706
        %v708 = vmul.f32 %v703, %v707
        %v709 = vadd.f32 %v708, %v459
        %v711 = vsel %vm489, %v709, 0
        %713 = vmatpush.msra.mxu0 0.0
        %714 = vmatpush.msra.mxu0 0.0
        %715 = vmatpush.msra.mxu0 0.0
        %716 = vmatpush.msra.mxu0 0.0
        %717 = vmatpush.msra.mxu0 0.0
        %718 = vmatpush.msra.mxu0 0.0
        %719 = vmatpush.msra.mxu0 0.0
        %720 = vmatpush.msra.mxu0 0.0
        %721 = vmatpush.msra.mxu0 0.0
        %722 = vmatpush.msra.mxu0 0.0
        %723 = vmatpush.msra.mxu0 0.0
        %724 = vmatpush.msra.mxu0 0.0
        %725 = vmatpush.msra.mxu0 0.0
        %726 = vmatpush.msra.mxu0 0.0
        %727 = vmatpush.msra.mxu0 0.0
        %728 = vmatpush.msra.mxu0 %v455
        %729 = vmatmul.f32.gmra.mxu0 %v711
        %v730 = vpop.f32.mrf.mxu0
        %v731 = vadd.f32 0.0, %v730
        %732 = vdwg.mxu0
        %v734 = vrot.slane %v459, 7
        %v736 = vsub.f32 %v459, %v734
        %v737 = vand.u32 2147483647, %v736
        %v739 = vrot.slane %v737, 1
        %v741 = vsel %vm533, %v739, 0.0
        %742 = vadd.xlane.f32.xlu0 %v741
        %v743 = vpop.xlane.xlu0 %742
        %v744 = vrot.slane %v743, 4
        %v745 = vadd.f32 %v743, %v744
        %v746 = vrot.slane %v745, 2
        %v747 = vadd.f32 %v745, %v746
        %v748 = vrot.slane %v747, 1
        %v749 = vadd.f32 %v747, %v748
        %s750 = vtos %v749
        %751 = vrot.lane.b32.xlu0 %v459, 1
        %v752 = vpop.permute.xlu0 %751
        %v754 = vsub.f32 %v459, %v752
        %v755 = vand.u32 2147483647, %v754
        %757 = vrot.lane.b32.xlu0 %v755, 127
        %v758 = vpop.permute.xlu0 %757
        %v760 = vsel %vm553, %v758, 0.0
        %761 = vadd.xlane.f32.xlu0 %v760
        %v762 = vpop.xlane.xlu0 %761
        %v763 = vrot.slane %v762, 4
        %v764 = vadd.f32 %v762, %v763
        %v765 = vrot.slane %v764, 2
        %v766 = vadd.f32 %v764, %v765
        %v767 = vrot.slane %v766, 1
        %v768 = vadd.f32 %v766, %v767
        %s769 = vtos %v768
        %v770 = vstv %s750
        %v771 = vadd.f32 %v670, %v770
        %v772 = vstv %s769
        %v773 = vadd.f32 %v771, %v772
        %v775 = vsel %vm461, %v448, 0
        %v778 = vsel %vm461, %v452, 0
        %780 = vmatpush.xpose.msra.mxu0 0.0
        %781 = vmatpush.xpose.msra.mxu0 0.0
        %782 = vmatpush.xpose.msra.mxu0 0.0
        %783 = vmatpush.xpose.msra.mxu0 0.0
        %784 = vmatpush.xpose.msra.mxu0 0.0
        %785 = vmatpush.xpose.msra.mxu0 0.0
        %786 = vmatpush.xpose.msra.mxu0 0.0
        %787 = vmatpush.xpose.msra.mxu0 0.0
        %788 = vmatpush.xpose.msra.mxu0 0.0
        %789 = vmatpush.xpose.msra.mxu0 0.0
        %790 = vmatpush.xpose.msra.mxu0 0.0
        %791 = vmatpush.xpose.msra.mxu0 0.0
        %792 = vmatpush.xpose.msra.mxu0 0.0
        %793 = vmatpush.xpose.msra.mxu0 0.0
        %794 = vmatpush.xpose.msra.mxu0 0.0
        %795 = vmatpush.xpose.msra.mxu0 %v778
        %796 = vmatmul.f32.gmra.mxu0 %v775
        %v797 = vpop.f32.mrf.mxu0
        %v798 = vadd.f32 0.0, %v797
        %799 = vdwg.mxu0
        %v800 = vmul.f32 %v798, 0.25
        %v801 = vsel %vm489, %v800, -inf
        %802 = vmax.xlane.f32.xlu0 %v801
        %v803 = vpop.xlane.xlu0 %802
        %v804 = vsub.f32 %v800, %v803
        %v805 = vmul.f32 %v804, 1.442695
        %v806 = vpow.pop %v805
        %v807 = vsel %vm489, %v806, 0.0
        %808 = vadd.xlane.f32.xlu0 %v807
        %v809 = vpop.xlane.xlu0 %808
        %v810 = vrcp.pop %v809
        %v811 = vmul.f32 %v806, %v810
        %v812 = vadd.f32 %v811, %v460
        %v814 = vsel %vm489, %v812, 0
        %816 = vmatpush.msra.mxu0 0.0
        %817 = vmatpush.msra.mxu0 0.0
        %818 = vmatpush.msra.mxu0 0.0
        %819 = vmatpush.msra.mxu0 0.0
        %820 = vmatpush.msra.mxu0 0.0
        %821 = vmatpush.msra.mxu0 0.0
        %822 = vmatpush.msra.mxu0 0.0
        %823 = vmatpush.msra.mxu0 0.0
        %824 = vmatpush.msra.mxu0 0.0
        %825 = vmatpush.msra.mxu0 0.0
        %826 = vmatpush.msra.mxu0 0.0
        %827 = vmatpush.msra.mxu0 0.0
        %828 = vmatpush.msra.mxu0 0.0
        %829 = vmatpush.msra.mxu0 0.0
        %830 = vmatpush.msra.mxu0 0.0
        %831 = vmatpush.msra.mxu0 %v456
        %832 = vmatmul.f32.gmra.mxu0 %v814
        %v833 = vpop.f32.mrf.mxu0
        %v834 = vadd.f32 0.0, %v833
        %835 = vdwg.mxu0
        %v837 = vrot.slane %v460, 7
        %v839 = vsub.f32 %v460, %v837
        %v840 = vand.u32 2147483647, %v839
        %v842 = vrot.slane %v840, 1
        %v844 = vsel %vm533, %v842, 0.0
        %845 = vadd.xlane.f32.xlu0 %v844
        %v846 = vpop.xlane.xlu0 %845
        %v847 = vrot.slane %v846, 4
        %v848 = vadd.f32 %v846, %v847
        %v849 = vrot.slane %v848, 2
        %v850 = vadd.f32 %v848, %v849
        %v851 = vrot.slane %v850, 1
        %v852 = vadd.f32 %v850, %v851
        %s853 = vtos %v852
        %854 = vrot.lane.b32.xlu0 %v460, 1
        %v855 = vpop.permute.xlu0 %854
        %v857 = vsub.f32 %v460, %v855
        %v858 = vand.u32 2147483647, %v857
        %860 = vrot.lane.b32.xlu0 %v858, 127
        %v861 = vpop.permute.xlu0 %860
        %v863 = vsel %vm553, %v861, 0.0
        %864 = vadd.xlane.f32.xlu0 %v863
        %v865 = vpop.xlane.xlu0 %864
        %v866 = vrot.slane %v865, 4
        %v867 = vadd.f32 %v865, %v866
        %v868 = vrot.slane %v867, 2
        %v869 = vadd.f32 %v867, %v868
        %v870 = vrot.slane %v869, 1
        %v871 = vadd.f32 %v869, %v870
        %s872 = vtos %v871
        %v873 = vstv %s853
        %v874 = vadd.f32 %v773, %v873
        %v875 = vstv %s872
        %v876 = vadd.f32 %v874, %v875
        %878 = vrot.lane.b32.xlu0 %v628, 16
        %v879 = vpop.permute.xlu0 %878
        %882 = vrot.lane.b32.xlu0 %v731, 32
        %v883 = vpop.permute.xlu0 %882
        %886 = vrot.lane.b32.xlu0 %v834, 48
        %v887 = vpop.permute.xlu0 %886
        %v889 = vsel %vm461, %v523, %v879
        %vm890 = vcmask 261120
        %v891 = vsel %vm890, %v889, %v883
        %vm892 = vcmask 392192
        %v893 = vsel %vm892, %v891, %v887
        %v894 = vld [vmem:[%s5] sm:$0xff]
        %v895 = vld [vmem:[%s5 + $0x8] sm:$0xff]
        %v896 = vld [vmem:[%s5 + $0x10] sm:$0xff]
        %v897 = vld [vmem:[%s5 + $0x18] sm:$0xff]
        %v898 = vld [vmem:[%s5 + $0x20] sm:$0xff]
        %v899 = vld [vmem:[%s5 + $0x28] sm:$0xff]
        %v900 = vld [vmem:[%s5 + $0x30] sm:$0xff]
        %v901 = vld [vmem:[%s5 + $0x38] sm:$0xff]
        %v902 = vld [vmem:[%s6] sm:$0x1]
        %v904 = vperm.slane %v902, 0
        %vm906 = vcmask 523264
        %v908 = vsel %vm906, %v893, 0
        %910 = vmatpush.msra.mxu0 0.0
        %911 = vmatpush.msra.mxu0 0.0
        %912 = vmatpush.msra.mxu0 0.0
        %913 = vmatpush.msra.mxu0 0.0
        %914 = vmatpush.msra.mxu0 0.0
        %915 = vmatpush.msra.mxu0 0.0
        %916 = vmatpush.msra.mxu0 0.0
        %917 = vmatpush.msra.mxu0 0.0
        %918 = vmatpush.msra.mxu0 %v901
        %919 = vmatpush.msra.mxu0 %v900
        %920 = vmatpush.msra.mxu0 %v899
        %921 = vmatpush.msra.mxu0 %v898
        %922 = vmatpush.msra.mxu0 %v897
        %923 = vmatpush.msra.mxu0 %v896
        %924 = vmatpush.msra.mxu0 %v895
        %925 = vmatpush.msra.mxu0 %v894
        %926 = vmatmul.f32.gmra.mxu0 %v908
        %v927 = vpop.f32.mrf.mxu0
        %v928 = vadd.f32 %v904, %v927
        %929 = vdwg.mxu0
        %v930 = vadd.f32 %v444, %v928
        %v931 = vsel %vm906, %v930, 0.0
        %932 = vadd.xlane.f32.xlu0 %v931
        %v933 = vpop.xlane.xlu0 %932
        %v934 = vrcp.pop 64.0
        %v935 = vmul.f32 64.0, %v934
        %v936 = vsub.f32 1.0, %v935
        %v937 = vmul.f32 %v934, %v936
        %v938 = vadd.f32 %v934, %v937
        %vm939 = vweird.f32 %v934
        %v940 = vsel %vm939, %v934, %v938
        %v941 = vmul.f32 %v933, %v940
        %v942 = vsub.f32 %v930, %v941
        %v943 = vmul.f32 %v942, %v942
        %v944 = vsel %vm906, %v943, 0.0
        %945 = vadd.xlane.f32.xlu0 %v944
        %v946 = vpop.xlane.xlu0 %945
        %v947 = vmul.f32 %v946, %v940
        %v948 = vadd.f32 %v947, 1e-05
        %v949 = vrsqrt.pop %v948
        %v950 = vmul.f32 %v949, %v948
        %v951 = vmul.f32 %v950, %v949
        %v952 = vmul.f32 0.5, %v951
        %v953 = vsub.f32 1.5, %v952
        %v954 = vmul.f32 %v949, %v953
        %vm955 = vweird.f32 %v948
        %vm956 = vweird.f32 %v949
        %vm957 = vmor %vm955, %vm956
        %v958 = vsel %vm957, %v949, %v954
        %v959 = vmul.f32 %v942, %v958
        %v960 = vld [vmem:[%s7] sm:$0x1]
        %v962 = vperm.slane %v960, 0
        %v964 = vmul.f32 %v959, %v962
        %v965 = vld [vmem:[%s8] sm:$0x1]
        %v967 = vperm.slane %v965, 0
        %v969 = vadd.f32 %v964, %v967
        %970 = vst.msk [vmem:[%s411] sm:$0xff] %vm906, %v969
        %vm971 = vcmask 0
        %972 = vst.msk [vmem:[%s443] sm:$0x1] %vm971, %v876
        %s973 = sand.u32 %s247, 1
        %s974 = scalar_lea.sflag [#allocation3], %s973
        %s975 = sand.u32 %s247, 1
        %s976 = smul.addr %s975, 8
        %s977 = scalar_lea.vmem [#allocation2], %s976
        %p978 = scmp.lt.s32.totalorder %s25, 1
        %s979 = scalar_select %p978, %s25, 1
        %s980 = scalar_lea.vmem %s10, %s979
        // Predicated region
        $region57: #{residual_mh_forward.3} parent=55 // pred_check
          %p981 = pneg %p257
        $region58: #{residual_mh_forward.3} parent=55 // pred_check_branch
          %983 = sbr.rel (%p981) target = $region60
        $region59: #{residual_mh_forward.3} parent=55 // pred_region
          %985 = vsyncadd %s974, 0
          %s986 = smul.addr %s25, 8
          %s987 = scalar_lea.hbm %s9, %s986
          %s989 = sshll.u32 %s977, 4
          %s990 = int_to_ptr.vmem [resolvable:$true] %s989
          %s991 = sshll.u32 %s987, 4
          %s992 = int_to_ptr.hbm [resolvable:$true] %s991
          %994 = dma.vmem_to_hbm [thread:$0]  %s990, 128, %s992, %s974
        $region60: #{residual_mh_forward.3} parent=55 // pred_fallthru
          _
        // Predicated region
        $region61: #{residual_mh_forward.3} parent=55 // pred_check
          %p995 = pneg %p283
        $region62: #{residual_mh_forward.3} parent=55 // pred_check_branch
          %997 = sbr.rel (%p995) target = $region64
        $region63: #{residual_mh_forward.3} parent=55 // pred_region
          _
        $region64: #{residual_mh_forward.3} parent=55 // pred_fallthru
          _
      $region56: #{residual_mh_forward.3} parent=5 // pred_fallthru
        _
      %p998 = scmp.le.s32.totalorder 2, %s20
      // Predicated region
      $region65: #{residual_mh_forward.3} parent=5 // pred_check
        %p999 = pneg %p998
      $region66: #{residual_mh_forward.3} parent=5 // pred_check_branch
        %1001 = sbr.rel (%p999) target = $region68
      $region67: #{residual_mh_forward.3} parent=5 // pred_region
        %s1002 = ssub.s32 %s20, 2
        // Predicated region
        $region69: #{residual_mh_forward.3} parent=67 // pred_check
          %p1003 = pneg %p263
        $region70: #{residual_mh_forward.3} parent=67 // pred_check_branch
          %1005 = sbr.rel (%p1003) target = $region72
        $region71: #{residual_mh_forward.3} parent=67 // pred_region
          %s1006 = sand.u32 %s248, 1
          %s1007 = scalar_lea.sflag [#allocation3], %s1006
          %s1008 = sand.u32 %s248, 1
          %s1009 = smul.addr %s1008, 8
          %s1010 = scalar_lea.vmem [#allocation2], %s1009
          %1012 = dma.done %s1007, 128
        $region72: #{residual_mh_forward.3} parent=67 // pred_fallthru
          _
        // Predicated region
        $region73: #{residual_mh_forward.3} parent=67 // pred_check
          %p1013 = pneg %p289
        $region74: #{residual_mh_forward.3} parent=67 // pred_check_branch
          %1015 = sbr.rel (%p1013) target = $region76
        $region75: #{residual_mh_forward.3} parent=67 // pred_region
          %p1016 = scmp.lt.s32.totalorder %s26, 1
          %s1017 = scalar_select %p1016, %s26, 1
          %s1018 = scalar_lea.vmem %s10, %s1017
        $region76: #{residual_mh_forward.3} parent=67 // pred_fallthru
          _
      $region68: #{residual_mh_forward.3} parent=5 // pred_fallthru
        _
    $region6: #{residual_mh_forward.3} parent=1 // loop_footer
      %s24 = sadd.s32 1, %s20
    $region7: #{residual_mh_forward.3} parent=1 // loop_footer_branch
      %19 = sbr.rel target = $region3
    $region8: #{residual_mh_forward.3} parent=1 // loop_exit
      _
    %1019 = vsyncpa [#allocation3], 1
    %s1020 = scalar_lea.sflag [#allocation3], 1
    %1021 = vsyncpa %s1020, 1

// kernel: residual_mh_forward.2
$region0: #{residual_mh_forward.2}
  #allocation0 [shape = 'u32[]', space=smem, size = 0x4, offset = 0x4, fixed_abs, tag = 'smem constant byte address 0x4 - core index']
  #allocation1 [shape = 'u32[72,128]{1,0:T(1,128)}', space=vmem, size = 0x9000, scoped, tag = 'internal scratch']
  %s0 = inlined_call_operand.vmem [shape: f32[16,64], index: 0, kind: input, shape index: {}]
  %s1 = inlined_call_operand.vmem [shape: f32[2,19], index: 1, kind: input, shape index: {}]
  %s2 = inlined_call_operand.vmem [shape: f32[64,192], index: 2, kind: input, shape index: {}]
  %s3 = inlined_call_operand.vmem [shape: f32[1,192], index: 3, kind: input, shape index: {}]
  %s4 = inlined_call_operand.vmem [shape: f32[19,4096], index: 4, kind: input, shape index: {}]
  %s5 = inlined_call_operand.vmem [shape: f32[1,4096], index: 5, kind: input, shape index: {}]
  %s6 = inlined_call_operand.vmem [shape: f32[4,1024,64], index: 6, kind: input, shape index: {}]
  %s7 = inlined_call_operand.vmem [shape: f32[1,256], index: 7, kind: input, shape index: {}]
  %s8 = inlined_call_operand.vmem [shape: f32[16,192], index: 8, kind: output, shape index: {0}]
  %s9 = inlined_call_operand.vmem [shape: f32[2,256], index: 9, kind: output, shape index: {1}]
  %10 = xla_tuple %s8, %s9
  %s11 = sld [smem:[#allocation0]]
  $region50: #{residual_mh_forward.2} parent=0
    _
  %s13 = ssub.s32 1, %s11
  %s14 = scalar_select 0, %s13, %s11
  // Predicated region
  $region2: #{residual_mh_forward.2} parent=0 // pred_check
    _
  $region3: #{residual_mh_forward.2} parent=0 // pred_check_branch
    %16 = sbr.rel (0) target = $region5
  $region4: #{residual_mh_forward.2} parent=0 // pred_region
    _
  $region5: #{residual_mh_forward.2} parent=0 // pred_fallthru
    _
  // Predicated region
  $region6: #{residual_mh_forward.2} parent=0 // pred_check
    _
  $region7: #{residual_mh_forward.2} parent=0 // pred_check_branch
    %18 = sbr.rel (0) target = $region9
  $region8: #{residual_mh_forward.2} parent=0 // pred_region
    _
  $region9: #{residual_mh_forward.2} parent=0 // pred_fallthru
    _
  // Predicated region
  $region10: #{residual_mh_forward.2} parent=0 // pred_check
    _
  $region11: #{residual_mh_forward.2} parent=0 // pred_check_branch
    %20 = sbr.rel (0) target = $region13
  $region12: #{residual_mh_forward.2} parent=0 // pred_region
    _
  $region13: #{residual_mh_forward.2} parent=0 // pred_fallthru
    _
  // Predicated region
  $region14: #{residual_mh_forward.2} parent=0 // pred_check
    _
  $region15: #{residual_mh_forward.2} parent=0 // pred_check_branch
    %22 = sbr.rel (0) target = $region17
  $region16: #{residual_mh_forward.2} parent=0 // pred_region
    _
  $region17: #{residual_mh_forward.2} parent=0 // pred_fallthru
    _
  // Predicated region
  $region18: #{residual_mh_forward.2} parent=0 // pred_check
    _
  $region19: #{residual_mh_forward.2} parent=0 // pred_check_branch
    %24 = sbr.rel (0) target = $region21
  $region20: #{residual_mh_forward.2} parent=0 // pred_region
    _
  $region21: #{residual_mh_forward.2} parent=0 // pred_fallthru
    _
  // Predicated region
  $region22: #{residual_mh_forward.2} parent=0 // pred_check
    _
  $region23: #{residual_mh_forward.2} parent=0 // pred_check_branch
    %26 = sbr.rel (0) target = $region25
  $region24: #{residual_mh_forward.2} parent=0 // pred_region
    _
  $region25: #{residual_mh_forward.2} parent=0 // pred_fallthru
    _
  // Predicated region
  $region26: #{residual_mh_forward.2} parent=0 // pred_check
    _
  $region27: #{residual_mh_forward.2} parent=0 // pred_check_branch
    %28 = sbr.rel (0) target = $region29
  $region28: #{residual_mh_forward.2} parent=0 // pred_region
    _
  $region29: #{residual_mh_forward.2} parent=0 // pred_fallthru
    _
  // Predicated region
  $region30: #{residual_mh_forward.2} parent=0 // pred_check
    _
  $region31: #{residual_mh_forward.2} parent=0 // pred_check_branch
    %30 = sbr.rel (0) target = $region33
  $region32: #{residual_mh_forward.2} parent=0 // pred_region
    _
  $region33: #{residual_mh_forward.2} parent=0 // pred_fallthru
    _
  %v31 = vld [vmem:[%s0] sm:$0xff]
  %v32 = vld [vmem:[%s0 + $0x8] sm:$0xff]
  %v33 = vld [vmem:[%s2] sm:$0xff]
  %v34 = vld [vmem:[%s2 + $0x8] sm:$0xff]
  %v35 = vld [vmem:[%s2 + $0x10] sm:$0xff]
  %v36 = vld [vmem:[%s2 + $0x18] sm:$0xff]
  %v37 = vld [vmem:[%s2 + $0x20] sm:$0xff]
  %v38 = vld [vmem:[%s2 + $0x28] sm:$0xff]
  %v39 = vld [vmem:[%s2 + $0x30] sm:$0xff]
  %v40 = vld [vmem:[%s2 + $0x38] sm:$0xff]
  %v41 = vld [vmem:[%s2 + $0x40] sm:$0xff]
  %v42 = vld [vmem:[%s2 + $0x48] sm:$0xff]
  %v43 = vld [vmem:[%s2 + $0x50] sm:$0xff]
  %v44 = vld [vmem:[%s2 + $0x58] sm:$0xff]
  %v45 = vld [vmem:[%s2 + $0x60] sm:$0xff]
  %v46 = vld [vmem:[%s2 + $0x68] sm:$0xff]
  %v47 = vld [vmem:[%s2 + $0x70] sm:$0xff]
  %v48 = vld [vmem:[%s2 + $0x78] sm:$0xff]
  %v49 = vld [vmem:[%s3] sm:$0x3]
  %v51 = vperm.slane %v49, 0
  %v52 = vperm.slane %v49, 1
  %vm55 = vcmask 523264
  %v57 = vsel %vm55, %v31, 0
  %v60 = vsel %vm55, %v32, 0
  %62 = vmatpush.msra.mxu0 0.0
  %63 = vmatpush.msra.mxu0 0.0
  %64 = vmatpush.msra.mxu0 0.0
  %65 = vmatpush.msra.mxu0 0.0
  %66 = vmatpush.msra.mxu0 0.0
  %67 = vmatpush.msra.mxu0 0.0
  %68 = vmatpush.msra.mxu0 0.0
  %69 = vmatpush.msra.mxu0 0.0
  %70 = vmatpush.msra.mxu0 %v47
  %71 = vmatpush.msra.mxu0 %v45
  %72 = vmatpush.msra.mxu0 %v43
  %73 = vmatpush.msra.mxu0 %v41
  %74 = vmatpush.msra.mxu0 %v39
  %75 = vmatpush.msra.mxu0 %v37
  %76 = vmatpush.msra.mxu0 %v35
  %77 = vmatpush.msra.mxu0 %v33
  %78 = vmatmul.f32.gmra.mxu0 %v57
  %v79 = vpop.f32.mrf.mxu0
  %v80 = vadd.f32 %v51, %v79
  %81 = vmatmul.f32.gmra.mxu0 %v60
  %v82 = vpop.f32.mrf.mxu0
  %v83 = vadd.f32 %v51, %v82
  %84 = vdwg.mxu0
  %85 = vmatpush.msra.mxu0 0.0
  %86 = vmatpush.msra.mxu0 0.0
  %87 = vmatpush.msra.mxu0 0.0
  %88 = vmatpush.msra.mxu0 0.0
  %89 = vmatpush.msra.mxu0 0.0
  %90 = vmatpush.msra.mxu0 0.0
  %91 = vmatpush.msra.mxu0 0.0
  %92 = vmatpush.msra.mxu0 0.0
  %93 = vmatpush.msra.mxu0 %v48
  %94 = vmatpush.msra.mxu0 %v46
  %95 = vmatpush.msra.mxu0 %v44
  %96 = vmatpush.msra.mxu0 %v42
  %97 = vmatpush.msra.mxu0 %v40
  %98 = vmatpush.msra.mxu0 %v38
  %99 = vmatpush.msra.mxu0 %v36
  %100 = vmatpush.msra.mxu0 %v34
  %101 = vmatmul.f32.gmra.mxu0 %v57
  %v102 = vpop.f32.mrf.mxu0
  %v103 = vadd.f32 %v52, %v102
  %104 = vmatmul.f32.gmra.mxu0 %v60
  %v105 = vpop.f32.mrf.mxu0
  %v106 = vadd.f32 %v52, %v105
  %107 = vdwg.mxu0
  %108 = vst [vmem:[%s8] sm:$0xff] %v80
  %109 = vst.msk [vmem:[%s8 + $0x8] sm:$0xff] %vm55, %v103
  %110 = vst [vmem:[%s8 + $0x10] sm:$0xff] %v83
  %111 = vst.msk [vmem:[%s8 + $0x18] sm:$0xff] %vm55, %v106
  %v112 = vld [vmem:[%s1] sm:$0x3]
  %v113 = vld [vmem:[%s4] sm:$0xff]
  %v114 = vld [vmem:[%s4 + $0x8] sm:$0xff]
  %v115 = vld [vmem:[%s4 + $0x10] sm:$0xff]
  %v116 = vld [vmem:[%s4 + $0x18] sm:$0xff]
  %v117 = vld [vmem:[%s4 + $0x20] sm:$0xff]
  %v118 = vld [vmem:[%s4 + $0x28] sm:$0xff]
  %v119 = vld [vmem:[%s4 + $0x30] sm:$0xff]
  %v120 = vld [vmem:[%s4 + $0x38] sm:$0xff]
  %v121 = vld [vmem:[%s4 + $0x40] sm:$0xff]
  %v122 = vld [vmem:[%s4 + $0x48] sm:$0xff]
  %v123 = vld [vmem:[%s4 + $0x50] sm:$0xff]
  %v124 = vld [vmem:[%s4 + $0x58] sm:$0xff]
  %v125 = vld [vmem:[%s4 + $0x60] sm:$0xff]
  %v126 = vld [vmem:[%s4 + $0x68] sm:$0xff]
  %v127 = vld [vmem:[%s4 + $0x70] sm:$0xff]
  %v128 = vld [vmem:[%s4 + $0x78] sm:$0xff]
  %v129 = vld [vmem:[%s4 + $0x80] sm:$0xff]
  %v130 = vld [vmem:[%s4 + $0x88] sm:$0xff]
  %v131 = vld [vmem:[%s4 + $0x90] sm:$0xff]
  %v132 = vld [vmem:[%s4 + $0x98] sm:$0xff]
  %v133 = vld [vmem:[%s4 + $0xa0] sm:$0xff]
  %v134 = vld [vmem:[%s4 + $0xa8] sm:$0xff]
  %v135 = vld [vmem:[%s4 + $0xb0] sm:$0xff]
  %v136 = vld [vmem:[%s4 + $0xb8] sm:$0xff]
  %v137 = vld [vmem:[%s4 + $0xc0] sm:$0xff]
  %v138 = vld [vmem:[%s4 + $0xc8] sm:$0xff]
  %v139 = vld [vmem:[%s4 + $0xd0] sm:$0xff]
  %v140 = vld [vmem:[%s4 + $0xd8] sm:$0xff]
  %v141 = vld [vmem:[%s4 + $0xe0] sm:$0xff]
  %v142 = vld [vmem:[%s4 + $0xe8] sm:$0xff]
  %v143 = vld [vmem:[%s4 + $0xf0] sm:$0xff]
  %v144 = vld [vmem:[%s4 + $0xf8] sm:$0xff]
  %v145 = vld [vmem:[%s4 + $0x100] sm:$0xff]
  %v146 = vld [vmem:[%s4 + $0x108] sm:$0xff]
  %v147 = vld [vmem:[%s4 + $0x110] sm:$0xff]
  %v148 = vld [vmem:[%s4 + $0x118] sm:$0xff]
  %v149 = vld [vmem:[%s4 + $0x120] sm:$0xff]
  %v150 = vld [vmem:[%s4 + $0x128] sm:$0xff]
  %v151 = vld [vmem:[%s4 + $0x130] sm:$0xff]
  %v152 = vld [vmem:[%s4 + $0x138] sm:$0xff]
  %v153 = vld [vmem:[%s4 + $0x140] sm:$0xff]
  %v154 = vld [vmem:[%s4 + $0x148] sm:$0xff]
  %v155 = vld [vmem:[%s4 + $0x150] sm:$0xff]
  %v156 = vld [vmem:[%s4 + $0x158] sm:$0xff]
  %v157 = vld [vmem:[%s4 + $0x160] sm:$0xff]
  %v158 = vld [vmem:[%s4 + $0x168] sm:$0xff]
  %v159 = vld [vmem:[%s4 + $0x170] sm:$0xff]
  %v160 = vld [vmem:[%s4 + $0x178] sm:$0xff]
  %v161 = vld [vmem:[%s4 + $0x180] sm:$0xff]
  %v162 = vld [vmem:[%s4 + $0x188] sm:$0xff]
  %v163 = vld [vmem:[%s4 + $0x190] sm:$0xff]
  %v164 = vld [vmem:[%s4 + $0x198] sm:$0xff]
  %v165 = vld [vmem:[%s4 + $0x1a0] sm:$0xff]
  %v166 = vld [vmem:[%s4 + $0x1a8] sm:$0xff]
  %v167 = vld [vmem:[%s4 + $0x1b0] sm:$0xff]
  %v168 = vld [vmem:[%s4 + $0x1b8] sm:$0xff]
  %v169 = vld [vmem:[%s4 + $0x1c0] sm:$0xff]
  %v170 = vld [vmem:[%s4 + $0x1c8] sm:$0xff]
  %v171 = vld [vmem:[%s4 + $0x1d0] sm:$0xff]
  %v172 = vld [vmem:[%s4 + $0x1d8] sm:$0xff]
  %v173 = vld [vmem:[%s4 + $0x1e0] sm:$0xff]
  %v174 = vld [vmem:[%s4 + $0x1e8] sm:$0xff]
  %v175 = vld [vmem:[%s4 + $0x1f0] sm:$0xff]
  %v176 = vld [vmem:[%s4 + $0x1f8] sm:$0xff]
  %v177 = vld [vmem:[%s4 + $0x200] sm:$0x7]
  %v178 = vld [vmem:[%s4 + $0x208] sm:$0x7]
  %v179 = vld [vmem:[%s4 + $0x210] sm:$0x7]
  %v180 = vld [vmem:[%s4 + $0x218] sm:$0x7]
  %v181 = vld [vmem:[%s4 + $0x220] sm:$0x7]
  %v182 = vld [vmem:[%s4 + $0x228] sm:$0x7]
  %v183 = vld [vmem:[%s4 + $0x230] sm:$0x7]
  %v184 = vld [vmem:[%s4 + $0x238] sm:$0x7]
  %v185 = vld [vmem:[%s4 + $0x240] sm:$0x7]
  %v186 = vld [vmem:[%s4 + $0x248] sm:$0x7]
  %v187 = vld [vmem:[%s4 + $0x250] sm:$0x7]
  %v188 = vld [vmem:[%s4 + $0x258] sm:$0x7]
  %v189 = vld [vmem:[%s4 + $0x260] sm:$0x7]
  %v190 = vld [vmem:[%s4 + $0x268] sm:$0x7]
  %v191 = vld [vmem:[%s4 + $0x270] sm:$0x7]
  %v192 = vld [vmem:[%s4 + $0x278] sm:$0x7]
  %v193 = vld [vmem:[%s4 + $0x280] sm:$0x7]
  %v194 = vld [vmem:[%s4 + $0x288] sm:$0x7]
  %v195 = vld [vmem:[%s4 + $0x290] sm:$0x7]
  %v196 = vld [vmem:[%s4 + $0x298] sm:$0x7]
  %v197 = vld [vmem:[%s4 + $0x2a0] sm:$0x7]
  %v198 = vld [vmem:[%s4 + $0x2a8] sm:$0x7]
  %v199 = vld [vmem:[%s4 + $0x2b0] sm:$0x7]
  %v200 = vld [vmem:[%s4 + $0x2b8] sm:$0x7]
  %v201 = vld [vmem:[%s4 + $0x2c0] sm:$0x7]
  %v202 = vld [vmem:[%s4 + $0x2c8] sm:$0x7]
  %v203 = vld [vmem:[%s4 + $0x2d0] sm:$0x7]
  %v204 = vld [vmem:[%s4 + $0x2d8] sm:$0x7]
  %v205 = vld [vmem:[%s4 + $0x2e0] sm:$0x7]
  %v206 = vld [vmem:[%s4 + $0x2e8] sm:$0x7]
  %v207 = vld [vmem:[%s4 + $0x2f0] sm:$0x7]
  %v208 = vld [vmem:[%s4 + $0x2f8] sm:$0x7]
  %v209 = vld [vmem:[%s5] sm:$0xff]
  %v210 = vld [vmem:[%s5 + $0x8] sm:$0xff]
  %v211 = vld [vmem:[%s5 + $0x10] sm:$0xff]
  %v212 = vld [vmem:[%s5 + $0x18] sm:$0xff]
  %v217 = vperm.slane %v209, 0
  %v218 = vperm.slane %v209, 1
  %v219 = vperm.slane %v209, 2
  %v220 = vperm.slane %v209, 3
  %v221 = vperm.slane %v209, 4
  %v222 = vperm.slane %v209, 5
  %v223 = vperm.slane %v209, 6
  %v224 = vperm.slane %v209, 7
  %v225 = vperm.slane %v210, 0
  %v226 = vperm.slane %v210, 1
  %v227 = vperm.slane %v210, 2
  %v228 = vperm.slane %v210, 3
  %v229 = vperm.slane %v210, 4
  %v230 = vperm.slane %v210, 5
  %v231 = vperm.slane %v210, 6
  %v232 = vperm.slane %v210, 7
  %v233 = vperm.slane %v211, 0
  %v234 = vperm.slane %v211, 1
  %v235 = vperm.slane %v211, 2
  %v236 = vperm.slane %v211, 3
  %v237 = vperm.slane %v211, 4
  %v238 = vperm.slane %v211, 5
  %v239 = vperm.slane %v211, 6
  %v240 = vperm.slane %v211, 7
  %v241 = vperm.slane %v212, 0
  %v242 = vperm.slane %v212, 1
  %v243 = vperm.slane %v212, 2
  %v244 = vperm.slane %v212, 3
  %v245 = vperm.slane %v212, 4
  %v246 = vperm.slane %v212, 5
  %v247 = vperm.slane %v212, 6
  %v248 = vperm.slane %v212, 7
  %vm281 = vcmask 154624
  %v283 = vsel %vm281, %v112, 0
  %vm285 = vcmask 1042432
  %v287 = vsel %vm285, %v177, 0
  %v290 = vsel %vm285, %v178, 0
  %v293 = vsel %vm285, %v179, 0
  %v296 = vsel %vm285, %v180, 0
  %v299 = vsel %vm285, %v181, 0
  %v302 = vsel %vm285, %v182, 0
  %v305 = vsel %vm285, %v183, 0
  %v308 = vsel %vm285, %v184, 0
  %v311 = vsel %vm285, %v185, 0
  %v314 = vsel %vm285, %v186, 0
  %v317 = vsel %vm285, %v187, 0
  %v320 = vsel %vm285, %v188, 0
  %v323 = vsel %vm285, %v189, 0
  %v326 = vsel %vm285, %v190, 0
  %v329 = vsel %vm285, %v191, 0
  %v332 = vsel %vm285, %v192, 0
  %v335 = vsel %vm285, %v193, 0
  %v338 = vsel %vm285, %v194, 0
  %v341 = vsel %vm285, %v195, 0
  %v344 = vsel %vm285, %v196, 0
  %v347 = vsel %vm285, %v197, 0
  %v350 = vsel %vm285, %v198, 0
  %v353 = vsel %vm285, %v199, 0
  %v356 = vsel %vm285, %v200, 0
  %v359 = vsel %vm285, %v201, 0
  %v362 = vsel %vm285, %v202, 0
  %v365 = vsel %vm285, %v203, 0
  %v368 = vsel %vm285, %v204, 0
  %v371 = vsel %vm285, %v205, 0
  %v374 = vsel %vm285, %v206, 0
  %v377 = vsel %vm285, %v207, 0
  %v380 = vsel %vm285, %v208, 0
  %382 = vmatpush.msra.mxu0 0.0
  %383 = vmatpush.msra.mxu0 0.0
  %384 = vmatpush.msra.mxu0 0.0
  %385 = vmatpush.msra.mxu0 0.0
  %386 = vmatpush.msra.mxu0 0.0
  %387 = vmatpush.msra.mxu0 0.0
  %388 = vmatpush.msra.mxu0 0.0
  %389 = vmatpush.msra.mxu0 0.0
  %390 = vmatpush.msra.mxu0 0.0
  %391 = vmatpush.msra.mxu0 0.0
  %392 = vmatpush.msra.mxu0 0.0
  %393 = vmatpush.msra.mxu0 0.0
  %394 = vmatpush.msra.mxu0 0.0
  %395 = vmatpush.msra.mxu0 %v287
  %396 = vmatpush.msra.mxu0 %v145
  %397 = vmatpush.msra.mxu0 %v113
  %398 = vmatmul.f32.gmra.mxu0 %v283
  %v399 = vpop.f32.mrf.mxu0
  %v400 = vadd.f32 %v217, %v399
  %401 = vdwg.mxu0
  %402 = vmatpush.msra.mxu0 0.0
  %403 = vmatpush.msra.mxu0 0.0
  %404 = vmatpush.msra.mxu0 0.0
  %405 = vmatpush.msra.mxu0 0.0
  %406 = vmatpush.msra.mxu0 0.0
  %407 = vmatpush.msra.mxu0 0.0
  %408 = vmatpush.msra.mxu0 0.0
  %409 = vmatpush.msra.mxu0 0.0
  %410 = vmatpush.msra.mxu0 0.0
  %411 = vmatpush.msra.mxu0 0.0
  %412 = vmatpush.msra.mxu0 0.0
  %413 = vmatpush.msra.mxu0 0.0
  %414 = vmatpush.msra.mxu0 0.0
  %415 = vmatpush.msra.mxu0 %v290
  %416 = vmatpush.msra.mxu0 %v146
  %417 = vmatpush.msra.mxu0 %v114
  %418 = vmatmul.f32.gmra.mxu0 %v283
  %v419 = vpop.f32.mrf.mxu0
  %v420 = vadd.f32 %v218, %v419
  %421 = vdwg.mxu0
  %422 = vmatpush.msra.mxu0 0.0
  %423 = vmatpush.msra.mxu0 0.0
  %424 = vmatpush.msra.mxu0 0.0
  %425 = vmatpush.msra.mxu0 0.0
  %426 = vmatpush.msra.mxu0 0.0
  %427 = vmatpush.msra.mxu0 0.0
  %428 = vmatpush.msra.mxu0 0.0
  %429 = vmatpush.msra.mxu0 0.0
  %430 = vmatpush.msra.mxu0 0.0
  %431 = vmatpush.msra.mxu0 0.0
  %432 = vmatpush.msra.mxu0 0.0
  %433 = vmatpush.msra.mxu0 0.0
  %434 = vmatpush.msra.mxu0 0.0
  %435 = vmatpush.msra.mxu0 %v293
  %436 = vmatpush.msra.mxu0 %v147
  %437 = vmatpush.msra.mxu0 %v115
  %438 = vmatmul.f32.gmra.mxu0 %v283
  %v439 = vpop.f32.mrf.mxu0
  %v440 = vadd.f32 %v219, %v439
  %441 = vdwg.mxu0
  %442 = vmatpush.msra.mxu0 0.0
  %443 = vmatpush.msra.mxu0 0.0
  %444 = vmatpush.msra.mxu0 0.0
  %445 = vmatpush.msra.mxu0 0.0
  %446 = vmatpush.msra.mxu0 0.0
  %447 = vmatpush.msra.mxu0 0.0
  %448 = vmatpush.msra.mxu0 0.0
  %449 = vmatpush.msra.mxu0 0.0
  %450 = vmatpush.msra.mxu0 0.0
  %451 = vmatpush.msra.mxu0 0.0
  %452 = vmatpush.msra.mxu0 0.0
  %453 = vmatpush.msra.mxu0 0.0
  %454 = vmatpush.msra.mxu0 0.0
  %455 = vmatpush.msra.mxu0 %v296
  %456 = vmatpush.msra.mxu0 %v148
  %457 = vmatpush.msra.mxu0 %v116
  %458 = vmatmul.f32.gmra.mxu0 %v283
  %v459 = vpop.f32.mrf.mxu0
  %v460 = vadd.f32 %v220, %v459
  %461 = vdwg.mxu0
  %462 = vmatpush.msra.mxu0 0.0
  %463 = vmatpush.msra.mxu0 0.0
  %464 = vmatpush.msra.mxu0 0.0
  %465 = vmatpush.msra.mxu0 0.0
  %466 = vmatpush.msra.mxu0 0.0
  %467 = vmatpush.msra.mxu0 0.0
  %468 = vmatpush.msra.mxu0 0.0
  %469 = vmatpush.msra.mxu0 0.0
  %470 = vmatpush.msra.mxu0 0.0
  %471 = vmatpush.msra.mxu0 0.0
  %472 = vmatpush.msra.mxu0 0.0
  %473 = vmatpush.msra.mxu0 0.0
  %474 = vmatpush.msra.mxu0 0.0
  %475 = vmatpush.msra.mxu0 %v299
  %476 = vmatpush.msra.mxu0 %v149
  %477 = vmatpush.msra.mxu0 %v117
  %478 = vmatmul.f32.gmra.mxu0 %v283
  %v479 = vpop.f32.mrf.mxu0
  %v480 = vadd.f32 %v221, %v479
  %481 = vdwg.mxu0
  %482 = vmatpush.msra.mxu0 0.0
  %483 = vmatpush.msra.mxu0 0.0
  %484 = vmatpush.msra.mxu0 0.0
  %485 = vmatpush.msra.mxu0 0.0
  %486 = vmatpush.msra.mxu0 0.0
  %487 = vmatpush.msra.mxu0 0.0
  %488 = vmatpush.msra.mxu0 0.0
  %489 = vmatpush.msra.mxu0 0.0
  %490 = vmatpush.msra.mxu0 0.0
  %491 = vmatpush.msra.mxu0 0.0
  %492 = vmatpush.msra.mxu0 0.0
  %493 = vmatpush.msra.mxu0 0.0
  %494 = vmatpush.msra.mxu0 0.0
  %495 = vmatpush.msra.mxu0 %v302
  %496 = vmatpush.msra.mxu0 %v150
  %497 = vmatpush.msra.mxu0 %v118
  %498 = vmatmul.f32.gmra.mxu0 %v283
  %v499 = vpop.f32.mrf.mxu0
  %v500 = vadd.f32 %v222, %v499
  %501 = vdwg.mxu0
  %502 = vmatpush.msra.mxu0 0.0
  %503 = vmatpush.msra.mxu0 0.0
  %504 = vmatpush.msra.mxu0 0.0
  %505 = vmatpush.msra.mxu0 0.0
  %506 = vmatpush.msra.mxu0 0.0
  %507 = vmatpush.msra.mxu0 0.0
  %508 = vmatpush.msra.mxu0 0.0
  %509 = vmatpush.msra.mxu0 0.0
  %510 = vmatpush.msra.mxu0 0.0
  %511 = vmatpush.msra.mxu0 0.0
  %512 = vmatpush.msra.mxu0 0.0
  %513 = vmatpush.msra.mxu0 0.0
  %514 = vmatpush.msra.mxu0 0.0
  %515 = vmatpush.msra.mxu0 %v305
  %516 = vmatpush.msra.mxu0 %v151
  %517 = vmatpush.msra.mxu0 %v119
  %518 = vmatmul.f32.gmra.mxu0 %v283
  %v519 = vpop.f32.mrf.mxu0
  %v520 = vadd.f32 %v223, %v519
  %521 = vdwg.mxu0
  %522 = vmatpush.msra.mxu0 0.0
  %523 = vmatpush.msra.mxu0 0.0
  %524 = vmatpush.msra.mxu0 0.0
  %525 = vmatpush.msra.mxu0 0.0
  %526 = vmatpush.msra.mxu0 0.0
  %527 = vmatpush.msra.mxu0 0.0
  %528 = vmatpush.msra.mxu0 0.0
  %529 = vmatpush.msra.mxu0 0.0
  %530 = vmatpush.msra.mxu0 0.0
  %531 = vmatpush.msra.mxu0 0.0
  %532 = vmatpush.msra.mxu0 0.0
  %533 = vmatpush.msra.mxu0 0.0
  %534 = vmatpush.msra.mxu0 0.0
  %535 = vmatpush.msra.mxu0 %v308
  %536 = vmatpush.msra.mxu0 %v152
  %537 = vmatpush.msra.mxu0 %v120
  %538 = vmatmul.f32.gmra.mxu0 %v283
  %v539 = vpop.f32.mrf.mxu0
  %v540 = vadd.f32 %v224, %v539
  %541 = vdwg.mxu0
  %542 = vmatpush.msra.mxu0 0.0
  %543 = vmatpush.msra.mxu0 0.0
  %544 = vmatpush.msra.mxu0 0.0
  %545 = vmatpush.msra.mxu0 0.0
  %546 = vmatpush.msra.mxu0 0.0
  %547 = vmatpush.msra.mxu0 0.0
  %548 = vmatpush.msra.mxu0 0.0
  %549 = vmatpush.msra.mxu0 0.0
  %550 = vmatpush.msra.mxu0 0.0
  %551 = vmatpush.msra.mxu0 0.0
  %552 = vmatpush.msra.mxu0 0.0
  %553 = vmatpush.msra.mxu0 0.0
  %554 = vmatpush.msra.mxu0 0.0
  %555 = vmatpush.msra.mxu0 %v311
  %556 = vmatpush.msra.mxu0 %v153
  %557 = vmatpush.msra.mxu0 %v121
  %558 = vmatmul.f32.gmra.mxu0 %v283
  %v559 = vpop.f32.mrf.mxu0
  %v560 = vadd.f32 %v225, %v559
  %561 = vdwg.mxu0
  %562 = vmatpush.msra.mxu0 0.0
  %563 = vmatpush.msra.mxu0 0.0
  %564 = vmatpush.msra.mxu0 0.0
  %565 = vmatpush.msra.mxu0 0.0
  %566 = vmatpush.msra.mxu0 0.0
  %567 = vmatpush.msra.mxu0 0.0
  %568 = vmatpush.msra.mxu0 0.0
  %569 = vmatpush.msra.mxu0 0.0
  %570 = vmatpush.msra.mxu0 0.0
  %571 = vmatpush.msra.mxu0 0.0
  %572 = vmatpush.msra.mxu0 0.0
  %573 = vmatpush.msra.mxu0 0.0
  %574 = vmatpush.msra.mxu0 0.0
  %575 = vmatpush.msra.mxu0 %v314
  %576 = vmatpush.msra.mxu0 %v154
  %577 = vmatpush.msra.mxu0 %v122
  %578 = vmatmul.f32.gmra.mxu0 %v283
  %v579 = vpop.f32.mrf.mxu0
  %v580 = vadd.f32 %v226, %v579
  %581 = vdwg.mxu0
  %582 = vmatpush.msra.mxu0 0.0
  %583 = vmatpush.msra.mxu0 0.0
  %584 = vmatpush.msra.mxu0 0.0
  %585 = vmatpush.msra.mxu0 0.0
  %586 = vmatpush.msra.mxu0 0.0
  %587 = vmatpush.msra.mxu0 0.0
  %588 = vmatpush.msra.mxu0 0.0
  %589 = vmatpush.msra.mxu0 0.0
  %590 = vmatpush.msra.mxu0 0.0
  %591 = vmatpush.msra.mxu0 0.0
  %592 = vmatpush.msra.mxu0 0.0
  %593 = vmatpush.msra.mxu0 0.0
  %594 = vmatpush.msra.mxu0 0.0
  %595 = vmatpush.msra.mxu0 %v317
  %596 = vmatpush.msra.mxu0 %v155
  %597 = vmatpush.msra.mxu0 %v123
  %598 = vmatmul.f32.gmra.mxu0 %v283
  %v599 = vpop.f32.mrf.mxu0
  %v600 = vadd.f32 %v227, %v599
  %601 = vdwg.mxu0
  %602 = vmatpush.msra.mxu0 0.0
  %603 = vmatpush.msra.mxu0 0.0
  %604 = vmatpush.msra.mxu0 0.0
  %605 = vmatpush.msra.mxu0 0.0
  %606 = vmatpush.msra.mxu0 0.0
  %607 = vmatpush.msra.mxu0 0.0
  %608 = vmatpush.msra.mxu0 0.0
  %609 = vmatpush.msra.mxu0 0.0
  %610 = vmatpush.msra.mxu0 0.0
  %611 = vmatpush.msra.mxu0 0.0
  %612 = vmatpush.msra.mxu0 0.0
  %613 = vmatpush.msra.mxu0 0.0
  %614 = vmatpush.msra.mxu0 0.0
  %615 = vmatpush.msra.mxu0 %v320
  %616 = vmatpush.msra.mxu0 %v156
  %617 = vmatpush.msra.mxu0 %v124
  %618 = vmatmul.f32.gmra.mxu0 %v283
  %v619 = vpop.f32.mrf.mxu0
  %v620 = vadd.f32 %v228, %v619
  %621 = vdwg.mxu0
  %622 = vmatpush.msra.mxu0 0.0
  %623 = vmatpush.msra.mxu0 0.0
  %624 = vmatpush.msra.mxu0 0.0
  %625 = vmatpush.msra.mxu0 0.0
  %626 = vmatpush.msra.mxu0 0.0
  %627 = vmatpush.msra.mxu0 0.0
  %628 = vmatpush.msra.mxu0 0.0
  %629 = vmatpush.msra.mxu0 0.0
  %630 = vmatpush.msra.mxu0 0.0
  %631 = vmatpush.msra.mxu0 0.0
  %632 = vmatpush.msra.mxu0 0.0
  %633 = vmatpush.msra.mxu0 0.0
  %634 = vmatpush.msra.mxu0 0.0
  %635 = vmatpush.msra.mxu0 %v323
  %636 = vmatpush.msra.mxu0 %v157
  %637 = vmatpush.msra.mxu0 %v125
  %638 = vmatmul.f32.gmra.mxu0 %v283
  %v639 = vpop.f32.mrf.mxu0
  %v640 = vadd.f32 %v229, %v639
  %641 = vdwg.mxu0
  %642 = vmatpush.msra.mxu0 0.0
  %643 = vmatpush.msra.mxu0 0.0
  %644 = vmatpush.msra.mxu0 0.0
  %645 = vmatpush.msra.mxu0 0.0
  %646 = vmatpush.msra.mxu0 0.0
  %647 = vmatpush.msra.mxu0 0.0
  %648 = vmatpush.msra.mxu0 0.0
  %649 = vmatpush.msra.mxu0 0.0
  %650 = vmatpush.msra.mxu0 0.0
  %651 = vmatpush.msra.mxu0 0.0
  %652 = vmatpush.msra.mxu0 0.0
  %653 = vmatpush.msra.mxu0 0.0
  %654 = vmatpush.msra.mxu0 0.0
  %655 = vmatpush.msra.mxu0 %v326
  %656 = vmatpush.msra.mxu0 %v158
  %657 = vmatpush.msra.mxu0 %v126
  %658 = vmatmul.f32.gmra.mxu0 %v283
  %v659 = vpop.f32.mrf.mxu0
  %v660 = vadd.f32 %v230, %v659
  %661 = vdwg.mxu0
  %662 = vmatpush.msra.mxu0 0.0
  %663 = vmatpush.msra.mxu0 0.0
  %664 = vmatpush.msra.mxu0 0.0
  %665 = vmatpush.msra.mxu0 0.0
  %666 = vmatpush.msra.mxu0 0.0
  %667 = vmatpush.msra.mxu0 0.0
  %668 = vmatpush.msra.mxu0 0.0
  %669 = vmatpush.msra.mxu0 0.0
  %670 = vmatpush.msra.mxu0 0.0
  %671 = vmatpush.msra.mxu0 0.0
  %672 = vmatpush.msra.mxu0 0.0
  %673 = vmatpush.msra.mxu0 0.0
  %674 = vmatpush.msra.mxu0 0.0
  %675 = vmatpush.msra.mxu0 %v329
  %676 = vmatpush.msra.mxu0 %v159
  %677 = vmatpush.msra.mxu0 %v127
  %678 = vmatmul.f32.gmra.mxu0 %v283
  %v679 = vpop.f32.mrf.mxu0
  %v680 = vadd.f32 %v231, %v679
  %681 = vdwg.mxu0
  %682 = vmatpush.msra.mxu0 0.0
  %683 = vmatpush.msra.mxu0 0.0
  %684 = vmatpush.msra.mxu0 0.0
  %685 = vmatpush.msra.mxu0 0.0
  %686 = vmatpush.msra.mxu0 0.0
  %687 = vmatpush.msra.mxu0 0.0
  %688 = vmatpush.msra.mxu0 0.0
  %689 = vmatpush.msra.mxu0 0.0
  %690 = vmatpush.msra.mxu0 0.0
  %691 = vmatpush.msra.mxu0 0.0
  %692 = vmatpush.msra.mxu0 0.0
  %693 = vmatpush.msra.mxu0 0.0
  %694 = vmatpush.msra.mxu0 0.0
  %695 = vmatpush.msra.mxu0 %v332
  %696 = vmatpush.msra.mxu0 %v160
  %697 = vmatpush.msra.mxu0 %v128
  %698 = vmatmul.f32.gmra.mxu0 %v283
  %v699 = vpop.f32.mrf.mxu0
  %v700 = vadd.f32 %v232, %v699
  %701 = vdwg.mxu0
  %702 = vmatpush.msra.mxu0 0.0
  %703 = vmatpush.msra.mxu0 0.0
  %704 = vmatpush.msra.mxu0 0.0
  %705 = vmatpush.msra.mxu0 0.0
  %706 = vmatpush.msra.mxu0 0.0
  %707 = vmatpush.msra.mxu0 0.0
  %708 = vmatpush.msra.mxu0 0.0
  %709 = vmatpush.msra.mxu0 0.0
  %710 = vmatpush.msra.mxu0 0.0
  %711 = vmatpush.msra.mxu0 0.0
  %712 = vmatpush.msra.mxu0 0.0
  %713 = vmatpush.msra.mxu0 0.0
  %714 = vmatpush.msra.mxu0 0.0
  %715 = vmatpush.msra.mxu0 %v335
  %716 = vmatpush.msra.mxu0 %v161
  %717 = vmatpush.msra.mxu0 %v129
  %718 = vmatmul.f32.gmra.mxu0 %v283
  %v719 = vpop.f32.mrf.mxu0
  %v720 = vadd.f32 %v233, %v719
  %721 = vdwg.mxu0
  %722 = vmatpush.msra.mxu0 0.0
  %723 = vmatpush.msra.mxu0 0.0
  %724 = vmatpush.msra.mxu0 0.0
  %725 = vmatpush.msra.mxu0 0.0
  %726 = vmatpush.msra.mxu0 0.0
  %727 = vmatpush.msra.mxu0 0.0
  %728 = vmatpush.msra.mxu0 0.0
  %729 = vmatpush.msra.mxu0 0.0
  %730 = vmatpush.msra.mxu0 0.0
  %731 = vmatpush.msra.mxu0 0.0
  %732 = vmatpush.msra.mxu0 0.0
  %733 = vmatpush.msra.mxu0 0.0
  %734 = vmatpush.msra.mxu0 0.0
  %735 = vmatpush.msra.mxu0 %v338
  %736 = vmatpush.msra.mxu0 %v162
  %737 = vmatpush.msra.mxu0 %v130
  %738 = vmatmul.f32.gmra.mxu0 %v283
  %v739 = vpop.f32.mrf.mxu0
  %v740 = vadd.f32 %v234, %v739
  %741 = vdwg.mxu0
  %742 = vmatpush.msra.mxu0 0.0
  %743 = vmatpush.msra.mxu0 0.0
  %744 = vmatpush.msra.mxu0 0.0
  %745 = vmatpush.msra.mxu0 0.0
  %746 = vmatpush.msra.mxu0 0.0
  %747 = vmatpush.msra.mxu0 0.0
  %748 = vmatpush.msra.mxu0 0.0
  %749 = vmatpush.msra.mxu0 0.0
  %750 = vmatpush.msra.mxu0 0.0
  %751 = vmatpush.msra.mxu0 0.0
  %752 = vmatpush.msra.mxu0 0.0
  %753 = vmatpush.msra.mxu0 0.0
  %754 = vmatpush.msra.mxu0 0.0
  %755 = vmatpush.msra.mxu0 %v341
  %756 = vmatpush.msra.mxu0 %v163
  %757 = vmatpush.msra.mxu0 %v131
  %758 = vmatmul.f32.gmra.mxu0 %v283
  %v759 = vpop.f32.mrf.mxu0
  %v760 = vadd.f32 %v235, %v759
  %761 = vdwg.mxu0
  %762 = vmatpush.msra.mxu0 0.0
  %763 = vmatpush.msra.mxu0 0.0
  %764 = vmatpush.msra.mxu0 0.0
  %765 = vmatpush.msra.mxu0 0.0
  %766 = vmatpush.msra.mxu0 0.0
  %767 = vmatpush.msra.mxu0 0.0
  %768 = vmatpush.msra.mxu0 0.0
  %769 = vmatpush.msra.mxu0 0.0
  %770 = vmatpush.msra.mxu0 0.0
  %771 = vmatpush.msra.mxu0 0.0
  %772 = vmatpush.msra.mxu0 0.0
  %773 = vmatpush.msra.mxu0 0.0
  %774 = vmatpush.msra.mxu0 0.0
  %775 = vmatpush.msra.mxu0 %v344
  %776 = vmatpush.msra.mxu0 %v164
  %777 = vmatpush.msra.mxu0 %v132
  %778 = vmatmul.f32.gmra.mxu0 %v283
  %v779 = vpop.f32.mrf.mxu0
  %v780 = vadd.f32 %v236, %v779
  %781 = vdwg.mxu0
  %782 = vmatpush.msra.mxu0 0.0
  %783 = vmatpush.msra.mxu0 0.0
  %784 = vmatpush.msra.mxu0 0.0
  %785 = vmatpush.msra.mxu0 0.0
  %786 = vmatpush.msra.mxu0 0.0
  %787 = vmatpush.msra.mxu0 0.0
  %788 = vmatpush.msra.mxu0 0.0
  %789 = vmatpush.msra.mxu0 0.0
  %790 = vmatpush.msra.mxu0 0.0
  %791 = vmatpush.msra.mxu0 0.0
  %792 = vmatpush.msra.mxu0 0.0
  %793 = vmatpush.msra.mxu0 0.0
  %794 = vmatpush.msra.mxu0 0.0
  %795 = vmatpush.msra.mxu0 %v347
  %796 = vmatpush.msra.mxu0 %v165
  %797 = vmatpush.msra.mxu0 %v133
  %798 = vmatmul.f32.gmra.mxu0 %v283
  %v799 = vpop.f32.mrf.mxu0
  %v800 = vadd.f32 %v237, %v799
  %801 = vdwg.mxu0
  %802 = vmatpush.msra.mxu0 0.0
  %803 = vmatpush.msra.mxu0 0.0
  %804 = vmatpush.msra.mxu0 0.0
  %805 = vmatpush.msra.mxu0 0.0
  %806 = vmatpush.msra.mxu0 0.0
  %807 = vmatpush.msra.mxu0 0.0
  %808 = vmatpush.msra.mxu0 0.0
  %809 = vmatpush.msra.mxu0 0.0
  %810 = vmatpush.msra.mxu0 0.0
  %811 = vmatpush.msra.mxu0 0.0
  %812 = vmatpush.msra.mxu0 0.0
  %813 = vmatpush.msra.mxu0 0.0
  %814 = vmatpush.msra.mxu0 0.0
  %815 = vmatpush.msra.mxu0 %v350
  %816 = vmatpush.msra.mxu0 %v166
  %817 = vmatpush.msra.mxu0 %v134
  %818 = vmatmul.f32.gmra.mxu0 %v283
  %v819 = vpop.f32.mrf.mxu0
  %v820 = vadd.f32 %v238, %v819
  %821 = vdwg.mxu0
  %822 = vmatpush.msra.mxu0 0.0
  %823 = vmatpush.msra.mxu0 0.0
  %824 = vmatpush.msra.mxu0 0.0
  %825 = vmatpush.msra.mxu0 0.0
  %826 = vmatpush.msra.mxu0 0.0
  %827 = vmatpush.msra.mxu0 0.0
  %828 = vmatpush.msra.mxu0 0.0
  %829 = vmatpush.msra.mxu0 0.0
  %830 = vmatpush.msra.mxu0 0.0
  %831 = vmatpush.msra.mxu0 0.0
  %832 = vmatpush.msra.mxu0 0.0
  %833 = vmatpush.msra.mxu0 0.0
  %834 = vmatpush.msra.mxu0 0.0
  %835 = vmatpush.msra.mxu0 %v353
  %836 = vmatpush.msra.mxu0 %v167
  %837 = vmatpush.msra.mxu0 %v135
  %838 = vmatmul.f32.gmra.mxu0 %v283
  %v839 = vpop.f32.mrf.mxu0
  %v840 = vadd.f32 %v239, %v839
  %841 = vdwg.mxu0
  %842 = vmatpush.msra.mxu0 0.0
  %843 = vmatpush.msra.mxu0 0.0
  %844 = vmatpush.msra.mxu0 0.0
  %845 = vmatpush.msra.mxu0 0.0
  %846 = vmatpush.msra.mxu0 0.0
  %847 = vmatpush.msra.mxu0 0.0
  %848 = vmatpush.msra.mxu0 0.0
  %849 = vmatpush.msra.mxu0 0.0
  %850 = vmatpush.msra.mxu0 0.0
  %851 = vmatpush.msra.mxu0 0.0
  %852 = vmatpush.msra.mxu0 0.0
  %853 = vmatpush.msra.mxu0 0.0
  %854 = vmatpush.msra.mxu0 0.0
  %855 = vmatpush.msra.mxu0 %v356
  %856 = vmatpush.msra.mxu0 %v168
  %857 = vmatpush.msra.mxu0 %v136
  %858 = vmatmul.f32.gmra.mxu0 %v283
  %v859 = vpop.f32.mrf.mxu0
  %v860 = vadd.f32 %v240, %v859
  %861 = vdwg.mxu0
  %862 = vmatpush.msra.mxu0 0.0
  %863 = vmatpush.msra.mxu0 0.0
  %864 = vmatpush.msra.mxu0 0.0
  %865 = vmatpush.msra.mxu0 0.0
  %866 = vmatpush.msra.mxu0 0.0
  %867 = vmatpush.msra.mxu0 0.0
  %868 = vmatpush.msra.mxu0 0.0
  %869 = vmatpush.msra.mxu0 0.0
  %870 = vmatpush.msra.mxu0 0.0
  %871 = vmatpush.msra.mxu0 0.0
  %872 = vmatpush.msra.mxu0 0.0
  %873 = vmatpush.msra.mxu0 0.0
  %874 = vmatpush.msra.mxu0 0.0
  %875 = vmatpush.msra.mxu0 %v359
  %876 = vmatpush.msra.mxu0 %v169
  %877 = vmatpush.msra.mxu0 %v137
  %878 = vmatmul.f32.gmra.mxu0 %v283
  %v879 = vpop.f32.mrf.mxu0
  %v880 = vadd.f32 %v241, %v879
  %881 = vdwg.mxu0
  %882 = vmatpush.msra.mxu0 0.0
  %883 = vmatpush.msra.mxu0 0.0
  %884 = vmatpush.msra.mxu0 0.0
  %885 = vmatpush.msra.mxu0 0.0
  %886 = vmatpush.msra.mxu0 0.0
  %887 = vmatpush.msra.mxu0 0.0
  %888 = vmatpush.msra.mxu0 0.0
  %889 = vmatpush.msra.mxu0 0.0
  %890 = vmatpush.msra.mxu0 0.0
  %891 = vmatpush.msra.mxu0 0.0
  %892 = vmatpush.msra.mxu0 0.0
  %893 = vmatpush.msra.mxu0 0.0
  %894 = vmatpush.msra.mxu0 0.0
  %895 = vmatpush.msra.mxu0 %v362
  %896 = vmatpush.msra.mxu0 %v170
  %897 = vmatpush.msra.mxu0 %v138
  %898 = vmatmul.f32.gmra.mxu0 %v283
  %v899 = vpop.f32.mrf.mxu0
  %v900 = vadd.f32 %v242, %v899
  %901 = vdwg.mxu0
  %902 = vmatpush.msra.mxu0 0.0
  %903 = vmatpush.msra.mxu0 0.0
  %904 = vmatpush.msra.mxu0 0.0
  %905 = vmatpush.msra.mxu0 0.0
  %906 = vmatpush.msra.mxu0 0.0
  %907 = vmatpush.msra.mxu0 0.0
  %908 = vmatpush.msra.mxu0 0.0
  %909 = vmatpush.msra.mxu0 0.0
  %910 = vmatpush.msra.mxu0 0.0
  %911 = vmatpush.msra.mxu0 0.0
  %912 = vmatpush.msra.mxu0 0.0
  %913 = vmatpush.msra.mxu0 0.0
  %914 = vmatpush.msra.mxu0 0.0
  %915 = vmatpush.msra.mxu0 %v365
  %916 = vmatpush.msra.mxu0 %v171
  %917 = vmatpush.msra.mxu0 %v139
  %918 = vmatmul.f32.gmra.mxu0 %v283
  %v919 = vpop.f32.mrf.mxu0
  %v920 = vadd.f32 %v243, %v919
  %921 = vdwg.mxu0
  %922 = vmatpush.msra.mxu0 0.0
  %923 = vmatpush.msra.mxu0 0.0
  %924 = vmatpush.msra.mxu0 0.0
  %925 = vmatpush.msra.mxu0 0.0
  %926 = vmatpush.msra.mxu0 0.0
  %927 = vmatpush.msra.mxu0 0.0
  %928 = vmatpush.msra.mxu0 0.0
  %929 = vmatpush.msra.mxu0 0.0
  %930 = vmatpush.msra.mxu0 0.0
  %931 = vmatpush.msra.mxu0 0.0
  %932 = vmatpush.msra.mxu0 0.0
  %933 = vmatpush.msra.mxu0 0.0
  %934 = vmatpush.msra.mxu0 0.0
  %935 = vmatpush.msra.mxu0 %v368
  %936 = vmatpush.msra.mxu0 %v172
  %937 = vmatpush.msra.mxu0 %v140
  %938 = vmatmul.f32.gmra.mxu0 %v283
  %v939 = vpop.f32.mrf.mxu0
  %v940 = vadd.f32 %v244, %v939
  %941 = vdwg.mxu0
  %942 = vmatpush.msra.mxu0 0.0
  %943 = vmatpush.msra.mxu0 0.0
  %944 = vmatpush.msra.mxu0 0.0
  %945 = vmatpush.msra.mxu0 0.0
  %946 = vmatpush.msra.mxu0 0.0
  %947 = vmatpush.msra.mxu0 0.0
  %948 = vmatpush.msra.mxu0 0.0
  %949 = vmatpush.msra.mxu0 0.0
  %950 = vmatpush.msra.mxu0 0.0
  %951 = vmatpush.msra.mxu0 0.0
  %952 = vmatpush.msra.mxu0 0.0
  %953 = vmatpush.msra.mxu0 0.0
  %954 = vmatpush.msra.mxu0 0.0
  %955 = vmatpush.msra.mxu0 %v371
  %956 = vmatpush.msra.mxu0 %v173
  %957 = vmatpush.msra.mxu0 %v141
  %958 = vmatmul.f32.gmra.mxu0 %v283
  %v959 = vpop.f32.mrf.mxu0
  %v960 = vadd.f32 %v245, %v959
  %961 = vdwg.mxu0
  %962 = vmatpush.msra.mxu0 0.0
  %963 = vmatpush.msra.mxu0 0.0
  %964 = vmatpush.msra.mxu0 0.0
  %965 = vmatpush.msra.mxu0 0.0
  %966 = vmatpush.msra.mxu0 0.0
  %967 = vmatpush.msra.mxu0 0.0
  %968 = vmatpush.msra.mxu0 0.0
  %969 = vmatpush.msra.mxu0 0.0
  %970 = vmatpush.msra.mxu0 0.0
  %971 = vmatpush.msra.mxu0 0.0
  %972 = vmatpush.msra.mxu0 0.0
  %973 = vmatpush.msra.mxu0 0.0
  %974 = vmatpush.msra.mxu0 0.0
  %975 = vmatpush.msra.mxu0 %v374
  %976 = vmatpush.msra.mxu0 %v174
  %977 = vmatpush.msra.mxu0 %v142
  %978 = vmatmul.f32.gmra.mxu0 %v283
  %v979 = vpop.f32.mrf.mxu0
  %v980 = vadd.f32 %v246, %v979
  %981 = vdwg.mxu0
  %982 = vmatpush.msra.mxu0 0.0
  %983 = vmatpush.msra.mxu0 0.0
  %984 = vmatpush.msra.mxu0 0.0
  %985 = vmatpush.msra.mxu0 0.0
  %986 = vmatpush.msra.mxu0 0.0
  %987 = vmatpush.msra.mxu0 0.0
  %988 = vmatpush.msra.mxu0 0.0
  %989 = vmatpush.msra.mxu0 0.0
  %990 = vmatpush.msra.mxu0 0.0
  %991 = vmatpush.msra.mxu0 0.0
  %992 = vmatpush.msra.mxu0 0.0
  %993 = vmatpush.msra.mxu0 0.0
  %994 = vmatpush.msra.mxu0 0.0
  %995 = vmatpush.msra.mxu0 %v377
  %996 = vmatpush.msra.mxu0 %v175
  %997 = vmatpush.msra.mxu0 %v143
  %998 = vmatmul.f32.gmra.mxu0 %v283
  %v999 = vpop.f32.mrf.mxu0
  %v1000 = vadd.f32 %v247, %v999
  %1001 = vdwg.mxu0
  %1002 = vmatpush.msra.mxu0 0.0
  %1003 = vmatpush.msra.mxu0 0.0
  %1004 = vmatpush.msra.mxu0 0.0
  %1005 = vmatpush.msra.mxu0 0.0
  %1006 = vmatpush.msra.mxu0 0.0
  %1007 = vmatpush.msra.mxu0 0.0
  %1008 = vmatpush.msra.mxu0 0.0
  %1009 = vmatpush.msra.mxu0 0.0
  %1010 = vmatpush.msra.mxu0 0.0
  %1011 = vmatpush.msra.mxu0 0.0
  %1012 = vmatpush.msra.mxu0 0.0
  %1013 = vmatpush.msra.mxu0 0.0
  %1014 = vmatpush.msra.mxu0 0.0
  %1015 = vmatpush.msra.mxu0 %v380
  %1016 = vmatpush.msra.mxu0 %v176
  %1017 = vmatpush.msra.mxu0 %v144
  %1018 = vmatmul.f32.gmra.mxu0 %v283
  %v1019 = vpop.f32.mrf.mxu0
  %v1020 = vadd.f32 %v248, %v1019
  %1021 = vdwg.mxu0
  %v1022 = vmax.f32 %v400, 0.0
  %v1023 = vmax.f32 %v420, 0.0
  %v1024 = vmax.f32 %v440, 0.0
  %v1025 = vmax.f32 %v460, 0.0
  %v1026 = vmax.f32 %v480, 0.0
  %v1027 = vmax.f32 %v500, 0.0
  %v1028 = vmax.f32 %v520, 0.0
  %v1029 = vmax.f32 %v540, 0.0
  %v1030 = vmax.f32 %v560, 0.0
  %v1031 = vmax.f32 %v580, 0.0
  %v1032 = vmax.f32 %v600, 0.0
  %v1033 = vmax.f32 %v620, 0.0
  %v1034 = vmax.f32 %v640, 0.0
  %v1035 = vmax.f32 %v660, 0.0
  %v1036 = vmax.f32 %v680, 0.0
  %v1037 = vmax.f32 %v700, 0.0
  %v1038 = vmax.f32 %v720, 0.0
  %v1039 = vmax.f32 %v740, 0.0
  %v1040 = vmax.f32 %v760, 0.0
  %v1041 = vmax.f32 %v780, 0.0
  %v1042 = vmax.f32 %v800, 0.0
  %v1043 = vmax.f32 %v820, 0.0
  %v1044 = vmax.f32 %v840, 0.0
  %v1045 = vmax.f32 %v860, 0.0
  %v1046 = vmax.f32 %v880, 0.0
  %v1047 = vmax.f32 %v900, 0.0
  %v1048 = vmax.f32 %v920, 0.0
  %v1049 = vmax.f32 %v940, 0.0
  %v1050 = vmax.f32 %v960, 0.0
  %v1051 = vmax.f32 %v980, 0.0
  %v1052 = vmax.f32 %v1000, 0.0
  %v1053 = vmax.f32 %v1020, 0.0
  %v1054 = vld [vmem:[%s6] sm:$0xff]
  %v1055 = vld [vmem:[%s6 + $0x8] sm:$0xff]
  %v1056 = vld [vmem:[%s6 + $0x10] sm:$0xff]
  %v1057 = vld [vmem:[%s6 + $0x18] sm:$0xff]
  %v1058 = vld [vmem:[%s6 + $0x20] sm:$0xff]
  %v1059 = vld [vmem:[%s6 + $0x28] sm:$0xff]
  %v1060 = vld [vmem:[%s6 + $0x30] sm:$0xff]
  %v1061 = vld [vmem:[%s6 + $0x38] sm:$0xff]
  %v1062 = vld [vmem:[%s6 + $0x40] sm:$0xff]
  %v1063 = vld [vmem:[%s6 + $0x48] sm:$0xff]
  %v1064 = vld [vmem:[%s6 + $0x50] sm:$0xff]
  %v1065 = vld [vmem:[%s6 + $0x58] sm:$0xff]
  %v1066 = vld [vmem:[%s6 + $0x60] sm:$0xff]
  %v1067 = vld [vmem:[%s6 + $0x68] sm:$0xff]
  %v1068 = vld [vmem:[%s6 + $0x70] sm:$0xff]
  %v1069 = vld [vmem:[%s6 + $0x78] sm:$0xff]
  %v1070 = vld [vmem:[%s6 + $0x80] sm:$0xff]
  %v1071 = vld [vmem:[%s6 + $0x88] sm:$0xff]
  %v1072 = vld [vmem:[%s6 + $0x90] sm:$0xff]
  %v1073 = vld [vmem:[%s6 + $0x98] sm:$0xff]
  %v1074 = vld [vmem:[%s6 + $0xa0] sm:$0xff]
  %v1075 = vld [vmem:[%s6 + $0xa8] sm:$0xff]
  %v1076 = vld [vmem:[%s6 + $0xb0] sm:$0xff]
  %v1077 = vld [vmem:[%s6 + $0xb8] sm:$0xff]
  %v1078 = vld [vmem:[%s6 + $0xc0] sm:$0xff]
  %v1079 = vld [vmem:[%s6 + $0xc8] sm:$0xff]
  %v1080 = vld [vmem:[%s6 + $0xd0] sm:$0xff]
  %v1081 = vld [vmem:[%s6 + $0xd8] sm:$0xff]
  %v1082 = vld [vmem:[%s6 + $0xe0] sm:$0xff]
  %v1083 = vld [vmem:[%s6 + $0xe8] sm:$0xff]
  %v1084 = vld [vmem:[%s6 + $0xf0] sm:$0xff]
  %v1085 = vld [vmem:[%s6 + $0xf8] sm:$0xff]
  %v1086 = vld [vmem:[%s6 + $0x100] sm:$0xff]
  %v1087 = vld [vmem:[%s6 + $0x108] sm:$0xff]
  %v1088 = vld [vmem:[%s6 + $0x110] sm:$0xff]
  %v1089 = vld [vmem:[%s6 + $0x118] sm:$0xff]
  %v1090 = vld [vmem:[%s6 + $0x120] sm:$0xff]
  %v1091 = vld [vmem:[%s6 + $0x128] sm:$0xff]
  %v1092 = vld [vmem:[%s6 + $0x130] sm:$0xff]
  %v1093 = vld [vmem:[%s6 + $0x138] sm:$0xff]
  %v1094 = vld [vmem:[%s6 + $0x140] sm:$0xff]
  %v1095 = vld [vmem:[%s6 + $0x148] sm:$0xff]
  %v1096 = vld [vmem:[%s6 + $0x150] sm:$0xff]
  %v1097 = vld [vmem:[%s6 + $0x158] sm:$0xff]
  %v1098 = vld [vmem:[%s6 + $0x160] sm:$0xff]
  %v1099 = vld [vmem:[%s6 + $0x168] sm:$0xff]
  %v1100 = vld [vmem:[%s6 + $0x170] sm:$0xff]
  %v1101 = vld [vmem:[%s6 + $0x178] sm:$0xff]
  %v1102 = vld [vmem:[%s6 + $0x180] sm:$0xff]
  %v1103 = vld [vmem:[%s6 + $0x188] sm:$0xff]
  %v1104 = vld [vmem:[%s6 + $0x190] sm:$0xff]
  %v1105 = vld [vmem:[%s6 + $0x198] sm:$0xff]
  %v1106 = vld [vmem:[%s6 + $0x1a0] sm:$0xff]
  %v1107 = vld [vmem:[%s6 + $0x1a8] sm:$0xff]
  %v1108 = vld [vmem:[%s6 + $0x1b0] sm:$0xff]
  %v1109 = vld [vmem:[%s6 + $0x1b8] sm:$0xff]
  %v1110 = vld [vmem:[%s6 + $0x1c0] sm:$0xff]
  %v1111 = vld [vmem:[%s6 + $0x1c8] sm:$0xff]
  %v1112 = vld [vmem:[%s6 + $0x1d0] sm:$0xff]
  %v1113 = vld [vmem:[%s6 + $0x1d8] sm:$0xff]
  %v1114 = vld [vmem:[%s6 + $0x1e0] sm:$0xff]
  %v1115 = vld [vmem:[%s6 + $0x1e8] sm:$0xff]
  %v1116 = vld [vmem:[%s6 + $0x1f0] sm:$0xff]
  %v1117 = vld [vmem:[%s6 + $0x1f8] sm:$0xff]
  %v1118 = vld [vmem:[%s6 + $0x200] sm:$0xff]
  %v1119 = vld [vmem:[%s6 + $0x208] sm:$0xff]
  %v1120 = vld [vmem:[%s6 + $0x210] sm:$0xff]
  %v1121 = vld [vmem:[%s6 + $0x218] sm:$0xff]
  %v1122 = vld [vmem:[%s6 + $0x220] sm:$0xff]
  %v1123 = vld [vmem:[%s6 + $0x228] sm:$0xff]
  %v1124 = vld [vmem:[%s6 + $0x230] sm:$0xff]
  %v1125 = vld [vmem:[%s6 + $0x238] sm:$0xff]
  %v1126 = vld [vmem:[%s6 + $0x240] sm:$0xff]
  %v1127 = vld [vmem:[%s6 + $0x248] sm:$0xff]
  %v1128 = vld [vmem:[%s6 + $0x250] sm:$0xff]
  %v1129 = vld [vmem:[%s6 + $0x258] sm:$0xff]
  %v1130 = vld [vmem:[%s6 + $0x260] sm:$0xff]
  %v1131 = vld [vmem:[%s6 + $0x268] sm:$0xff]
  %v1132 = vld [vmem:[%s6 + $0x270] sm:$0xff]
  %v1133 = vld [vmem:[%s6 + $0x278] sm:$0xff]
  %v1134 = vld [vmem:[%s6 + $0x280] sm:$0xff]
  %v1135 = vld [vmem:[%s6 + $0x288] sm:$0xff]
  %v1136 = vld [vmem:[%s6 + $0x290] sm:$0xff]
  %v1137 = vld [vmem:[%s6 + $0x298] sm:$0xff]
  %v1138 = vld [vmem:[%s6 + $0x2a0] sm:$0xff]
  %v1139 = vld [vmem:[%s6 + $0x2a8] sm:$0xff]
  %v1140 = vld [vmem:[%s6 + $0x2b0] sm:$0xff]
  %v1141 = vld [vmem:[%s6 + $0x2b8] sm:$0xff]
  %v1142 = vld [vmem:[%s6 + $0x2c0] sm:$0xff]
  %v1143 = vld [vmem:[%s6 + $0x2c8] sm:$0xff]
  %v1144 = vld [vmem:[%s6 + $0x2d0] sm:$0xff]
  %v1145 = vld [vmem:[%s6 + $0x2d8] sm:$0xff]
  %v1146 = vld [vmem:[%s6 + $0x2e0] sm:$0xff]
  %v1147 = vld [vmem:[%s6 + $0x2e8] sm:$0xff]
  %v1148 = vld [vmem:[%s6 + $0x2f0] sm:$0xff]
  %v1149 = vld [vmem:[%s6 + $0x2f8] sm:$0xff]
  %v1150 = vld [vmem:[%s6 + $0x300] sm:$0xff]
  %v1151 = vld [vmem:[%s6 + $0x308] sm:$0xff]
  %v1152 = vld [vmem:[%s6 + $0x310] sm:$0xff]
  %v1153 = vld [vmem:[%s6 + $0x318] sm:$0xff]
  %v1154 = vld [vmem:[%s6 + $0x320] sm:$0xff]
  %v1155 = vld [vmem:[%s6 + $0x328] sm:$0xff]
  %v1156 = vld [vmem:[%s6 + $0x330] sm:$0xff]
  %v1157 = vld [vmem:[%s6 + $0x338] sm:$0xff]
  %v1158 = vld [vmem:[%s6 + $0x340] sm:$0xff]
  %v1159 = vld [vmem:[%s6 + $0x348] sm:$0xff]
  %v1160 = vld [vmem:[%s6 + $0x350] sm:$0xff]
  %v1161 = vld [vmem:[%s6 + $0x358] sm:$0xff]
  %v1162 = vld [vmem:[%s6 + $0x360] sm:$0xff]
  %v1163 = vld [vmem:[%s6 + $0x368] sm:$0xff]
  %v1164 = vld [vmem:[%s6 + $0x370] sm:$0xff]
  %v1165 = vld [vmem:[%s6 + $0x378] sm:$0xff]
  %v1166 = vld [vmem:[%s6 + $0x380] sm:$0xff]
  %v1167 = vld [vmem:[%s6 + $0x388] sm:$0xff]
  %v1168 = vld [vmem:[%s6 + $0x390] sm:$0xff]
  %v1169 = vld [vmem:[%s6 + $0x398] sm:$0xff]
  %v1170 = vld [vmem:[%s6 + $0x3a0] sm:$0xff]
  %v1171 = vld [vmem:[%s6 + $0x3a8] sm:$0xff]
  %v1172 = vld [vmem:[%s6 + $0x3b0] sm:$0xff]
  %v1173 = vld [vmem:[%s6 + $0x3b8] sm:$0xff]
  %v1174 = vld [vmem:[%s6 + $0x3c0] sm:$0xff]
  %v1175 = vld [vmem:[%s6 + $0x3c8] sm:$0xff]
  %v1176 = vld [vmem:[%s6 + $0x3d0] sm:$0xff]
  %v1177 = vld [vmem:[%s6 + $0x3d8] sm:$0xff]
  %v1178 = vld [vmem:[%s6 + $0x3e0] sm:$0xff]
  %v1179 = vld [vmem:[%s6 + $0x3e8] sm:$0xff]
  %v1180 = vld [vmem:[%s6 + $0x3f0] sm:$0xff]
  %v1181 = vld [vmem:[%s6 + $0x3f8] sm:$0xff]
  %1182 = vmatpush.msra.mxu0 %v1069
  %1183 = vmatpush.msra.mxu0 %v1068
  %1184 = vmatpush.msra.mxu0 %v1067
  %1185 = vmatpush.msra.mxu0 %v1066
  %1186 = vmatpush.msra.mxu0 %v1065
  %1187 = vmatpush.msra.mxu0 %v1064
  %1188 = vmatpush.msra.mxu0 %v1063
  %1189 = vmatpush.msra.mxu0 %v1062
  %1190 = vmatpush.msra.mxu0 %v1061
  %1191 = vmatpush.msra.mxu0 %v1060
  %1192 = vmatpush.msra.mxu0 %v1059
  %1193 = vmatpush.msra.mxu0 %v1058
  %1194 = vmatpush.msra.mxu0 %v1057
  %1195 = vmatpush.msra.mxu0 %v1056
  %1196 = vmatpush.msra.mxu0 %v1055
  %1197 = vmatpush.msra.mxu0 %v1054
  %1198 = vmatmul.f32.gmra.mxu0 %v1022
  %v1199 = vpop.f32.mrf.mxu0
  %v1200 = vadd.f32 0.0, %v1199
  %1201 = vdwg.mxu0
  %1202 = vmatpush.msra.mxu0 %v1085
  %1203 = vmatpush.msra.mxu0 %v1084
  %1204 = vmatpush.msra.mxu0 %v1083
  %1205 = vmatpush.msra.mxu0 %v1082
  %1206 = vmatpush.msra.mxu0 %v1081
  %1207 = vmatpush.msra.mxu0 %v1080
  %1208 = vmatpush.msra.mxu0 %v1079
  %1209 = vmatpush.msra.mxu0 %v1078
  %1210 = vmatpush.msra.mxu0 %v1077
  %1211 = vmatpush.msra.mxu0 %v1076
  %1212 = vmatpush.msra.mxu0 %v1075
  %1213 = vmatpush.msra.mxu0 %v1074
  %1214 = vmatpush.msra.mxu0 %v1073
  %1215 = vmatpush.msra.mxu0 %v1072
  %1216 = vmatpush.msra.mxu0 %v1071
  %1217 = vmatpush.msra.mxu0 %v1070
  %1218 = vmatmul.f32.gmra.mxu0 %v1023
  %v1219 = vpop.f32.mrf.mxu0
  %v1220 = vadd.f32 %v1200, %v1219
  %1221 = vdwg.mxu0
  %1222 = vmatpush.msra.mxu0 %v1101
  %1223 = vmatpush.msra.mxu0 %v1100
  %1224 = vmatpush.msra.mxu0 %v1099
  %1225 = vmatpush.msra.mxu0 %v1098
  %1226 = vmatpush.msra.mxu0 %v1097
  %1227 = vmatpush.msra.mxu0 %v1096
  %1228 = vmatpush.msra.mxu0 %v1095
  %1229 = vmatpush.msra.mxu0 %v1094
  %1230 = vmatpush.msra.mxu0 %v1093
  %1231 = vmatpush.msra.mxu0 %v1092
  %1232 = vmatpush.msra.mxu0 %v1091
  %1233 = vmatpush.msra.mxu0 %v1090
  %1234 = vmatpush.msra.mxu0 %v1089
  %1235 = vmatpush.msra.mxu0 %v1088
  %1236 = vmatpush.msra.mxu0 %v1087
  %1237 = vmatpush.msra.mxu0 %v1086
  %1238 = vmatmul.f32.gmra.mxu0 %v1024
  %v1239 = vpop.f32.mrf.mxu0
  %v1240 = vadd.f32 %v1220, %v1239
  %1241 = vdwg.mxu0
  %1242 = vmatpush.msra.mxu0 %v1117
  %1243 = vmatpush.msra.mxu0 %v1116
  %1244 = vmatpush.msra.mxu0 %v1115
  %1245 = vmatpush.msra.mxu0 %v1114
  %1246 = vmatpush.msra.mxu0 %v1113
  %1247 = vmatpush.msra.mxu0 %v1112
  %1248 = vmatpush.msra.mxu0 %v1111
  %1249 = vmatpush.msra.mxu0 %v1110
  %1250 = vmatpush.msra.mxu0 %v1109
  %1251 = vmatpush.msra.mxu0 %v1108
  %1252 = vmatpush.msra.mxu0 %v1107
  %1253 = vmatpush.msra.mxu0 %v1106
  %1254 = vmatpush.msra.mxu0 %v1105
  %1255 = vmatpush.msra.mxu0 %v1104
  %1256 = vmatpush.msra.mxu0 %v1103
  %1257 = vmatpush.msra.mxu0 %v1102
  %1258 = vmatmul.f32.gmra.mxu0 %v1025
  %v1259 = vpop.f32.mrf.mxu0
  %v1260 = vadd.f32 %v1240, %v1259
  %1261 = vdwg.mxu0
  %1262 = vmatpush.msra.mxu0 %v1133
  %1263 = vmatpush.msra.mxu0 %v1132
  %1264 = vmatpush.msra.mxu0 %v1131
  %1265 = vmatpush.msra.mxu0 %v1130
  %1266 = vmatpush.msra.mxu0 %v1129
  %1267 = vmatpush.msra.mxu0 %v1128
  %1268 = vmatpush.msra.mxu0 %v1127
  %1269 = vmatpush.msra.mxu0 %v1126
  %1270 = vmatpush.msra.mxu0 %v1125
  %1271 = vmatpush.msra.mxu0 %v1124
  %1272 = vmatpush.msra.mxu0 %v1123
  %1273 = vmatpush.msra.mxu0 %v1122
  %1274 = vmatpush.msra.mxu0 %v1121
  %1275 = vmatpush.msra.mxu0 %v1120
  %1276 = vmatpush.msra.mxu0 %v1119
  %1277 = vmatpush.msra.mxu0 %v1118
  %1278 = vmatmul.f32.gmra.mxu0 %v1026
  %v1279 = vpop.f32.mrf.mxu0
  %v1280 = vadd.f32 %v1260, %v1279
  %1281 = vdwg.mxu0
  %1282 = vmatpush.msra.mxu0 %v1149
  %1283 = vmatpush.msra.mxu0 %v1148
  %1284 = vmatpush.msra.mxu0 %v1147
  %1285 = vmatpush.msra.mxu0 %v1146
  %1286 = vmatpush.msra.mxu0 %v1145
  %1287 = vmatpush.msra.mxu0 %v1144
  %1288 = vmatpush.msra.mxu0 %v1143
  %1289 = vmatpush.msra.mxu0 %v1142
  %1290 = vmatpush.msra.mxu0 %v1141
  %1291 = vmatpush.msra.mxu0 %v1140
  %1292 = vmatpush.msra.mxu0 %v1139
  %1293 = vmatpush.msra.mxu0 %v1138
  %1294 = vmatpush.msra.mxu0 %v1137
  %1295 = vmatpush.msra.mxu0 %v1136
  %1296 = vmatpush.msra.mxu0 %v1135
  %1297 = vmatpush.msra.mxu0 %v1134
  %1298 = vmatmul.f32.gmra.mxu0 %v1027
  %v1299 = vpop.f32.mrf.mxu0
  %v1300 = vadd.f32 %v1280, %v1299
  %1301 = vdwg.mxu0
  %1302 = vmatpush.msra.mxu0 %v1165
  %1303 = vmatpush.msra.mxu0 %v1164
  %1304 = vmatpush.msra.mxu0 %v1163
  %1305 = vmatpush.msra.mxu0 %v1162
  %1306 = vmatpush.msra.mxu0 %v1161
  %1307 = vmatpush.msra.mxu0 %v1160
  %1308 = vmatpush.msra.mxu0 %v1159
  %1309 = vmatpush.msra.mxu0 %v1158
  %1310 = vmatpush.msra.mxu0 %v1157
  %1311 = vmatpush.msra.mxu0 %v1156
  %1312 = vmatpush.msra.mxu0 %v1155
  %1313 = vmatpush.msra.mxu0 %v1154
  %1314 = vmatpush.msra.mxu0 %v1153
  %1315 = vmatpush.msra.mxu0 %v1152
  %1316 = vmatpush.msra.mxu0 %v1151
  %1317 = vmatpush.msra.mxu0 %v1150
  %1318 = vmatmul.f32.gmra.mxu0 %v1028
  %v1319 = vpop.f32.mrf.mxu0
  %v1320 = vadd.f32 %v1300, %v1319
  %1321 = vdwg.mxu0
  %1322 = vmatpush.msra.mxu0 %v1181
  %1323 = vmatpush.msra.mxu0 %v1180
  %1324 = vmatpush.msra.mxu0 %v1179
  %1325 = vmatpush.msra.mxu0 %v1178
  %1326 = vmatpush.msra.mxu0 %v1177
  %1327 = vmatpush.msra.mxu0 %v1176
  %1328 = vmatpush.msra.mxu0 %v1175
  %1329 = vmatpush.msra.mxu0 %v1174
  %1330 = vmatpush.msra.mxu0 %v1173
  %1331 = vmatpush.msra.mxu0 %v1172
  %1332 = vmatpush.msra.mxu0 %v1171
  %1333 = vmatpush.msra.mxu0 %v1170
  %1334 = vmatpush.msra.mxu0 %v1169
  %1335 = vmatpush.msra.mxu0 %v1168
  %1336 = vmatpush.msra.mxu0 %v1167
  %1337 = vmatpush.msra.mxu0 %v1166
  %1338 = vmatmul.f32.gmra.mxu0 %v1029
  %v1339 = vpop.f32.mrf.mxu0
  %v1340 = vadd.f32 %v1320, %v1339
  %1341 = vdwg.mxu0
  %s1342 = scalar_lea.vmem %s6, 1024
  %v1343 = vld [vmem:[%s1342] sm:$0xff]
  %v1344 = vld [vmem:[%s1342 + $0x8] sm:$0xff]
  %v1345 = vld [vmem:[%s1342 + $0x10] sm:$0xff]
  %v1346 = vld [vmem:[%s1342 + $0x18] sm:$0xff]
  %v1347 = vld [vmem:[%s1342 + $0x20] sm:$0xff]
  %v1348 = vld [vmem:[%s1342 + $0x28] sm:$0xff]
  %v1349 = vld [vmem:[%s1342 + $0x30] sm:$0xff]
  %v1350 = vld [vmem:[%s1342 + $0x38] sm:$0xff]
  %v1351 = vld [vmem:[%s1342 + $0x40] sm:$0xff]
  %v1352 = vld [vmem:[%s1342 + $0x48] sm:$0xff]
  %v1353 = vld [vmem:[%s1342 + $0x50] sm:$0xff]
  %v1354 = vld [vmem:[%s1342 + $0x58] sm:$0xff]
  %v1355 = vld [vmem:[%s1342 + $0x60] sm:$0xff]
  %v1356 = vld [vmem:[%s1342 + $0x68] sm:$0xff]
  %v1357 = vld [vmem:[%s1342 + $0x70] sm:$0xff]
  %v1358 = vld [vmem:[%s1342 + $0x78] sm:$0xff]
  %v1359 = vld [vmem:[%s1342 + $0x80] sm:$0xff]
  %v1360 = vld [vmem:[%s1342 + $0x88] sm:$0xff]
  %v1361 = vld [vmem:[%s1342 + $0x90] sm:$0xff]
  %v1362 = vld [vmem:[%s1342 + $0x98] sm:$0xff]
  %v1363 = vld [vmem:[%s1342 + $0xa0] sm:$0xff]
  %v1364 = vld [vmem:[%s1342 + $0xa8] sm:$0xff]
  %v1365 = vld [vmem:[%s1342 + $0xb0] sm:$0xff]
  %v1366 = vld [vmem:[%s1342 + $0xb8] sm:$0xff]
  %v1367 = vld [vmem:[%s1342 + $0xc0] sm:$0xff]
  %v1368 = vld [vmem:[%s1342 + $0xc8] sm:$0xff]
  %v1369 = vld [vmem:[%s1342 + $0xd0] sm:$0xff]
  %v1370 = vld [vmem:[%s1342 + $0xd8] sm:$0xff]
  %v1371 = vld [vmem:[%s1342 + $0xe0] sm:$0xff]
  %v1372 = vld [vmem:[%s1342 + $0xe8] sm:$0xff]
  %v1373 = vld [vmem:[%s1342 + $0xf0] sm:$0xff]
  %v1374 = vld [vmem:[%s1342 + $0xf8] sm:$0xff]
  %v1375 = vld [vmem:[%s1342 + $0x100] sm:$0xff]
  %v1376 = vld [vmem:[%s1342 + $0x108] sm:$0xff]
  %v1377 = vld [vmem:[%s1342 + $0x110] sm:$0xff]
  %v1378 = vld [vmem:[%s1342 + $0x118] sm:$0xff]
  %v1379 = vld [vmem:[%s1342 + $0x120] sm:$0xff]
  %v1380 = vld [vmem:[%s1342 + $0x128] sm:$0xff]
  %v1381 = vld [vmem:[%s1342 + $0x130] sm:$0xff]
  %v1382 = vld [vmem:[%s1342 + $0x138] sm:$0xff]
  %v1383 = vld [vmem:[%s1342 + $0x140] sm:$0xff]
  %v1384 = vld [vmem:[%s1342 + $0x148] sm:$0xff]
  %v1385 = vld [vmem:[%s1342 + $0x150] sm:$0xff]
  %v1386 = vld [vmem:[%s1342 + $0x158] sm:$0xff]
  %v1387 = vld [vmem:[%s1342 + $0x160] sm:$0xff]
  %v1388 = vld [vmem:[%s1342 + $0x168] sm:$0xff]
  %v1389 = vld [vmem:[%s1342 + $0x170] sm:$0xff]
  %v1390 = vld [vmem:[%s1342 + $0x178] sm:$0xff]
  %v1391 = vld [vmem:[%s1342 + $0x180] sm:$0xff]
  %v1392 = vld [vmem:[%s1342 + $0x188] sm:$0xff]
  %v1393 = vld [vmem:[%s1342 + $0x190] sm:$0xff]
  %v1394 = vld [vmem:[%s1342 + $0x198] sm:$0xff]
  %v1395 = vld [vmem:[%s1342 + $0x1a0] sm:$0xff]
  %v1396 = vld [vmem:[%s1342 + $0x1a8] sm:$0xff]
  %v1397 = vld [vmem:[%s1342 + $0x1b0] sm:$0xff]
  %v1398 = vld [vmem:[%s1342 + $0x1b8] sm:$0xff]
  %v1399 = vld [vmem:[%s1342 + $0x1c0] sm:$0xff]
  %v1400 = vld [vmem:[%s1342 + $0x1c8] sm:$0xff]
  %v1401 = vld [vmem:[%s1342 + $0x1d0] sm:$0xff]
  %v1402 = vld [vmem:[%s1342 + $0x1d8] sm:$0xff]
  %v1403 = vld [vmem:[%s1342 + $0x1e0] sm:$0xff]
  %v1404 = vld [vmem:[%s1342 + $0x1e8] sm:$0xff]
  %v1405 = vld [vmem:[%s1342 + $0x1f0] sm:$0xff]
  %v1406 = vld [vmem:[%s1342 + $0x1f8] sm:$0xff]
  %v1407 = vld [vmem:[%s1342 + $0x200] sm:$0xff]
  %v1408 = vld [vmem:[%s1342 + $0x208] sm:$0xff]
  %v1409 = vld [vmem:[%s1342 + $0x210] sm:$0xff]
  %v1410 = vld [vmem:[%s1342 + $0x218] sm:$0xff]
  %v1411 = vld [vmem:[%s1342 + $0x220] sm:$0xff]
  %v1412 = vld [vmem:[%s1342 + $0x228] sm:$0xff]
  %v1413 = vld [vmem:[%s1342 + $0x230] sm:$0xff]
  %v1414 = vld [vmem:[%s1342 + $0x238] sm:$0xff]
  %v1415 = vld [vmem:[%s1342 + $0x240] sm:$0xff]
  %v1416 = vld [vmem:[%s1342 + $0x248] sm:$0xff]
  %v1417 = vld [vmem:[%s1342 + $0x250] sm:$0xff]
  %v1418 = vld [vmem:[%s1342 + $0x258] sm:$0xff]
  %v1419 = vld [vmem:[%s1342 + $0x260] sm:$0xff]
  %v1420 = vld [vmem:[%s1342 + $0x268] sm:$0xff]
  %v1421 = vld [vmem:[%s1342 + $0x270] sm:$0xff]
  %v1422 = vld [vmem:[%s1342 + $0x278] sm:$0xff]
  %v1423 = vld [vmem:[%s1342 + $0x280] sm:$0xff]
  %v1424 = vld [vmem:[%s1342 + $0x288] sm:$0xff]
  %v1425 = vld [vmem:[%s1342 + $0x290] sm:$0xff]
  %v1426 = vld [vmem:[%s1342 + $0x298] sm:$0xff]
  %v1427 = vld [vmem:[%s1342 + $0x2a0] sm:$0xff]
  %v1428 = vld [vmem:[%s1342 + $0x2a8] sm:$0xff]
  %v1429 = vld [vmem:[%s1342 + $0x2b0] sm:$0xff]
  %v1430 = vld [vmem:[%s1342 + $0x2b8] sm:$0xff]
  %v1431 = vld [vmem:[%s1342 + $0x2c0] sm:$0xff]
  %v1432 = vld [vmem:[%s1342 + $0x2c8] sm:$0xff]
  %v1433 = vld [vmem:[%s1342 + $0x2d0] sm:$0xff]
  %v1434 = vld [vmem:[%s1342 + $0x2d8] sm:$0xff]
  %v1435 = vld [vmem:[%s1342 + $0x2e0] sm:$0xff]
  %v1436 = vld [vmem:[%s1342 + $0x2e8] sm:$0xff]
  %v1437 = vld [vmem:[%s1342 + $0x2f0] sm:$0xff]
  %v1438 = vld [vmem:[%s1342 + $0x2f8] sm:$0xff]
  %v1439 = vld [vmem:[%s1342 + $0x300] sm:$0xff]
  %v1440 = vld [vmem:[%s1342 + $0x308] sm:$0xff]
  %v1441 = vld [vmem:[%s1342 + $0x310] sm:$0xff]
  %v1442 = vld [vmem:[%s1342 + $0x318] sm:$0xff]
  %v1443 = vld [vmem:[%s1342 + $0x320] sm:$0xff]
  %v1444 = vld [vmem:[%s1342 + $0x328] sm:$0xff]
  %v1445 = vld [vmem:[%s1342 + $0x330] sm:$0xff]
  %v1446 = vld [vmem:[%s1342 + $0x338] sm:$0xff]
  %v1447 = vld [vmem:[%s1342 + $0x340] sm:$0xff]
  %v1448 = vld [vmem:[%s1342 + $0x348] sm:$0xff]
  %v1449 = vld [vmem:[%s1342 + $0x350] sm:$0xff]
  %v1450 = vld [vmem:[%s1342 + $0x358] sm:$0xff]
  %v1451 = vld [vmem:[%s1342 + $0x360] sm:$0xff]
  %v1452 = vld [vmem:[%s1342 + $0x368] sm:$0xff]
  %v1453 = vld [vmem:[%s1342 + $0x370] sm:$0xff]
  %v1454 = vld [vmem:[%s1342 + $0x378] sm:$0xff]
  %v1455 = vld [vmem:[%s1342 + $0x380] sm:$0xff]
  %v1456 = vld [vmem:[%s1342 + $0x388] sm:$0xff]
  %v1457 = vld [vmem:[%s1342 + $0x390] sm:$0xff]
  %v1458 = vld [vmem:[%s1342 + $0x398] sm:$0xff]
  %v1459 = vld [vmem:[%s1342 + $0x3a0] sm:$0xff]
  %v1460 = vld [vmem:[%s1342 + $0x3a8] sm:$0xff]
  %v1461 = vld [vmem:[%s1342 + $0x3b0] sm:$0xff]
  %v1462 = vld [vmem:[%s1342 + $0x3b8] sm:$0xff]
  %v1463 = vld [vmem:[%s1342 + $0x3c0] sm:$0xff]
  %v1464 = vld [vmem:[%s1342 + $0x3c8] sm:$0xff]
  %v1465 = vld [vmem:[%s1342 + $0x3d0] sm:$0xff]
  %v1466 = vld [vmem:[%s1342 + $0x3d8] sm:$0xff]
  %v1467 = vld [vmem:[%s1342 + $0x3e0] sm:$0xff]
  %v1468 = vld [vmem:[%s1342 + $0x3e8] sm:$0xff]
  %v1469 = vld [vmem:[%s1342 + $0x3f0] sm:$0xff]
  %v1470 = vld [vmem:[%s1342 + $0x3f8] sm:$0xff]
  %1471 = vmatpush.msra.mxu0 %v1358
  %1472 = vmatpush.msra.mxu0 %v1357
  %1473 = vmatpush.msra.mxu0 %v1356
  %1474 = vmatpush.msra.mxu0 %v1355
  %1475 = vmatpush.msra.mxu0 %v1354
  %1476 = vmatpush.msra.mxu0 %v1353
  %1477 = vmatpush.msra.mxu0 %v1352
  %1478 = vmatpush.msra.mxu0 %v1351
  %1479 = vmatpush.msra.mxu0 %v1350
  %1480 = vmatpush.msra.mxu0 %v1349
  %1481 = vmatpush.msra.mxu0 %v1348
  %1482 = vmatpush.msra.mxu0 %v1347
  %1483 = vmatpush.msra.mxu0 %v1346
  %1484 = vmatpush.msra.mxu0 %v1345
  %1485 = vmatpush.msra.mxu0 %v1344
  %1486 = vmatpush.msra.mxu0 %v1343
  %1487 = vmatmul.f32.gmra.mxu0 %v1030
  %v1488 = vpop.f32.mrf.mxu0
  %v1489 = vadd.f32 0.0, %v1488
  %1490 = vdwg.mxu0
  %1491 = vmatpush.msra.mxu0 %v1374
  %1492 = vmatpush.msra.mxu0 %v1373
  %1493 = vmatpush.msra.mxu0 %v1372
  %1494 = vmatpush.msra.mxu0 %v1371
  %1495 = vmatpush.msra.mxu0 %v1370
  %1496 = vmatpush.msra.mxu0 %v1369
  %1497 = vmatpush.msra.mxu0 %v1368
  %1498 = vmatpush.msra.mxu0 %v1367
  %1499 = vmatpush.msra.mxu0 %v1366
  %1500 = vmatpush.msra.mxu0 %v1365
  %1501 = vmatpush.msra.mxu0 %v1364
  %1502 = vmatpush.msra.mxu0 %v1363
  %1503 = vmatpush.msra.mxu0 %v1362
  %1504 = vmatpush.msra.mxu0 %v1361
  %1505 = vmatpush.msra.mxu0 %v1360
  %1506 = vmatpush.msra.mxu0 %v1359
  %1507 = vmatmul.f32.gmra.mxu0 %v1031
  %v1508 = vpop.f32.mrf.mxu0
  %v1509 = vadd.f32 %v1489, %v1508
  %1510 = vdwg.mxu0
  %1511 = vmatpush.msra.mxu0 %v1390
  %1512 = vmatpush.msra.mxu0 %v1389
  %1513 = vmatpush.msra.mxu0 %v1388
  %1514 = vmatpush.msra.mxu0 %v1387
  %1515 = vmatpush.msra.mxu0 %v1386
  %1516 = vmatpush.msra.mxu0 %v1385
  %1517 = vmatpush.msra.mxu0 %v1384
  %1518 = vmatpush.msra.mxu0 %v1383
  %1519 = vmatpush.msra.mxu0 %v1382
  %1520 = vmatpush.msra.mxu0 %v1381
  %1521 = vmatpush.msra.mxu0 %v1380
  %1522 = vmatpush.msra.mxu0 %v1379
  %1523 = vmatpush.msra.mxu0 %v1378
  %1524 = vmatpush.msra.mxu0 %v1377
  %1525 = vmatpush.msra.mxu0 %v1376
  %1526 = vmatpush.msra.mxu0 %v1375
  %1527 = vmatmul.f32.gmra.mxu0 %v1032
  %v1528 = vpop.f32.mrf.mxu0
  %v1529 = vadd.f32 %v1509, %v1528
  %1530 = vdwg.mxu0
  %1531 = vmatpush.msra.mxu0 %v1406
  %1532 = vmatpush.msra.mxu0 %v1405
  %1533 = vmatpush.msra.mxu0 %v1404
  %1534 = vmatpush.msra.mxu0 %v1403
  %1535 = vmatpush.msra.mxu0 %v1402
  %1536 = vmatpush.msra.mxu0 %v1401
  %1537 = vmatpush.msra.mxu0 %v1400
  %1538 = vmatpush.msra.mxu0 %v1399
  %1539 = vmatpush.msra.mxu0 %v1398
  %1540 = vmatpush.msra.mxu0 %v1397
  %1541 = vmatpush.msra.mxu0 %v1396
  %1542 = vmatpush.msra.mxu0 %v1395
  %1543 = vmatpush.msra.mxu0 %v1394
  %1544 = vmatpush.msra.mxu0 %v1393
  %1545 = vmatpush.msra.mxu0 %v1392
  %1546 = vmatpush.msra.mxu0 %v1391
  %1547 = vmatmul.f32.gmra.mxu0 %v1033
  %v1548 = vpop.f32.mrf.mxu0
  %v1549 = vadd.f32 %v1529, %v1548
  %1550 = vdwg.mxu0
  %1551 = vmatpush.msra.mxu0 %v1422
  %1552 = vmatpush.msra.mxu0 %v1421
  %1553 = vmatpush.msra.mxu0 %v1420
  %1554 = vmatpush.msra.mxu0 %v1419
  %1555 = vmatpush.msra.mxu0 %v1418
  %1556 = vmatpush.msra.mxu0 %v1417
  %1557 = vmatpush.msra.mxu0 %v1416
  %1558 = vmatpush.msra.mxu0 %v1415
  %1559 = vmatpush.msra.mxu0 %v1414
  %1560 = vmatpush.msra.mxu0 %v1413
  %1561 = vmatpush.msra.mxu0 %v1412
  %1562 = vmatpush.msra.mxu0 %v1411
  %1563 = vmatpush.msra.mxu0 %v1410
  %1564 = vmatpush.msra.mxu0 %v1409
  %1565 = vmatpush.msra.mxu0 %v1408
  %1566 = vmatpush.msra.mxu0 %v1407
  %1567 = vmatmul.f32.gmra.mxu0 %v1034
  %v1568 = vpop.f32.mrf.mxu0
  %v1569 = vadd.f32 %v1549, %v1568
  %1570 = vdwg.mxu0
  %1571 = vmatpush.msra.mxu0 %v1438
  %1572 = vmatpush.msra.mxu0 %v1437
  %1573 = vmatpush.msra.mxu0 %v1436
  %1574 = vmatpush.msra.mxu0 %v1435
  %1575 = vmatpush.msra.mxu0 %v1434
  %1576 = vmatpush.msra.mxu0 %v1433
  %1577 = vmatpush.msra.mxu0 %v1432
  %1578 = vmatpush.msra.mxu0 %v1431
  %1579 = vmatpush.msra.mxu0 %v1430
  %1580 = vmatpush.msra.mxu0 %v1429
  %1581 = vmatpush.msra.mxu0 %v1428
  %1582 = vmatpush.msra.mxu0 %v1427
  %1583 = vmatpush.msra.mxu0 %v1426
  %1584 = vmatpush.msra.mxu0 %v1425
  %1585 = vmatpush.msra.mxu0 %v1424
  %1586 = vmatpush.msra.mxu0 %v1423
  %1587 = vmatmul.f32.gmra.mxu0 %v1035
  %v1588 = vpop.f32.mrf.mxu0
  %v1589 = vadd.f32 %v1569, %v1588
  %1590 = vdwg.mxu0
  %1591 = vmatpush.msra.mxu0 %v1454
  %1592 = vmatpush.msra.mxu0 %v1453
  %1593 = vmatpush.msra.mxu0 %v1452
  %1594 = vmatpush.msra.mxu0 %v1451
  %1595 = vmatpush.msra.mxu0 %v1450
  %1596 = vmatpush.msra.mxu0 %v1449
  %1597 = vmatpush.msra.mxu0 %v1448
  %1598 = vmatpush.msra.mxu0 %v1447
  %1599 = vmatpush.msra.mxu0 %v1446
  %1600 = vmatpush.msra.mxu0 %v1445
  %1601 = vmatpush.msra.mxu0 %v1444
  %1602 = vmatpush.msra.mxu0 %v1443
  %1603 = vmatpush.msra.mxu0 %v1442
  %1604 = vmatpush.msra.mxu0 %v1441
  %1605 = vmatpush.msra.mxu0 %v1440
  %1606 = vmatpush.msra.mxu0 %v1439
  %1607 = vmatmul.f32.gmra.mxu0 %v1036
  %v1608 = vpop.f32.mrf.mxu0
  %v1609 = vadd.f32 %v1589, %v1608
  %1610 = vdwg.mxu0
  %1611 = vmatpush.msra.mxu0 %v1470
  %1612 = vmatpush.msra.mxu0 %v1469
  %1613 = vmatpush.msra.mxu0 %v1468
  %1614 = vmatpush.msra.mxu0 %v1467
  %1615 = vmatpush.msra.mxu0 %v1466
  %1616 = vmatpush.msra.mxu0 %v1465
  %1617 = vmatpush.msra.mxu0 %v1464
  %1618 = vmatpush.msra.mxu0 %v1463
  %1619 = vmatpush.msra.mxu0 %v1462
  %1620 = vmatpush.msra.mxu0 %v1461
  %1621 = vmatpush.msra.mxu0 %v1460
  %1622 = vmatpush.msra.mxu0 %v1459
  %1623 = vmatpush.msra.mxu0 %v1458
  %1624 = vmatpush.msra.mxu0 %v1457
  %1625 = vmatpush.msra.mxu0 %v1456
  %1626 = vmatpush.msra.mxu0 %v1455
  %1627 = vmatmul.f32.gmra.mxu0 %v1037
  %v1628 = vpop.f32.mrf.mxu0
  %v1629 = vadd.f32 %v1609, %v1628
  %1630 = vdwg.mxu0
  %s1631 = scalar_lea.vmem %s6, 2048
  %v1632 = vld [vmem:[%s1631] sm:$0xff]
  %v1633 = vld [vmem:[%s1631 + $0x8] sm:$0xff]
  %v1634 = vld [vmem:[%s1631 + $0x10] sm:$0xff]
  %v1635 = vld [vmem:[%s1631 + $0x18] sm:$0xff]
  %v1636 = vld [vmem:[%s1631 + $0x20] sm:$0xff]
  %v1637 = vld [vmem:[%s1631 + $0x28] sm:$0xff]
  %v1638 = vld [vmem:[%s1631 + $0x30] sm:$0xff]
  %v1639 = vld [vmem:[%s1631 + $0x38] sm:$0xff]
  %v1640 = vld [vmem:[%s1631 + $0x40] sm:$0xff]
  %v1641 = vld [vmem:[%s1631 + $0x48] sm:$0xff]
  %v1642 = vld [vmem:[%s1631 + $0x50] sm:$0xff]
  %v1643 = vld [vmem:[%s1631 + $0x58] sm:$0xff]
  %v1644 = vld [vmem:[%s1631 + $0x60] sm:$0xff]
  %v1645 = vld [vmem:[%s1631 + $0x68] sm:$0xff]
  %v1646 = vld [vmem:[%s1631 + $0x70] sm:$0xff]
  %v1647 = vld [vmem:[%s1631 + $0x78] sm:$0xff]
  %v1648 = vld [vmem:[%s1631 + $0x80] sm:$0xff]
  %v1649 = vld [vmem:[%s1631 + $0x88] sm:$0xff]
  %v1650 = vld [vmem:[%s1631 + $0x90] sm:$0xff]
  %v1651 = vld [vmem:[%s1631 + $0x98] sm:$0xff]
  %v1652 = vld [vmem:[%s1631 + $0xa0] sm:$0xff]
  %v1653 = vld [vmem:[%s1631 + $0xa8] sm:$0xff]
  %v1654 = vld [vmem:[%s1631 + $0xb0] sm:$0xff]
  %v1655 = vld [vmem:[%s1631 + $0xb8] sm:$0xff]
  %v1656 = vld [vmem:[%s1631 + $0xc0] sm:$0xff]
  %v1657 = vld [vmem:[%s1631 + $0xc8] sm:$0xff]
  %v1658 = vld [vmem:[%s1631 + $0xd0] sm:$0xff]
  %v1659 = vld [vmem:[%s1631 + $0xd8] sm:$0xff]
  %v1660 = vld [vmem:[%s1631 + $0xe0] sm:$0xff]
  %v1661 = vld [vmem:[%s1631 + $0xe8] sm:$0xff]
  %v1662 = vld [vmem:[%s1631 + $0xf0] sm:$0xff]
  %v1663 = vld [vmem:[%s1631 + $0xf8] sm:$0xff]
  %v1664 = vld [vmem:[%s1631 + $0x100] sm:$0xff]
  %v1665 = vld [vmem:[%s1631 + $0x108] sm:$0xff]
  %v1666 = vld [vmem:[%s1631 + $0x110] sm:$0xff]
  %v1667 = vld [vmem:[%s1631 + $0x118] sm:$0xff]
  %v1668 = vld [vmem:[%s1631 + $0x120] sm:$0xff]
  %v1669 = vld [vmem:[%s1631 + $0x128] sm:$0xff]
  %v1670 = vld [vmem:[%s1631 + $0x130] sm:$0xff]
  %v1671 = vld [vmem:[%s1631 + $0x138] sm:$0xff]
  %v1672 = vld [vmem:[%s1631 + $0x140] sm:$0xff]
  %v1673 = vld [vmem:[%s1631 + $0x148] sm:$0xff]
  %v1674 = vld [vmem:[%s1631 + $0x150] sm:$0xff]
  %v1675 = vld [vmem:[%s1631 + $0x158] sm:$0xff]
  %v1676 = vld [vmem:[%s1631 + $0x160] sm:$0xff]
  %v1677 = vld [vmem:[%s1631 + $0x168] sm:$0xff]
  %v1678 = vld [vmem:[%s1631 + $0x170] sm:$0xff]
  %v1679 = vld [vmem:[%s1631 + $0x178] sm:$0xff]
  %v1680 = vld [vmem:[%s1631 + $0x180] sm:$0xff]
  %v1681 = vld [vmem:[%s1631 + $0x188] sm:$0xff]
  %v1682 = vld [vmem:[%s1631 + $0x190] sm:$0xff]
  %v1683 = vld [vmem:[%s1631 + $0x198] sm:$0xff]
  %v1684 = vld [vmem:[%s1631 + $0x1a0] sm:$0xff]
  %v1685 = vld [vmem:[%s1631 + $0x1a8] sm:$0xff]
  %v1686 = vld [vmem:[%s1631 + $0x1b0] sm:$0xff]
  %v1687 = vld [vmem:[%s1631 + $0x1b8] sm:$0xff]
  %v1688 = vld [vmem:[%s1631 + $0x1c0] sm:$0xff]
  %v1689 = vld [vmem:[%s1631 + $0x1c8] sm:$0xff]
  %v1690 = vld [vmem:[%s1631 + $0x1d0] sm:$0xff]
  %v1691 = vld [vmem:[%s1631 + $0x1d8] sm:$0xff]
  %v1692 = vld [vmem:[%s1631 + $0x1e0] sm:$0xff]
  %v1693 = vld [vmem:[%s1631 + $0x1e8] sm:$0xff]
  %v1694 = vld [vmem:[%s1631 + $0x1f0] sm:$0xff]
  %v1695 = vld [vmem:[%s1631 + $0x1f8] sm:$0xff]
  %v1696 = vld [vmem:[%s1631 + $0x200] sm:$0xff]
  %v1697 = vld [vmem:[%s1631 + $0x208] sm:$0xff]
  %v1698 = vld [vmem:[%s1631 + $0x210] sm:$0xff]
  %v1699 = vld [vmem:[%s1631 + $0x218] sm:$0xff]
  %v1700 = vld [vmem:[%s1631 + $0x220] sm:$0xff]
  %v1701 = vld [vmem:[%s1631 + $0x228] sm:$0xff]
  %v1702 = vld [vmem:[%s1631 + $0x230] sm:$0xff]
  %v1703 = vld [vmem:[%s1631 + $0x238] sm:$0xff]
  %v1704 = vld [vmem:[%s1631 + $0x240] sm:$0xff]
  %v1705 = vld [vmem:[%s1631 + $0x248] sm:$0xff]
  %v1706 = vld [vmem:[%s1631 + $0x250] sm:$0xff]
  %v1707 = vld [vmem:[%s1631 + $0x258] sm:$0xff]
  %v1708 = vld [vmem:[%s1631 + $0x260] sm:$0xff]
  %v1709 = vld [vmem:[%s1631 + $0x268] sm:$0xff]
  %v1710 = vld [vmem:[%s1631 + $0x270] sm:$0xff]
  %v1711 = vld [vmem:[%s1631 + $0x278] sm:$0xff]
  %v1712 = vld [vmem:[%s1631 + $0x280] sm:$0xff]
  %v1713 = vld [vmem:[%s1631 + $0x288] sm:$0xff]
  %v1714 = vld [vmem:[%s1631 + $0x290] sm:$0xff]
  %v1715 = vld [vmem:[%s1631 + $0x298] sm:$0xff]
  %v1716 = vld [vmem:[%s1631 + $0x2a0] sm:$0xff]
  %v1717 = vld [vmem:[%s1631 + $0x2a8] sm:$0xff]
  %v1718 = vld [vmem:[%s1631 + $0x2b0] sm:$0xff]
  %v1719 = vld [vmem:[%s1631 + $0x2b8] sm:$0xff]
  %v1720 = vld [vmem:[%s1631 + $0x2c0] sm:$0xff]
  %v1721 = vld [vmem:[%s1631 + $0x2c8] sm:$0xff]
  %v1722 = vld [vmem:[%s1631 + $0x2d0] sm:$0xff]
  %v1723 = vld [vmem:[%s1631 + $0x2d8] sm:$0xff]
  %v1724 = vld [vmem:[%s1631 + $0x2e0] sm:$0xff]
  %v1725 = vld [vmem:[%s1631 + $0x2e8] sm:$0xff]
  %v1726 = vld [vmem:[%s1631 + $0x2f0] sm:$0xff]
  %v1727 = vld [vmem:[%s1631 + $0x2f8] sm:$0xff]
  %v1728 = vld [vmem:[%s1631 + $0x300] sm:$0xff]
  %v1729 = vld [vmem:[%s1631 + $0x308] sm:$0xff]
  %v1730 = vld [vmem:[%s1631 + $0x310] sm:$0xff]
  %v1731 = vld [vmem:[%s1631 + $0x318] sm:$0xff]
  %v1732 = vld [vmem:[%s1631 + $0x320] sm:$0xff]
  %v1733 = vld [vmem:[%s1631 + $0x328] sm:$0xff]
  %v1734 = vld [vmem:[%s1631 + $0x330] sm:$0xff]
  %v1735 = vld [vmem:[%s1631 + $0x338] sm:$0xff]
  %v1736 = vld [vmem:[%s1631 + $0x340] sm:$0xff]
  %v1737 = vld [vmem:[%s1631 + $0x348] sm:$0xff]
  %v1738 = vld [vmem:[%s1631 + $0x350] sm:$0xff]
  %v1739 = vld [vmem:[%s1631 + $0x358] sm:$0xff]
  %v1740 = vld [vmem:[%s1631 + $0x360] sm:$0xff]
  %v1741 = vld [vmem:[%s1631 + $0x368] sm:$0xff]
  %v1742 = vld [vmem:[%s1631 + $0x370] sm:$0xff]
  %v1743 = vld [vmem:[%s1631 + $0x378] sm:$0xff]
  %v1744 = vld [vmem:[%s1631 + $0x380] sm:$0xff]
  %v1745 = vld [vmem:[%s1631 + $0x388] sm:$0xff]
  %v1746 = vld [vmem:[%s1631 + $0x390] sm:$0xff]
  %v1747 = vld [vmem:[%s1631 + $0x398] sm:$0xff]
  %v1748 = vld [vmem:[%s1631 + $0x3a0] sm:$0xff]
  %v1749 = vld [vmem:[%s1631 + $0x3a8] sm:$0xff]
  %v1750 = vld [vmem:[%s1631 + $0x3b0] sm:$0xff]
  %v1751 = vld [vmem:[%s1631 + $0x3b8] sm:$0xff]
  %v1752 = vld [vmem:[%s1631 + $0x3c0] sm:$0xff]
  %v1753 = vld [vmem:[%s1631 + $0x3c8] sm:$0xff]
  %v1754 = vld [vmem:[%s1631 + $0x3d0] sm:$0xff]
  %v1755 = vld [vmem:[%s1631 + $0x3d8] sm:$0xff]
  %v1756 = vld [vmem:[%s1631 + $0x3e0] sm:$0xff]
  %v1757 = vld [vmem:[%s1631 + $0x3e8] sm:$0xff]
  %v1758 = vld [vmem:[%s1631 + $0x3f0] sm:$0xff]
  %v1759 = vld [vmem:[%s1631 + $0x3f8] sm:$0xff]
  %1760 = vmatpush.msra.mxu0 %v1647
  %1761 = vmatpush.msra.mxu0 %v1646
  %1762 = vmatpush.msra.mxu0 %v1645
  %1763 = vmatpush.msra.mxu0 %v1644
  %1764 = vmatpush.msra.mxu0 %v1643
  %1765 = vmatpush.msra.mxu0 %v1642
  %1766 = vmatpush.msra.mxu0 %v1641
  %1767 = vmatpush.msra.mxu0 %v1640
  %1768 = vmatpush.msra.mxu0 %v1639
  %1769 = vmatpush.msra.mxu0 %v1638
  %1770 = vmatpush.msra.mxu0 %v1637
  %1771 = vmatpush.msra.mxu0 %v1636
  %1772 = vmatpush.msra.mxu0 %v1635
  %1773 = vmatpush.msra.mxu0 %v1634
  %1774 = vmatpush.msra.mxu0 %v1633
  %1775 = vmatpush.msra.mxu0 %v1632
  %1776 = vmatmul.f32.gmra.mxu0 %v1038
  %v1777 = vpop.f32.mrf.mxu0
  %v1778 = vadd.f32 0.0, %v1777
  %1779 = vdwg.mxu0
  %1780 = vmatpush.msra.mxu0 %v1663
  %1781 = vmatpush.msra.mxu0 %v1662
  %1782 = vmatpush.msra.mxu0 %v1661
  %1783 = vmatpush.msra.mxu0 %v1660
  %1784 = vmatpush.msra.mxu0 %v1659
  %1785 = vmatpush.msra.mxu0 %v1658
  %1786 = vmatpush.msra.mxu0 %v1657
  %1787 = vmatpush.msra.mxu0 %v1656
  %1788 = vmatpush.msra.mxu0 %v1655
  %1789 = vmatpush.msra.mxu0 %v1654
  %1790 = vmatpush.msra.mxu0 %v1653
  %1791 = vmatpush.msra.mxu0 %v1652
  %1792 = vmatpush.msra.mxu0 %v1651
  %1793 = vmatpush.msra.mxu0 %v1650
  %1794 = vmatpush.msra.mxu0 %v1649
  %1795 = vmatpush.msra.mxu0 %v1648
  %1796 = vmatmul.f32.gmra.mxu0 %v1039
  %v1797 = vpop.f32.mrf.mxu0
  %v1798 = vadd.f32 %v1778, %v1797
  %1799 = vdwg.mxu0
  %1800 = vmatpush.msra.mxu0 %v1679
  %1801 = vmatpush.msra.mxu0 %v1678
  %1802 = vmatpush.msra.mxu0 %v1677
  %1803 = vmatpush.msra.mxu0 %v1676
  %1804 = vmatpush.msra.mxu0 %v1675
  %1805 = vmatpush.msra.mxu0 %v1674
  %1806 = vmatpush.msra.mxu0 %v1673
  %1807 = vmatpush.msra.mxu0 %v1672
  %1808 = vmatpush.msra.mxu0 %v1671
  %1809 = vmatpush.msra.mxu0 %v1670
  %1810 = vmatpush.msra.mxu0 %v1669
  %1811 = vmatpush.msra.mxu0 %v1668
  %1812 = vmatpush.msra.mxu0 %v1667
  %1813 = vmatpush.msra.mxu0 %v1666
  %1814 = vmatpush.msra.mxu0 %v1665
  %1815 = vmatpush.msra.mxu0 %v1664
  %1816 = vmatmul.f32.gmra.mxu0 %v1040
  %v1817 = vpop.f32.mrf.mxu0
  %v1818 = vadd.f32 %v1798, %v1817
  %1819 = vdwg.mxu0
  %1820 = vmatpush.msra.mxu0 %v1695
  %1821 = vmatpush.msra.mxu0 %v1694
  %1822 = vmatpush.msra.mxu0 %v1693
  %1823 = vmatpush.msra.mxu0 %v1692
  %1824 = vmatpush.msra.mxu0 %v1691
  %1825 = vmatpush.msra.mxu0 %v1690
  %1826 = vmatpush.msra.mxu0 %v1689
  %1827 = vmatpush.msra.mxu0 %v1688
  %1828 = vmatpush.msra.mxu0 %v1687
  %1829 = vmatpush.msra.mxu0 %v1686
  %1830 = vmatpush.msra.mxu0 %v1685
  %1831 = vmatpush.msra.mxu0 %v1684
  %1832 = vmatpush.msra.mxu0 %v1683
  %1833 = vmatpush.msra.mxu0 %v1682
  %1834 = vmatpush.msra.mxu0 %v1681
  %1835 = vmatpush.msra.mxu0 %v1680
  %1836 = vmatmul.f32.gmra.mxu0 %v1041
  %v1837 = vpop.f32.mrf.mxu0
  %v1838 = vadd.f32 %v1818, %v1837
  %1839 = vdwg.mxu0
  %1840 = vmatpush.msra.mxu0 %v1711
  %1841 = vmatpush.msra.mxu0 %v1710
  %1842 = vmatpush.msra.mxu0 %v1709
  %1843 = vmatpush.msra.mxu0 %v1708
  %1844 = vmatpush.msra.mxu0 %v1707
  %1845 = vmatpush.msra.mxu0 %v1706
  %1846 = vmatpush.msra.mxu0 %v1705
  %1847 = vmatpush.msra.mxu0 %v1704
  %1848 = vmatpush.msra.mxu0 %v1703
  %1849 = vmatpush.msra.mxu0 %v1702
  %1850 = vmatpush.msra.mxu0 %v1701
  %1851 = vmatpush.msra.mxu0 %v1700
  %1852 = vmatpush.msra.mxu0 %v1699
  %1853 = vmatpush.msra.mxu0 %v1698
  %1854 = vmatpush.msra.mxu0 %v1697
  %1855 = vmatpush.msra.mxu0 %v1696
  %1856 = vmatmul.f32.gmra.mxu0 %v1042
  %v1857 = vpop.f32.mrf.mxu0
  %v1858 = vadd.f32 %v1838, %v1857
  %1859 = vdwg.mxu0
  %1860 = vmatpush.msra.mxu0 %v1727
  %1861 = vmatpush.msra.mxu0 %v1726
  %1862 = vmatpush.msra.mxu0 %v1725
  %1863 = vmatpush.msra.mxu0 %v1724
  %1864 = vmatpush.msra.mxu0 %v1723
  %1865 = vmatpush.msra.mxu0 %v1722
  %1866 = vmatpush.msra.mxu0 %v1721
  %1867 = vmatpush.msra.mxu0 %v1720
  %1868 = vmatpush.msra.mxu0 %v1719
  %1869 = vmatpush.msra.mxu0 %v1718
  %1870 = vmatpush.msra.mxu0 %v1717
  %1871 = vmatpush.msra.mxu0 %v1716
  %1872 = vmatpush.msra.mxu0 %v1715
  %1873 = vmatpush.msra.mxu0 %v1714
  %1874 = vmatpush.msra.mxu0 %v1713
  %1875 = vmatpush.msra.mxu0 %v1712
  %1876 = vmatmul.f32.gmra.mxu0 %v1043
  %v1877 = vpop.f32.mrf.mxu0
  %v1878 = vadd.f32 %v1858, %v1877
  %1879 = vdwg.mxu0
  %1880 = vmatpush.msra.mxu0 %v1743
  %1881 = vmatpush.msra.mxu0 %v1742
  %1882 = vmatpush.msra.mxu0 %v1741
  %1883 = vmatpush.msra.mxu0 %v1740
  %1884 = vmatpush.msra.mxu0 %v1739
  %1885 = vmatpush.msra.mxu0 %v1738
  %1886 = vmatpush.msra.mxu0 %v1737
  %1887 = vmatpush.msra.mxu0 %v1736
  %1888 = vmatpush.msra.mxu0 %v1735
  %1889 = vmatpush.msra.mxu0 %v1734
  %1890 = vmatpush.msra.mxu0 %v1733
  %1891 = vmatpush.msra.mxu0 %v1732
  %1892 = vmatpush.msra.mxu0 %v1731
  %1893 = vmatpush.msra.mxu0 %v1730
  %1894 = vmatpush.msra.mxu0 %v1729
  %1895 = vmatpush.msra.mxu0 %v1728
  %1896 = vmatmul.f32.gmra.mxu0 %v1044
  %v1897 = vpop.f32.mrf.mxu0
  %v1898 = vadd.f32 %v1878, %v1897
  %1899 = vdwg.mxu0
  %1900 = vmatpush.msra.mxu0 %v1759
  %1901 = vmatpush.msra.mxu0 %v1758
  %1902 = vmatpush.msra.mxu0 %v1757
  %1903 = vmatpush.msra.mxu0 %v1756
  %1904 = vmatpush.msra.mxu0 %v1755
  %1905 = vmatpush.msra.mxu0 %v1754
  %1906 = vmatpush.msra.mxu0 %v1753
  %1907 = vmatpush.msra.mxu0 %v1752
  %1908 = vmatpush.msra.mxu0 %v1751
  %1909 = vmatpush.msra.mxu0 %v1750
  %1910 = vmatpush.msra.mxu0 %v1749
  %1911 = vmatpush.msra.mxu0 %v1748
  %1912 = vmatpush.msra.mxu0 %v1747
  %1913 = vmatpush.msra.mxu0 %v1746
  %1914 = vmatpush.msra.mxu0 %v1745
  %1915 = vmatpush.msra.mxu0 %v1744
  %1916 = vmatmul.f32.gmra.mxu0 %v1045
  %v1917 = vpop.f32.mrf.mxu0
  %v1918 = vadd.f32 %v1898, %v1917
  %1919 = vdwg.mxu0
  %s1920 = scalar_lea.vmem %s6, 3072
  %v1921 = vld [vmem:[%s1920] sm:$0xff]
  %v1922 = vld [vmem:[%s1920 + $0x8] sm:$0xff]
  %v1923 = vld [vmem:[%s1920 + $0x10] sm:$0xff]
  %v1924 = vld [vmem:[%s1920 + $0x18] sm:$0xff]
  %v1925 = vld [vmem:[%s1920 + $0x20] sm:$0xff]
  %v1926 = vld [vmem:[%s1920 + $0x28] sm:$0xff]
  %v1927 = vld [vmem:[%s1920 + $0x30] sm:$0xff]
  %v1928 = vld [vmem:[%s1920 + $0x38] sm:$0xff]
  %v1929 = vld [vmem:[%s1920 + $0x40] sm:$0xff]
  %v1930 = vld [vmem:[%s1920 + $0x48] sm:$0xff]
  %v1931 = vld [vmem:[%s1920 + $0x50] sm:$0xff]
  %v1932 = vld [vmem:[%s1920 + $0x58] sm:$0xff]
  %v1933 = vld [vmem:[%s1920 + $0x60] sm:$0xff]
  %v1934 = vld [vmem:[%s1920 + $0x68] sm:$0xff]
  %v1935 = vld [vmem:[%s1920 + $0x70] sm:$0xff]
  %v1936 = vld [vmem:[%s1920 + $0x78] sm:$0xff]
  %v1937 = vld [vmem:[%s1920 + $0x80] sm:$0xff]
  %v1938 = vld [vmem:[%s1920 + $0x88] sm:$0xff]
  %v1939 = vld [vmem:[%s1920 + $0x90] sm:$0xff]
  %v1940 = vld [vmem:[%s1920 + $0x98] sm:$0xff]
  %v1941 = vld [vmem:[%s1920 + $0xa0] sm:$0xff]
  %v1942 = vld [vmem:[%s1920 + $0xa8] sm:$0xff]
  %v1943 = vld [vmem:[%s1920 + $0xb0] sm:$0xff]
  %v1944 = vld [vmem:[%s1920 + $0xb8] sm:$0xff]
  %v1945 = vld [vmem:[%s1920 + $0xc0] sm:$0xff]
  %v1946 = vld [vmem:[%s1920 + $0xc8] sm:$0xff]
  %v1947 = vld [vmem:[%s1920 + $0xd0] sm:$0xff]
  %v1948 = vld [vmem:[%s1920 + $0xd8] sm:$0xff]
  %v1949 = vld [vmem:[%s1920 + $0xe0] sm:$0xff]
  %v1950 = vld [vmem:[%s1920 + $0xe8] sm:$0xff]
  %v1951 = vld [vmem:[%s1920 + $0xf0] sm:$0xff]
  %v1952 = vld [vmem:[%s1920 + $0xf8] sm:$0xff]
  %v1953 = vld [vmem:[%s1920 + $0x100] sm:$0xff]
  %v1954 = vld [vmem:[%s1920 + $0x108] sm:$0xff]
  %v1955 = vld [vmem:[%s1920 + $0x110] sm:$0xff]
  %v1956 = vld [vmem:[%s1920 + $0x118] sm:$0xff]
  %v1957 = vld [vmem:[%s1920 + $0x120] sm:$0xff]
  %v1958 = vld [vmem:[%s1920 + $0x128] sm:$0xff]
  %v1959 = vld [vmem:[%s1920 + $0x130] sm:$0xff]
  %v1960 = vld [vmem:[%s1920 + $0x138] sm:$0xff]
  %v1961 = vld [vmem:[%s1920 + $0x140] sm:$0xff]
  %v1962 = vld [vmem:[%s1920 + $0x148] sm:$0xff]
  %v1963 = vld [vmem:[%s1920 + $0x150] sm:$0xff]
  %v1964 = vld [vmem:[%s1920 + $0x158] sm:$0xff]
  %v1965 = vld [vmem:[%s1920 + $0x160] sm:$0xff]
  %v1966 = vld [vmem:[%s1920 + $0x168] sm:$0xff]
  %v1967 = vld [vmem:[%s1920 + $0x170] sm:$0xff]
  %v1968 = vld [vmem:[%s1920 + $0x178] sm:$0xff]
  %v1969 = vld [vmem:[%s1920 + $0x180] sm:$0xff]
  %v1970 = vld [vmem:[%s1920 + $0x188] sm:$0xff]
  %v1971 = vld [vmem:[%s1920 + $0x190] sm:$0xff]
  %v1972 = vld [vmem:[%s1920 + $0x198] sm:$0xff]
  %v1973 = vld [vmem:[%s1920 + $0x1a0] sm:$0xff]
  %v1974 = vld [vmem:[%s1920 + $0x1a8] sm:$0xff]
  %v1975 = vld [vmem:[%s1920 + $0x1b0] sm:$0xff]
  %v1976 = vld [vmem:[%s1920 + $0x1b8] sm:$0xff]
  %v1977 = vld [vmem:[%s1920 + $0x1c0] sm:$0xff]
  %v1978 = vld [vmem:[%s1920 + $0x1c8] sm:$0xff]
  %v1979 = vld [vmem:[%s1920 + $0x1d0] sm:$0xff]
  %v1980 = vld [vmem:[%s1920 + $0x1d8] sm:$0xff]
  %v1981 = vld [vmem:[%s1920 + $0x1e0] sm:$0xff]
  %v1982 = vld [vmem:[%s1920 + $0x1e8] sm:$0xff]
  %v1983 = vld [vmem:[%s1920 + $0x1f0] sm:$0xff]
  %v1984 = vld [vmem:[%s1920 + $0x1f8] sm:$0xff]
  %v1985 = vld [vmem:[%s1920 + $0x200] sm:$0xff]
  %v1986 = vld [vmem:[%s1920 + $0x208] sm:$0xff]
  %v1987 = vld [vmem:[%s1920 + $0x210] sm:$0xff]
  %v1988 = vld [vmem:[%s1920 + $0x218] sm:$0xff]
  %v1989 = vld [vmem:[%s1920 + $0x220] sm:$0xff]
  %v1990 = vld [vmem:[%s1920 + $0x228] sm:$0xff]
  %v1991 = vld [vmem:[%s1920 + $0x230] sm:$0xff]
  %v1992 = vld [vmem:[%s1920 + $0x238] sm:$0xff]
  %v1993 = vld [vmem:[%s1920 + $0x240] sm:$0xff]
  %v1994 = vld [vmem:[%s1920 + $0x248] sm:$0xff]
  %v1995 = vld [vmem:[%s1920 + $0x250] sm:$0xff]
  %v1996 = vld [vmem:[%s1920 + $0x258] sm:$0xff]
  %v1997 = vld [vmem:[%s1920 + $0x260] sm:$0xff]
  %v1998 = vld [vmem:[%s1920 + $0x268] sm:$0xff]
  %v1999 = vld [vmem:[%s1920 + $0x270] sm:$0xff]
  %v2000 = vld [vmem:[%s1920 + $0x278] sm:$0xff]
  %v2001 = vld [vmem:[%s1920 + $0x280] sm:$0xff]
  %v2002 = vld [vmem:[%s1920 + $0x288] sm:$0xff]
  %v2003 = vld [vmem:[%s1920 + $0x290] sm:$0xff]
  %v2004 = vld [vmem:[%s1920 + $0x298] sm:$0xff]
  %v2005 = vld [vmem:[%s1920 + $0x2a0] sm:$0xff]
  %v2006 = vld [vmem:[%s1920 + $0x2a8] sm:$0xff]
  %v2007 = vld [vmem:[%s1920 + $0x2b0] sm:$0xff]
  %v2008 = vld [vmem:[%s1920 + $0x2b8] sm:$0xff]
  %v2009 = vld [vmem:[%s1920 + $0x2c0] sm:$0xff]
  %v2010 = vld [vmem:[%s1920 + $0x2c8] sm:$0xff]
  %v2011 = vld [vmem:[%s1920 + $0x2d0] sm:$0xff]
  %v2012 = vld [vmem:[%s1920 + $0x2d8] sm:$0xff]
  %v2013 = vld [vmem:[%s1920 + $0x2e0] sm:$0xff]
  %v2014 = vld [vmem:[%s1920 + $0x2e8] sm:$0xff]
  %v2015 = vld [vmem:[%s1920 + $0x2f0] sm:$0xff]
  %v2016 = vld [vmem:[%s1920 + $0x2f8] sm:$0xff]
  %v2017 = vld [vmem:[%s1920 + $0x300] sm:$0xff]
  %v2018 = vld [vmem:[%s1920 + $0x308] sm:$0xff]
  %v2019 = vld [vmem:[%s1920 + $0x310] sm:$0xff]
  %v2020 = vld [vmem:[%s1920 + $0x318] sm:$0xff]
  %v2021 = vld [vmem:[%s1920 + $0x320] sm:$0xff]
  %v2022 = vld [vmem:[%s1920 + $0x328] sm:$0xff]
  %v2023 = vld [vmem:[%s1920 + $0x330] sm:$0xff]
  %v2024 = vld [vmem:[%s1920 + $0x338] sm:$0xff]
  %v2025 = vld [vmem:[%s1920 + $0x340] sm:$0xff]
  %v2026 = vld [vmem:[%s1920 + $0x348] sm:$0xff]
  %v2027 = vld [vmem:[%s1920 + $0x350] sm:$0xff]
  %v2028 = vld [vmem:[%s1920 + $0x358] sm:$0xff]
  %v2029 = vld [vmem:[%s1920 + $0x360] sm:$0xff]
  %v2030 = vld [vmem:[%s1920 + $0x368] sm:$0xff]
  %v2031 = vld [vmem:[%s1920 + $0x370] sm:$0xff]
  %v2032 = vld [vmem:[%s1920 + $0x378] sm:$0xff]
  %v2033 = vld [vmem:[%s1920 + $0x380] sm:$0xff]
  %v2034 = vld [vmem:[%s1920 + $0x388] sm:$0xff]
  %v2035 = vld [vmem:[%s1920 + $0x390] sm:$0xff]
  %v2036 = vld [vmem:[%s1920 + $0x398] sm:$0xff]
  %v2037 = vld [vmem:[%s1920 + $0x3a0] sm:$0xff]
  %v2038 = vld [vmem:[%s1920 + $0x3a8] sm:$0xff]
  %v2039 = vld [vmem:[%s1920 + $0x3b0] sm:$0xff]
  %v2040 = vld [vmem:[%s1920 + $0x3b8] sm:$0xff]
  %v2041 = vld [vmem:[%s1920 + $0x3c0] sm:$0xff]
  %v2042 = vld [vmem:[%s1920 + $0x3c8] sm:$0xff]
  %v2043 = vld [vmem:[%s1920 + $0x3d0] sm:$0xff]
  %v2044 = vld [vmem:[%s1920 + $0x3d8] sm:$0xff]
  %v2045 = vld [vmem:[%s1920 + $0x3e0] sm:$0xff]
  %v2046 = vld [vmem:[%s1920 + $0x3e8] sm:$0xff]
  %v2047 = vld [vmem:[%s1920 + $0x3f0] sm:$0xff]
  %v2048 = vld [vmem:[%s1920 + $0x3f8] sm:$0xff]
  %2049 = vmatpush.msra.mxu0 %v1936
  %2050 = vmatpush.msra.mxu0 %v1935
  %2051 = vmatpush.msra.mxu0 %v1934
  %2052 = vmatpush.msra.mxu0 %v1933
  %2053 = vmatpush.msra.mxu0 %v1932
  %2054 = vmatpush.msra.mxu0 %v1931
  %2055 = vmatpush.msra.mxu0 %v1930
  %2056 = vmatpush.msra.mxu0 %v1929
  %2057 = vmatpush.msra.mxu0 %v1928
  %2058 = vmatpush.msra.mxu0 %v1927
  %2059 = vmatpush.msra.mxu0 %v1926
  %2060 = vmatpush.msra.mxu0 %v1925
  %2061 = vmatpush.msra.mxu0 %v1924
  %2062 = vmatpush.msra.mxu0 %v1923
  %2063 = vmatpush.msra.mxu0 %v1922
  %2064 = vmatpush.msra.mxu0 %v1921
  %2065 = vmatmul.f32.gmra.mxu0 %v1046
  %v2066 = vpop.f32.mrf.mxu0
  %v2067 = vadd.f32 0.0, %v2066
  %2068 = vdwg.mxu0
  %2069 = vmatpush.msra.mxu0 %v1952
  %2070 = vmatpush.msra.mxu0 %v1951
  %2071 = vmatpush.msra.mxu0 %v1950
  %2072 = vmatpush.msra.mxu0 %v1949
  %2073 = vmatpush.msra.mxu0 %v1948
  %2074 = vmatpush.msra.mxu0 %v1947
  %2075 = vmatpush.msra.mxu0 %v1946
  %2076 = vmatpush.msra.mxu0 %v1945
  %2077 = vmatpush.msra.mxu0 %v1944
  %2078 = vmatpush.msra.mxu0 %v1943
  %2079 = vmatpush.msra.mxu0 %v1942
  %2080 = vmatpush.msra.mxu0 %v1941
  %2081 = vmatpush.msra.mxu0 %v1940
  %2082 = vmatpush.msra.mxu0 %v1939
  %2083 = vmatpush.msra.mxu0 %v1938
  %2084 = vmatpush.msra.mxu0 %v1937
  %2085 = vmatmul.f32.gmra.mxu0 %v1047
  %v2086 = vpop.f32.mrf.mxu0
  %v2087 = vadd.f32 %v2067, %v2086
  %2088 = vdwg.mxu0
  %2089 = vmatpush.msra.mxu0 %v1968
  %2090 = vmatpush.msra.mxu0 %v1967
  %2091 = vmatpush.msra.mxu0 %v1966
  %2092 = vmatpush.msra.mxu0 %v1965
  %2093 = vmatpush.msra.mxu0 %v1964
  %2094 = vmatpush.msra.mxu0 %v1963
  %2095 = vmatpush.msra.mxu0 %v1962
  %2096 = vmatpush.msra.mxu0 %v1961
  %2097 = vmatpush.msra.mxu0 %v1960
  %2098 = vmatpush.msra.mxu0 %v1959
  %2099 = vmatpush.msra.mxu0 %v1958
  %2100 = vmatpush.msra.mxu0 %v1957
  %2101 = vmatpush.msra.mxu0 %v1956
  %2102 = vmatpush.msra.mxu0 %v1955
  %2103 = vmatpush.msra.mxu0 %v1954
  %2104 = vmatpush.msra.mxu0 %v1953
  %2105 = vmatmul.f32.gmra.mxu0 %v1048
  %v2106 = vpop.f32.mrf.mxu0
  %v2107 = vadd.f32 %v2087, %v2106
  %2108 = vdwg.mxu0
  %2109 = vmatpush.msra.mxu0 %v1984
  %2110 = vmatpush.msra.mxu0 %v1983
  %2111 = vmatpush.msra.mxu0 %v1982
  %2112 = vmatpush.msra.mxu0 %v1981
  %2113 = vmatpush.msra.mxu0 %v1980
  %2114 = vmatpush.msra.mxu0 %v1979
  %2115 = vmatpush.msra.mxu0 %v1978
  %2116 = vmatpush.msra.mxu0 %v1977
  %2117 = vmatpush.msra.mxu0 %v1976
  %2118 = vmatpush.msra.mxu0 %v1975
  %2119 = vmatpush.msra.mxu0 %v1974
  %2120 = vmatpush.msra.mxu0 %v1973
  %2121 = vmatpush.msra.mxu0 %v1972
  %2122 = vmatpush.msra.mxu0 %v1971
  %2123 = vmatpush.msra.mxu0 %v1970
  %2124 = vmatpush.msra.mxu0 %v1969
  %2125 = vmatmul.f32.gmra.mxu0 %v1049
  %v2126 = vpop.f32.mrf.mxu0
  %v2127 = vadd.f32 %v2107, %v2126
  %2128 = vdwg.mxu0
  %2129 = vmatpush.msra.mxu0 %v2000
  %2130 = vmatpush.msra.mxu0 %v1999
  %2131 = vmatpush.msra.mxu0 %v1998
  %2132 = vmatpush.msra.mxu0 %v1997
  %2133 = vmatpush.msra.mxu0 %v1996
  %2134 = vmatpush.msra.mxu0 %v1995
  %2135 = vmatpush.msra.mxu0 %v1994
  %2136 = vmatpush.msra.mxu0 %v1993
  %2137 = vmatpush.msra.mxu0 %v1992
  %2138 = vmatpush.msra.mxu0 %v1991
  %2139 = vmatpush.msra.mxu0 %v1990
  %2140 = vmatpush.msra.mxu0 %v1989
  %2141 = vmatpush.msra.mxu0 %v1988
  %2142 = vmatpush.msra.mxu0 %v1987
  %2143 = vmatpush.msra.mxu0 %v1986
  %2144 = vmatpush.msra.mxu0 %v1985
  %2145 = vmatmul.f32.gmra.mxu0 %v1050
  %v2146 = vpop.f32.mrf.mxu0
  %v2147 = vadd.f32 %v2127, %v2146
  %2148 = vdwg.mxu0
  %2149 = vmatpush.msra.mxu0 %v2016
  %2150 = vmatpush.msra.mxu0 %v2015
  %2151 = vmatpush.msra.mxu0 %v2014
  %2152 = vmatpush.msra.mxu0 %v2013
  %2153 = vmatpush.msra.mxu0 %v2012
  %2154 = vmatpush.msra.mxu0 %v2011
  %2155 = vmatpush.msra.mxu0 %v2010
  %2156 = vmatpush.msra.mxu0 %v2009
  %2157 = vmatpush.msra.mxu0 %v2008
  %2158 = vmatpush.msra.mxu0 %v2007
  %2159 = vmatpush.msra.mxu0 %v2006
  %2160 = vmatpush.msra.mxu0 %v2005
  %2161 = vmatpush.msra.mxu0 %v2004
  %2162 = vmatpush.msra.mxu0 %v2003
  %2163 = vmatpush.msra.mxu0 %v2002
  %2164 = vmatpush.msra.mxu0 %v2001
  %2165 = vmatmul.f32.gmra.mxu0 %v1051
  %v2166 = vpop.f32.mrf.mxu0
  %v2167 = vadd.f32 %v2147, %v2166
  %2168 = vdwg.mxu0
  %2169 = vmatpush.msra.mxu0 %v2032
  %2170 = vmatpush.msra.mxu0 %v2031
  %2171 = vmatpush.msra.mxu0 %v2030
  %2172 = vmatpush.msra.mxu0 %v2029
  %2173 = vmatpush.msra.mxu0 %v2028
  %2174 = vmatpush.msra.mxu0 %v2027
  %2175 = vmatpush.msra.mxu0 %v2026
  %2176 = vmatpush.msra.mxu0 %v2025
  %2177 = vmatpush.msra.mxu0 %v2024
  %2178 = vmatpush.msra.mxu0 %v2023
  %2179 = vmatpush.msra.mxu0 %v2022
  %2180 = vmatpush.msra.mxu0 %v2021
  %2181 = vmatpush.msra.mxu0 %v2020
  %2182 = vmatpush.msra.mxu0 %v2019
  %2183 = vmatpush.msra.mxu0 %v2018
  %2184 = vmatpush.msra.mxu0 %v2017
  %2185 = vmatmul.f32.gmra.mxu0 %v1052
  %v2186 = vpop.f32.mrf.mxu0
  %v2187 = vadd.f32 %v2167, %v2186
  %2188 = vdwg.mxu0
  %2189 = vmatpush.msra.mxu0 %v2048
  %2190 = vmatpush.msra.mxu0 %v2047
  %2191 = vmatpush.msra.mxu0 %v2046
  %2192 = vmatpush.msra.mxu0 %v2045
  %2193 = vmatpush.msra.mxu0 %v2044
  %2194 = vmatpush.msra.mxu0 %v2043
  %2195 = vmatpush.msra.mxu0 %v2042
  %2196 = vmatpush.msra.mxu0 %v2041
  %2197 = vmatpush.msra.mxu0 %v2040
  %2198 = vmatpush.msra.mxu0 %v2039
  %2199 = vmatpush.msra.mxu0 %v2038
  %2200 = vmatpush.msra.mxu0 %v2037
  %2201 = vmatpush.msra.mxu0 %v2036
  %2202 = vmatpush.msra.mxu0 %v2035
  %2203 = vmatpush.msra.mxu0 %v2034
  %2204 = vmatpush.msra.mxu0 %v2033
  %2205 = vmatmul.f32.gmra.mxu0 %v1053
  %v2206 = vpop.f32.mrf.mxu0
  %v2207 = vadd.f32 %v2187, %v2206
  %2208 = vdwg.mxu0
  %2210 = vrot.lane.b32.xlu0 %v1629, 64
  %v2211 = vpop.permute.xlu0 %2210
  %2214 = vrot.lane.b32.xlu0 %v2207, 64
  %v2215 = vpop.permute.xlu0 %2214
  %v2217 = vsel %vm55, %v1340, %v2211
  %v2218 = vsel %vm55, %v1918, %v2215
  %v2219 = vld [vmem:[%s7] sm:$0x3]
  %v2221 = vperm.slane %v2219, 0
  %v2222 = vperm.slane %v2219, 1
  %v2225 = vadd.f32 %v2217, %v2221
  %v2226 = vadd.f32 %v2218, %v2222
  %v2229 = vrot.slane %v2226, 6
  %vm2230 = vcmask 1041408
  %v2231 = vsel %vm2230, %v2225, %v2229
  %2233 = vst [vmem:[%s9] sm:$0xf] %v2231
  // Predicated region
  $region34: #{residual_mh_forward.2} parent=0 // pred_check
    _
  $region35: #{residual_mh_forward.2} parent=0 // pred_check_branch
    %2235 = sbr.rel (0) target = $region37
  $region36: #{residual_mh_forward.2} parent=0 // pred_region
    _
  $region37: #{residual_mh_forward.2} parent=0 // pred_fallthru
    _
  // Predicated region
  $region38: #{residual_mh_forward.2} parent=0 // pred_check
    _
  $region39: #{residual_mh_forward.2} parent=0 // pred_check_branch
    %2237 = sbr.rel (0) target = $region41
  $region40: #{residual_mh_forward.2} parent=0 // pred_region
    _
  $region41: #{residual_mh_forward.2} parent=0 // pred_fallthru
    _
  // Predicated region
  $region42: #{residual_mh_forward.2} parent=0 // pred_check
    _
  $region43: #{residual_mh_forward.2} parent=0 // pred_check_branch
    %2239 = sbr.rel (0) target = $region45
  $region44: #{residual_mh_forward.2} parent=0 // pred_region
    _
  $region45: #{residual_mh_forward.2} parent=0 // pred_fallthru
    _
  // Predicated region
  $region46: #{residual_mh_forward.2} parent=0 // pred_check
    _
  $region47: #{residual_mh_forward.2} parent=0 // pred_check_branch
    %2241 = sbr.rel (0) target = $region49
  $region48: #{residual_mh_forward.2} parent=0 // pred_region
    _
  $region49: #{residual_mh_forward.2} parent=0 // pred_fallthru
    _

</llo_original>
